<compile_context>
chip_gen: v7x
topology: tpu7x:2x2x1
jax: 0.10.0
libtpu: 0.0.40
codegen_flags: <defaults>
</compile_context>

<pallas_src>
import functools

import jax
import jax.numpy as jnp
from jax.experimental import pallas as pl
from jax.experimental.pallas import tpu as pltpu


LANE = 128      # vreg lane width
SUBLANE = 8     # vreg sublane count (f32)


def _round_up(x, m):
    return (x + m - 1) // m * m


def _padded_dims(embedding_dim, hidden_dim, output_dim):
    Ep = _round_up(embedding_dim, LANE)    # layer-0 input width
    Hp = _round_up(hidden_dim, LANE)       # per-gate width / layer>=1 input width
    Op = _round_up(output_dim, LANE)       # fc output width
    return Ep, Hp, Op


def _device_kind():
    try:
        return jax.devices()[0].device_kind.lower()
    except Exception:
        return ""


def _num_tensorcores():
    # v7x has 2 TensorCores per chip; v5e/v6e have 1.
    return 2 if "7" in _device_kind() else 1


def _vmem_limit_bytes():
    # 128 MiB physical on v5e/v6e, 64 MiB per TC on v7x.
    return 48 * 1024 * 1024 if "7" in _device_kind() else 96 * 1024 * 1024


def _plan_batch(batch, n_cores):
    """Pick (padded batch, batch block): one big block per core, <=256 rows."""
    blocks = n_cores if (n_cores > 1 and batch >= SUBLANE * n_cores) else 1
    while -(-batch // blocks) > 256:
        blocks *= 2
    Bp = _round_up(max(batch, 1), SUBLANE * blocks)
    return Bp, Bp // blocks


# ----------------------------------------------------------------------------
# Fused Pallas kernel: L-layer LSTM over the full sequence + fc + sigmoid
# ----------------------------------------------------------------------------
def fused_lstm_fc_kernel(x_ref, h0_ref, c0_ref, wih_ref, whh_ref, b_ref,
                         fcw_ref, fcb_ref,
                         sig_ref, hT_ref, cT_ref,
                         *scratch,
                         num_layers, hidden_p, t_chunk, matmul_dtype,
                         carry_in_regs):
    """One batch block.

    x_ref   : (T, BB, Ep)      time-major, padded embeddings (fp32)
    h0/c0   : (L, BB, Hp)      initial state (padded, fp32)
    wih_ref : (L, Kmax, 4Hp)   input->gates weights (pre-transposed, matmul_dtype)
    whh_ref : (L, Hp, 4Hp)     hidden->gates weights (matmul_dtype)
    b_ref   : (L, 1, 4Hp)      b_ih + b_hh (fp32)
    fcw/fcb : (Hp, Op) matmul_dtype, (1, Op) fp32
    sig_ref : (BB, Op)         sigmoid(fc(h_T of top layer))
    hT/cT   : (L, BB, Hp)      final state per layer
    scratch : xg (Tc*BB, 4Hp) f32
              [seq (T*BB, Hp) f32]           only if num_layers > 1
              [h_sc, c_sc (BB, Hp) f32]      only if not carry_in_regs
    """
    T, BB, Ep = x_ref.shape
    Hp = hidden_p
    Tc = t_chunk

    si = 0
    xg_sc = scratch[si]; si += 1
    seq_sc = None
    if num_layers > 1:
        seq_sc = scratch[si]; si += 1
    if not carry_in_regs:
        h_sc = scratch[si]
        c_sc = scratch[si + 1]

    def mm(a, w):
        # MXU matmul; bf16 operands by default, fp32 accumulation.
        return jnp.dot(a.astype(matmul_dtype), w.astype(matmul_dtype),
                       preferred_element_type=jnp.float32)

    def sigmoid1(x):
        # sigmoid(x) == 0.5*tanh(0.5*x) + 0.5  -> single EUP op (no exp+divide).
        return 0.5 * jnp.tanh(0.5 * x) + 0.5

    n_chunks = (T + Tc - 1) // Tc
    h = None
    c = None

    for layer in range(num_layers):
        # Layer 0 consumes Ep input columns, layers >= 1 consume Hp.
        Kin = Ep if layer == 0 else Hp
        wih_l = wih_ref[layer]                       # (Kmax, 4Hp), matmul_dtype
        if Kin != wih_l.shape[0]:
            wih_l = wih_l[0:Kin, :]
        whh_l = whh_ref[layer]                       # (Hp, 4Hp), matmul_dtype
        b_l = b_ref[layer]                           # (1, 4Hp), f32
        write_seq = layer + 1 < num_layers           # top layer's sequence unused

        if carry_in_regs:
            h = h0_ref[layer]
            c = c0_ref[layer]
        else:
            h_sc[...] = h0_ref[layer]
            c_sc[...] = c0_ref[layer]

        for ck in range(n_chunks):                   # static T-chunk loop
            t0 = ck * Tc
            tl = min(Tc, T - t0)                     # static chunk length

            # Hoisted input projection for this chunk: one (tl*BB, Kin)x(Kin, 4Hp)
            # MXU matmul; bias added once (no per-step re-broadcast).
            if layer == 0:
                x_chunk = x_ref[pl.ds(t0, tl)].reshape(tl * BB, Ep)
            else:
                x_chunk = seq_sc[pl.ds(t0 * BB, tl * BB), :]
            proj = mm(x_chunk, wih_l) + b_l
            if tl * BB == xg_sc.shape[0]:
                xg_sc[...] = proj
            else:
                xg_sc[pl.ds(0, tl * BB), :] = proj

            def step(t, carry):
                row = pl.multiple_of(t * BB, BB)
                if carry_in_regs:
                    h_t, c_t = carry
                else:
                    h_t = h_sc[...]
                    c_t = c_sc[...]
                gates = xg_sc[pl.ds(row, BB), :] + jnp.dot(
                    h_t.astype(matmul_dtype), whh_l,
                    preferred_element_type=jnp.float32)
                # PyTorch gate order (i, f, g, o); each slice is lane-aligned
                # (per-gate padding to a multiple of 128).
                i_g = sigmoid1(gates[:, 0 * Hp:1 * Hp])
                f_g = sigmoid1(gates[:, 1 * Hp:2 * Hp])
                g_g = jnp.tanh(gates[:, 2 * Hp:3 * Hp])
                o_g = sigmoid1(gates[:, 3 * Hp:4 * Hp])
                c_new = f_g * c_t + i_g * g_g
                h_new = o_g * jnp.tanh(c_new)
                if write_seq:
                    # Becomes the next layer's input; in-place overwrite is safe
                    # (this chunk's rows were consumed into xg_sc above).
                    grow = pl.multiple_of(t0 * BB + t * BB, BB)
                    seq_sc[pl.ds(grow, BB), :] = h_new
                if carry_in_regs:
                    return (h_new, c_new)
                h_sc[...] = h_new
                c_sc[...] = c_new
                return carry

            unroll = True if tl <= 32 else 4
            if carry_in_regs:
                h, c = jax.lax.fori_loop(0, tl, step, (h, c), unroll=unroll)
            else:
                jax.lax.fori_loop(0, tl, step, 0, unroll=unroll)

        if not carry_in_regs:
            h = h_sc[...]
            c = c_sc[...]
        hT_ref[layer] = h
        cT_ref[layer] = c

    # FC + sigmoid only on the last hidden state of the top layer; (BB, Op)
    # store is lane-dense.  Dropout(p=0.3) before fc is identity under eval.
    # TODO(synk): train-mode dropout could use pltpu.prng_random_bits here.
    sig_ref[...] = sigmoid1(mm(h, fcw_ref[...]) + fcb_ref[...])


# ----------------------------------------------------------------------------
# pallas_call wrapper
# ----------------------------------------------------------------------------
def run_sentiment_kernel(x_tm, h0, c0, wih, whh, bias, fc_w, fc_b, *,
                         batch_block, t_chunk, matmul_dtype, carry_in_regs):
    T, Bp, Ep = x_tm.shape
    L, _, Hp = h0.shape
    Kmax = wih.shape[1]
    G = wih.shape[-1]            # 4 * Hp
    Op = fc_w.shape[-1]
    BB = batch_block
    Tc = t_chunk
    assert BB % SUBLANE == 0 and Bp % BB == 0

    kernel = functools.partial(
        fused_lstm_fc_kernel, num_layers=L, hidden_p=Hp, t_chunk=Tc,
        matmul_dtype=matmul_dtype, carry_in_regs=carry_in_regs)

    grid = (Bp // BB,)           # independent batch blocks (fills both TCs on v7x)
    in_specs = [
        pl.BlockSpec((T, BB, Ep), lambda i: (0, i, 0)),     # x (batch-blocked)
        pl.BlockSpec((L, BB, Hp), lambda i: (0, i, 0)),     # h0
        pl.BlockSpec((L, BB, Hp), lambda i: (0, i, 0)),     # c0
        # TODO(synk): pipeline_mode=pl.Buffered(1) on the grid-invariant weight
        # inputs would halve their VMEM footprint for very large H on v7x.
        pl.BlockSpec((L, Kmax, G), lambda i: (0, 0, 0)),    # W_ih (resident)
        pl.BlockSpec((L, Hp, G), lambda i: (0, 0, 0)),      # W_hh (resident)
        pl.BlockSpec((L, 1, G), lambda i: (0, 0, 0)),       # b_ih + b_hh
        pl.BlockSpec((Hp, Op), lambda i: (0, 0)),           # fc_w
        pl.BlockSpec((1, Op), lambda i: (0, 0)),            # fc_b
    ]
    out_specs = (
        pl.BlockSpec((BB, Op), lambda i: (i, 0)),           # sigmoid(fc(h_T))
        pl.BlockSpec((L, BB, Hp), lambda i: (0, i, 0)),     # h_T per layer
        pl.BlockSpec((L, BB, Hp), lambda i: (0, i, 0)),     # c_T per layer
    )
    out_shape = (
        jax.ShapeDtypeStruct((Bp, Op), jnp.float32),
        jax.ShapeDtypeStruct((L, Bp, Hp), jnp.float32),
        jax.ShapeDtypeStruct((L, Bp, Hp), jnp.float32),
    )
    scratch_shapes = [pltpu.VMEM((Tc * BB, G), jnp.float32)]   # x@W_ih + b (chunked)
    if L > 1:
        # TODO(synk): store the layer-to-layer sequence in bf16 (and wavefront-
        # chunk it over T) to halve this buffer once BB is 16-row aligned.
        scratch_shapes.append(pltpu.VMEM((T * BB, Hp), jnp.float32))
    if not carry_in_regs:
        scratch_shapes += [pltpu.VMEM((BB, Hp), jnp.float32),   # h carry
                           pltpu.VMEM((BB, Hp), jnp.float32)]   # c carry

    return pl.pallas_call(
        kernel,
        out_shape=out_shape,
        grid=grid,
        in_specs=in_specs,
        out_specs=out_specs,
        scratch_shapes=scratch_shapes,
        compiler_params=pltpu.CompilerParams(
            dimension_semantics=("parallel",),
            vmem_limit_bytes=_vmem_limit_bytes(),
        ),
    )(x_tm, h0, c0, wih, whh, bias, fc_w, fc_b)


# ----------------------------------------------------------------------------
# Parameter construction & TPU-friendly padding (prepared ONCE, not per call)
# ----------------------------------------------------------------------------
def init_params(key, no_layers, vocab_size, hidden_dim, embedding_dim, output_dim):
    keys = jax.random.split(key, 2 + 3 * no_layers + 2)
    params = {"embedding": jax.random.normal(
        keys[0], (vocab_size, embedding_dim), jnp.float32)}

    stdv = 1.0 / jnp.sqrt(hidden_dim)
    wih, whh, bias = [], [], []
    for l in range(no_layers):
        in_dim = embedding_dim if l == 0 else hidden_dim
        k1, k2, k3 = keys[1 + 3 * l], keys[2 + 3 * l], keys[3 + 3 * l]
        # stored pre-transposed: (in, 4H) and (H, 4H); bias = b_ih + b_hh
        wih.append(jax.random.uniform(k1, (in_dim, 4 * hidden_dim),
                                      jnp.float32, -stdv, stdv))
        whh.append(jax.random.uniform(k2, (hidden_dim, 4 * hidden_dim),
                                      jnp.float32, -stdv, stdv))
        bias.append(jax.random.uniform(k3, (1, 4 * hidden_dim),
                                       jnp.float32, -2 * stdv, 2 * stdv))
    params["wih"], params["whh"], params["bias"] = wih, whh, bias

    fs = 1.0 / jnp.sqrt(hidden_dim)
    params["fc_w"] = jax.random.uniform(keys[-2], (hidden_dim, output_dim),
                                        jnp.float32, -fs, fs)
    params["fc_b"] = jax.random.uniform(keys[-1], (1, output_dim),
                                        jnp.float32, -fs, fs)
    return params


def _pad_gate_cols(w, H, Hp):
    """(..., 4H) -> (..., 4Hp): zero-pad each of the 4 gate blocks to Hp lanes."""
    lead = w.shape[:-1]
    w4 = w.reshape(*lead, 4, H)
    pad = [(0, 0)] * len(lead) + [(0, 0), (0, Hp - H)]
    return jnp.pad(w4, pad).reshape(*lead, 4 * Hp)


def pad_params_for_tpu(params, *, hidden_dim, embedding_dim, output_dim,
                       matmul_dtype=jnp.bfloat16):
    """Zero-pad to lane-aligned shapes and cast matmul weights to matmul_dtype.

    The zero padding is exactly neutral for the LSTM recurrence (padded h/c
    dims stay identically 0); only the bf16 weight rounding changes numerics
    (bf16-mantissa level vs the fp32 PyTorch reference).
    """
    H = hidden_dim
    Ep, Hp, Op = _padded_dims(embedding_dim, hidden_dim, output_dim)
    Kmax = max(Ep, Hp)

    emb_p = jnp.pad(params["embedding"], ((0, 0), (0, Ep - embedding_dim)))

    wih_p, whh_p, b_p = [], [], []
    for wih, whh, b in zip(params["wih"], params["whh"], params["bias"]):
        w = _pad_gate_cols(wih, H, Hp)                              # (in, 4Hp)
        wih_p.append(jnp.pad(w, ((0, Kmax - w.shape[0]), (0, 0))))  # (Kmax, 4Hp)
        v = _pad_gate_cols(whh, H, Hp)
        whh_p.append(jnp.pad(v, ((0, Hp - H), (0, 0))))             # (Hp, 4Hp)
        b_p.append(_pad_gate_cols(b, H, Hp))

    return {
        "embedding": emb_p,                                         # (V, Ep) f32
        "wih": jnp.stack(wih_p).astype(matmul_dtype),               # (L, Kmax, 4Hp)
        "whh": jnp.stack(whh_p).astype(matmul_dtype),               # (L, Hp, 4Hp)
        "bias": jnp.stack(b_p),                                     # (L, 1, 4Hp) f32
        "fc_w": jnp.pad(params["fc_w"],
                        ((0, Hp - H), (0, Op - output_dim))
                        ).astype(matmul_dtype),                     # (Hp, Op)
        "fc_b": jnp.pad(params["fc_b"],
                        ((0, 0), (0, Op - output_dim))),            # (1, Op) f32
    }


# ----------------------------------------------------------------------------
# Forward pass (matches SentimentRNN.forward, eval semantics)
# ----------------------------------------------------------------------------
def sentiment_rnn_forward(padded_params, tokens, hidden, *, no_layers,
                          hidden_dim, embedding_dim, output_dim,
                          batch_block=None, t_chunk=None):
    h0, c0 = hidden                                         # each (L, B, H)
    B, T = tokens.shape
    H = hidden_dim
    Ep, Hp, _ = _padded_dims(embedding_dim, hidden_dim, output_dim)
    matmul_dtype = padded_params["wih"].dtype               # bf16 by default

    if batch_block is None:
        Bp, BB = _plan_batch(B, _num_tensorcores())
    else:
        BB = _round_up(batch_block, SUBLANE)
        Bp = _round_up(B, BB)
    Tc = min(T, 32) if t_chunk is None else max(1, min(t_chunk, T))
    # Carry h/c in vregs when small enough; VMEM scratch otherwise (spill-safe).
    carry_in_regs = BB * Hp <= 8 * 1024

    tokens_p = jnp.pad(tokens, ((0, Bp - B), (0, 0)))       # dummy batch rows
    h0_p = jnp.pad(h0, ((0, 0), (0, Bp - B), (0, Hp - H)))
    c0_p = jnp.pad(c0, ((0, 0), (0, Bp - B), (0, Hp - H)))

    # Embedding gather emitting the time-major (T, Bp, Ep) layout directly:
    # only the tiny int token matrix is transposed, never the activations.
    x_tm = jnp.take(padded_params["embedding"], tokens_p.T, axis=0)

    sig, hT, cT = run_sentiment_kernel(
        x_tm, h0_p, c0_p,
        padded_params["wih"], padded_params["whh"], padded_params["bias"],
        padded_params["fc_w"], padded_params["fc_b"],
        batch_block=BB, t_chunk=Tc, matmul_dtype=matmul_dtype,
        carry_in_regs=carry_in_regs)

    # PyTorch: sig.view(B, -1)[:, -1] == last output unit of the last timestep.
    sig_out = sig[:B, output_dim - 1]
    new_hidden = (hT[:, :B, :H], cT[:, :B, :H])
    return sig_out, new_hidden


# ----------------------------------------------------------------------------
if __name__ == "__main__":
    no_layers = 2
    vocab_size = 64
    hidden_dim = 32
    embedding_dim = 16
    output_dim = 1
    batch = 2
    seq = 8

    key = jax.random.PRNGKey(0)
    k_tok, k_par = jax.random.split(key)

    tokens = jax.random.randint(k_tok, (batch, seq), 0, vocab_size, jnp.int32)
    params = init_params(k_par, no_layers, vocab_size, hidden_dim,
                         embedding_dim, output_dim)

    # Padded / bf16 weights prepared once, outside the per-call path.
    pp = pad_params_for_tpu(params, hidden_dim=hidden_dim,
                            embedding_dim=embedding_dim, output_dim=output_dim,
                            matmul_dtype=jnp.bfloat16)

    # init_hidden
    h0 = jnp.zeros((no_layers, batch, hidden_dim), jnp.float32)
    c0 = jnp.zeros((no_layers, batch, hidden_dim), jnp.float32)

    fwd = jax.jit(functools.partial(
        sentiment_rnn_forward, no_layers=no_layers, hidden_dim=hidden_dim,
        embedding_dim=embedding_dim, output_dim=output_dim))

    sig_out, (hn, cn) = fwd(pp, tokens, (h0, c0))
    jax.block_until_ready((sig_out, hn, cn))

    assert sig_out.shape == (batch,)
    assert hn.shape == (no_layers, batch, hidden_dim)
    assert cn.shape == (no_layers, batch, hidden_dim)
    assert bool(jnp.all(jnp.isfinite(sig_out)))
    print("KERNEL_OK")
</pallas_src>

<mosaic_0001>
module attributes {stable_mosaic.version = 11 : i64} {
  func.func @fused_lstm_fc_kernel(%arg0: i32, %arg1: memref<8x8x128xf32, #tpu.memory_space<vmem>>, %arg2: memref<2x8x128xf32, #tpu.memory_space<vmem>>, %arg3: memref<2x8x128xf32, #tpu.memory_space<vmem>>, %arg4: memref<2x128x512xbf16, #tpu.memory_space<vmem>>, %arg5: memref<2x128x512xbf16, #tpu.memory_space<vmem>>, %arg6: memref<2x1x512xf32, #tpu.memory_space<vmem>>, %arg7: memref<128x128xbf16, #tpu.memory_space<vmem>>, %arg8: memref<1x128xf32, #tpu.memory_space<vmem>>, %arg9: memref<8x128xf32, #tpu.memory_space<vmem>>, %arg10: memref<2x8x128xf32, #tpu.memory_space<vmem>>, %arg11: memref<2x8x128xf32, #tpu.memory_space<vmem>>, %arg12: memref<64x512xf32, #tpu.memory_space<vmem>>, %arg13: memref<64x128xf32, #tpu.memory_space<vmem>>) attributes {dimension_semantics = [#tpu.dimension_semantics<parallel>], iteration_bounds = array<i64: 1>, scalar_prefetch = 0 : i64, scratch_operands = 2 : i64, tpu.core_type = #tpu.core_type<tc>, window_params = [{transform_indices = @transform_0, window_bounds = array<i64: 8, 8, 128>}, {transform_indices = @transform_1, window_bounds = array<i64: 2, 8, 128>}, {transform_indices = @transform_2, window_bounds = array<i64: 2, 8, 128>}, {pipeline_mode = #tpu.pipeline_mode<synchronous>, transform_indices = @transform_3, window_bounds = array<i64: 2, 128, 512>}, {pipeline_mode = #tpu.pipeline_mode<synchronous>, transform_indices = @transform_4, window_bounds = array<i64: 2, 128, 512>}, {pipeline_mode = #tpu.pipeline_mode<synchronous>, transform_indices = @transform_5, window_bounds = array<i64: 2, 1, 512>}, {pipeline_mode = #tpu.pipeline_mode<synchronous>, transform_indices = @transform_6, window_bounds = array<i64: 128, 128>}, {pipeline_mode = #tpu.pipeline_mode<synchronous>, transform_indices = @transform_7, window_bounds = array<i64: 1, 128>}, {transform_indices = @transform_8, window_bounds = array<i64: 8, 128>}, {transform_indices = @transform_9, window_bounds = array<i64: 2, 8, 128>}, {transform_indices = @transform_10, window_bounds = array<i64: 2, 8, 128>}]} {
    %c0 = arith.constant 0 : index
    %c0_0 = arith.constant 0 : index
    %c0_1 = arith.constant 0 : index
    %0 = vector.load %arg4[%c0, %c0_0, %c0_1] : memref<2x128x512xbf16, #tpu.memory_space<vmem>>, vector<1x128x512xbf16>
    %1 = vector.shape_cast %0 : vector<1x128x512xbf16> to vector<128x512xbf16>
    %c0_2 = arith.constant 0 : index
    %c0_3 = arith.constant 0 : index
    %c0_4 = arith.constant 0 : index
    %2 = vector.load %arg5[%c0_2, %c0_3, %c0_4] : memref<2x128x512xbf16, #tpu.memory_space<vmem>>, vector<1x128x512xbf16>
    %3 = vector.shape_cast %2 : vector<1x128x512xbf16> to vector<128x512xbf16>
    %c0_5 = arith.constant 0 : index
    %c0_6 = arith.constant 0 : index
    %c0_7 = arith.constant 0 : index
    %4 = vector.load %arg6[%c0_5, %c0_6, %c0_7] : memref<2x1x512xf32, #tpu.memory_space<vmem>>, vector<1x1x512xf32>
    %5 = vector.shape_cast %4 : vector<1x1x512xf32> to vector<1x512xf32>
    %c0_8 = arith.constant 0 : index
    %c0_9 = arith.constant 0 : index
    %c0_10 = arith.constant 0 : index
    %6 = vector.load %arg2[%c0_8, %c0_9, %c0_10] : memref<2x8x128xf32, #tpu.memory_space<vmem>>, vector<1x8x128xf32>
    %7 = vector.shape_cast %6 : vector<1x8x128xf32> to vector<8x128xf32>
    %c0_11 = arith.constant 0 : index
    %c0_12 = arith.constant 0 : index
    %c0_13 = arith.constant 0 : index
    %8 = vector.load %arg3[%c0_11, %c0_12, %c0_13] : memref<2x8x128xf32, #tpu.memory_space<vmem>>, vector<1x8x128xf32>
    %9 = vector.shape_cast %8 : vector<1x8x128xf32> to vector<8x128xf32>
    %c0_14 = arith.constant 0 : index
    %c0_15 = arith.constant 0 : index
    %c0_16 = arith.constant 0 : index
    %10 = vector.load %arg1[%c0_14, %c0_15, %c0_16] : memref<8x8x128xf32, #tpu.memory_space<vmem>>, vector<8x8x128xf32>
    %11 = vector.shape_cast %10 : vector<8x8x128xf32> to vector<64x128xf32>
    %12 = arith.truncf %11 : vector<64x128xf32> to vector<64x128xbf16>
    %cst = arith.constant dense<0.000000e+00> : vector<64x512xf32>
    %13 = tpu.matmul %12, %1, %cst {dimension_numbers = #tpu.dot_dimension_numbers<[1], [0], [0], [1], [0, 0, 1, 1], [], []>} : vector<64x128xbf16>, vector<128x512xbf16>, vector<64x512xf32> -> vector<64x512xf32>
    %14 = vector.broadcast %5 : vector<1x512xf32> to vector<64x512xf32>
    %15 = arith.addf %13, %14 : vector<64x512xf32>
    %c0_17 = arith.constant 0 : index
    %c0_18 = arith.constant 0 : index
    %16 = vector.load %arg12[%c0_17, %c0_18] : memref<64x512xf32, #tpu.memory_space<vmem>>, vector<64x512xf32>
    tpu.vector_store %arg12[%c0_17, %c0_18], %15 {strides = array<i32>} : memref<64x512xf32, #tpu.memory_space<vmem>>, vector<64x512xf32>,
    %c0_i32 = arith.constant 0 : i32
    %c8_i32 = arith.constant 8 : i32
    %17 = arith.muli %c0_i32, %c8_i32 : i32
    %18 = tpu.assume_multiple %17, 8 : i32
    %19 = arith.index_cast %18 : i32 to index
    %c0_19 = arith.constant 0 : index
    %20 = vector.load %arg12[%19, %c0_19] : memref<64x512xf32, #tpu.memory_space<vmem>>, vector<8x512xf32>
    %21 = arith.truncf %7 : vector<8x128xf32> to vector<8x128xbf16>
    %cst_20 = arith.constant dense<0.000000e+00> : vector<8x512xf32>
    %22 = tpu.matmul %21, %3, %cst_20 {dimension_numbers = #tpu.dot_dimension_numbers<[1], [0], [0], [1], [0, 0, 1, 1], [], []>} : vector<8x128xbf16>, vector<128x512xbf16>, vector<8x512xf32> -> vector<8x512xf32>
    %23 = arith.addf %20, %22 : vector<8x512xf32>
    %24 = vector.extract_strided_slice %23 {offsets = [0, 0], sizes = [8, 128], strides = [1, 1]} : vector<8x512xf32> to vector<8x128xf32>
    %cst_21 = arith.constant 5.000000e-01 : f32
    %25 = vector.broadcast %cst_21 : f32 to vector<8x128xf32>
    %26 = arith.mulf %25, %24 : vector<8x128xf32>
    %27 = math.tanh %26 : vector<8x128xf32>
    %cst_22 = arith.constant 5.000000e-01 : f32
    %28 = vector.broadcast %cst_22 : f32 to vector<8x128xf32>
    %29 = arith.mulf %28, %27 : vector<8x128xf32>
    %cst_23 = arith.constant 5.000000e-01 : f32
    %30 = vector.broadcast %cst_23 : f32 to vector<8x128xf32>
    %31 = arith.addf %29, %30 : vector<8x128xf32>
    %32 = vector.extract_strided_slice %23 {offsets = [0, 128], sizes = [8, 128], strides = [1, 1]} : vector<8x512xf32> to vector<8x128xf32>
    %cst_24 = arith.constant 5.000000e-01 : f32
    %33 = vector.broadcast %cst_24 : f32 to vector<8x128xf32>
    %34 = arith.mulf %33, %32 : vector<8x128xf32>
    %35 = math.tanh %34 : vector<8x128xf32>
    %cst_25 = arith.constant 5.000000e-01 : f32
    %36 = vector.broadcast %cst_25 : f32 to vector<8x128xf32>
    %37 = arith.mulf %36, %35 : vector<8x128xf32>
    %cst_26 = arith.constant 5.000000e-01 : f32
    %38 = vector.broadcast %cst_26 : f32 to vector<8x128xf32>
    %39 = arith.addf %37, %38 : vector<8x128xf32>
    %40 = vector.extract_strided_slice %23 {offsets = [0, 256], sizes = [8, 128], strides = [1, 1]} : vector<8x512xf32> to vector<8x128xf32>
    %41 = math.tanh %40 : vector<8x128xf32>
    %42 = vector.extract_strided_slice %23 {offsets = [0, 384], sizes = [8, 128], strides = [1, 1]} : vector<8x512xf32> to vector<8x128xf32>
    %cst_27 = arith.constant 5.000000e-01 : f32
    %43 = vector.broadcast %cst_27 : f32 to vector<8x128xf32>
    %44 = arith.mulf %43, %42 : vector<8x128xf32>
    %45 = math.tanh %44 : vector<8x128xf32>
    %cst_28 = arith.constant 5.000000e-01 : f32
    %46 = vector.broadcast %cst_28 : f32 to vector<8x128xf32>
    %47 = arith.mulf %46, %45 : vector<8x128xf32>
    %cst_29 = arith.constant 5.000000e-01 : f32
    %48 = vector.broadcast %cst_29 : f32 to vector<8x128xf32>
    %49 = arith.addf %47, %48 : vector<8x128xf32>
    %50 = arith.mulf %39, %9 : vector<8x128xf32>
    %51 = arith.mulf %31, %41 : vector<8x128xf32>
    %52 = arith.addf %50, %51 : vector<8x128xf32>
    %53 = math.tanh %52 : vector<8x128xf32>
    %54 = arith.mulf %49, %53 : vector<8x128xf32>
    %c8_i32_30 = arith.constant 8 : i32
    %55 = arith.muli %c0_i32, %c8_i32_30 : i32
    %c0_i32_31 = arith.constant 0 : i32
    %56 = arith.addi %c0_i32_31, %55 : i32
    %57 = tpu.assume_multiple %56, 8 : i32
    %58 = arith.index_cast %57 : i32 to index
    %c0_32 = arith.constant 0 : index
    %59 = vector.load %arg13[%58, %c0_32] : memref<64x128xf32, #tpu.memory_space<vmem>>, vector<8x128xf32>
    tpu.vector_store %arg13[%58, %c0_32], %54 {strides = array<i32>} : memref<64x128xf32, #tpu.memory_space<vmem>>, vector<8x128xf32>,
    %c1_i32 = arith.constant 1 : i32
    %c8_i32_33 = arith.constant 8 : i32
    %60 = arith.muli %c1_i32, %c8_i32_33 : i32
    %61 = tpu.assume_multiple %60, 8 : i32
    %62 = arith.index_cast %61 : i32 to index
    %c0_34 = arith.constant 0 : index
    %63 = vector.load %arg12[%62, %c0_34] : memref<64x512xf32, #tpu.memory_space<vmem>>, vector<8x512xf32>
    %64 = arith.truncf %54 : vector<8x128xf32> to vector<8x128xbf16>
    %cst_35 = arith.constant dense<0.000000e+00> : vector<8x512xf32>
    %65 = tpu.matmul %64, %3, %cst_35 {dimension_numbers = #tpu.dot_dimension_numbers<[1], [0], [0], [1], [0, 0, 1, 1], [], []>} : vector<8x128xbf16>, vector<128x512xbf16>, vector<8x512xf32> -> vector<8x512xf32>
    %66 = arith.addf %63, %65 : vector<8x512xf32>
    %67 = vector.extract_strided_slice %66 {offsets = [0, 0], sizes = [8, 128], strides = [1, 1]} : vector<8x512xf32> to vector<8x128xf32>
    %cst_36 = arith.constant 5.000000e-01 : f32
    %68 = vector.broadcast %cst_36 : f32 to vector<8x128xf32>
    %69 = arith.mulf %68, %67 : vector<8x128xf32>
    %70 = math.tanh %69 : vector<8x128xf32>
    %cst_37 = arith.constant 5.000000e-01 : f32
    %71 = vector.broadcast %cst_37 : f32 to vector<8x128xf32>
    %72 = arith.mulf %71, %70 : vector<8x128xf32>
    %cst_38 = arith.constant 5.000000e-01 : f32
    %73 = vector.broadcast %cst_38 : f32 to vector<8x128xf32>
    %74 = arith.addf %72, %73 : vector<8x128xf32>
    %75 = vector.extract_strided_slice %66 {offsets = [0, 128], sizes = [8, 128], strides = [1, 1]} : vector<8x512xf32> to vector<8x128xf32>
    %cst_39 = arith.constant 5.000000e-01 : f32
    %76 = vector.broadcast %cst_39 : f32 to vector<8x128xf32>
    %77 = arith.mulf %76, %75 : vector<8x128xf32>
    %78 = math.tanh %77 : vector<8x128xf32>
    %cst_40 = arith.constant 5.000000e-01 : f32
    %79 = vector.broadcast %cst_40 : f32 to vector<8x128xf32>
    %80 = arith.mulf %79, %78 : vector<8x128xf32>
    %cst_41 = arith.constant 5.000000e-01 : f32
    %81 = vector.broadcast %cst_41 : f32 to vector<8x128xf32>
    %82 = arith.addf %80, %81 : vector<8x128xf32>
    %83 = vector.extract_strided_slice %66 {offsets = [0, 256], sizes = [8, 128], strides = [1, 1]} : vector<8x512xf32> to vector<8x128xf32>
    %84 = math.tanh %83 : vector<8x128xf32>
    %85 = vector.extract_strided_slice %66 {offsets = [0, 384], sizes = [8, 128], strides = [1, 1]} : vector<8x512xf32> to vector<8x128xf32>
    %cst_42 = arith.constant 5.000000e-01 : f32
    %86 = vector.broadcast %cst_42 : f32 to vector<8x128xf32>
    %87 = arith.mulf %86, %85 : vector<8x128xf32>
    %88 = math.tanh %87 : vector<8x128xf32>
    %cst_43 = arith.constant 5.000000e-01 : f32
    %89 = vector.broadcast %cst_43 : f32 to vector<8x128xf32>
    %90 = arith.mulf %89, %88 : vector<8x128xf32>
    %cst_44 = arith.constant 5.000000e-01 : f32
    %91 = vector.broadcast %cst_44 : f32 to vector<8x128xf32>
    %92 = arith.addf %90, %91 : vector<8x128xf32>
    %93 = arith.mulf %82, %52 : vector<8x128xf32>
    %94 = arith.mulf %74, %84 : vector<8x128xf32>
    %95 = arith.addf %93, %94 : vector<8x128xf32>
    %96 = math.tanh %95 : vector<8x128xf32>
    %97 = arith.mulf %92, %96 : vector<8x128xf32>
    %c8_i32_45 = arith.constant 8 : i32
    %98 = arith.muli %c1_i32, %c8_i32_45 : i32
    %c0_i32_46 = arith.constant 0 : i32
    %99 = arith.addi %c0_i32_46, %98 : i32
    %100 = tpu.assume_multiple %99, 8 : i32
    %101 = arith.index_cast %100 : i32 to index
    %c0_47 = arith.constant 0 : index
    %102 = vector.load %arg13[%101, %c0_47] : memref<64x128xf32, #tpu.memory_space<vmem>>, vector<8x128xf32>
    tpu.vector_store %arg13[%101, %c0_47], %97 {strides = array<i32>} : memref<64x128xf32, #tpu.memory_space<vmem>>, vector<8x128xf32>,
    %c2_i32 = arith.constant 2 : i32
    %c8_i32_48 = arith.constant 8 : i32
    %103 = arith.muli %c2_i32, %c8_i32_48 : i32
    %104 = tpu.assume_multiple %103, 8 : i32
    %105 = arith.index_cast %104 : i32 to index
    %c0_49 = arith.constant 0 : index
    %106 = vector.load %arg12[%105, %c0_49] : memref<64x512xf32, #tpu.memory_space<vmem>>, vector<8x512xf32>
    %107 = arith.truncf %97 : vector<8x128xf32> to vector<8x128xbf16>
    %cst_50 = arith.constant dense<0.000000e+00> : vector<8x512xf32>
    %108 = tpu.matmul %107, %3, %cst_50 {dimension_numbers = #tpu.dot_dimension_numbers<[1], [0], [0], [1], [0, 0, 1, 1], [], []>} : vector<8x128xbf16>, vector<128x512xbf16>, vector<8x512xf32> -> vector<8x512xf32>
    %109 = arith.addf %106, %108 : vector<8x512xf32>
    %110 = vector.extract_strided_slice %109 {offsets = [0, 0], sizes = [8, 128], strides = [1, 1]} : vector<8x512xf32> to vector<8x128xf32>
    %cst_51 = arith.constant 5.000000e-01 : f32
    %111 = vector.broadcast %cst_51 : f32 to vector<8x128xf32>
    %112 = arith.mulf %111, %110 : vector<8x128xf32>
    %113 = math.tanh %112 : vector<8x128xf32>
    %cst_52 = arith.constant 5.000000e-01 : f32
    %114 = vector.broadcast %cst_52 : f32 to vector<8x128xf32>
    %115 = arith.mulf %114, %113 : vector<8x128xf32>
    %cst_53 = arith.constant 5.000000e-01 : f32
    %116 = vector.broadcast %cst_53 : f32 to vector<8x128xf32>
    %117 = arith.addf %115, %116 : vector<8x128xf32>
    %118 = vector.extract_strided_slice %109 {offsets = [0, 128], sizes = [8, 128], strides = [1, 1]} : vector<8x512xf32> to vector<8x128xf32>
    %cst_54 = arith.constant 5.000000e-01 : f32
    %119 = vector.broadcast %cst_54 : f32 to vector<8x128xf32>
    %120 = arith.mulf %119, %118 : vector<8x128xf32>
    %121 = math.tanh %120 : vector<8x128xf32>
    %cst_55 = arith.constant 5.000000e-01 : f32
    %122 = vector.broadcast %cst_55 : f32 to vector<8x128xf32>
    %123 = arith.mulf %122, %121 : vector<8x128xf32>
    %cst_56 = arith.constant 5.000000e-01 : f32
    %124 = vector.broadcast %cst_56 : f32 to vector<8x128xf32>
    %125 = arith.addf %123, %124 : vector<8x128xf32>
    %126 = vector.extract_strided_slice %109 {offsets = [0, 256], sizes = [8, 128], strides = [1, 1]} : vector<8x512xf32> to vector<8x128xf32>
    %127 = math.tanh %126 : vector<8x128xf32>
    %128 = vector.extract_strided_slice %109 {offsets = [0, 384], sizes = [8, 128], strides = [1, 1]} : vector<8x512xf32> to vector<8x128xf32>
    %cst_57 = arith.constant 5.000000e-01 : f32
    %129 = vector.broadcast %cst_57 : f32 to vector<8x128xf32>
    %130 = arith.mulf %129, %128 : vector<8x128xf32>
    %131 = math.tanh %130 : vector<8x128xf32>
    %cst_58 = arith.constant 5.000000e-01 : f32
    %132 = vector.broadcast %cst_58 : f32 to vector<8x128xf32>
    %133 = arith.mulf %132, %131 : vector<8x128xf32>
    %cst_59 = arith.constant 5.000000e-01 : f32
    %134 = vector.broadcast %cst_59 : f32 to vector<8x128xf32>
    %135 = arith.addf %133, %134 : vector<8x128xf32>
    %136 = arith.mulf %125, %95 : vector<8x128xf32>
    %137 = arith.mulf %117, %127 : vector<8x128xf32>
    %138 = arith.addf %136, %137 : vector<8x128xf32>
    %139 = math.tanh %138 : vector<8x128xf32>
    %140 = arith.mulf %135, %139 : vector<8x128xf32>
    %c8_i32_60 = arith.constant 8 : i32
    %141 = arith.muli %c2_i32, %c8_i32_60 : i32
    %c0_i32_61 = arith.constant 0 : i32
    %142 = arith.addi %c0_i32_61, %141 : i32
    %143 = tpu.assume_multiple %142, 8 : i32
    %144 = arith.index_cast %143 : i32 to index
    %c0_62 = arith.constant 0 : index
    %145 = vector.load %arg13[%144, %c0_62] : memref<64x128xf32, #tpu.memory_space<vmem>>, vector<8x128xf32>
    tpu.vector_store %arg13[%144, %c0_62], %140 {strides = array<i32>} : memref<64x128xf32, #tpu.memory_space<vmem>>, vector<8x128xf32>,
    %c3_i32 = arith.constant 3 : i32
    %c8_i32_63 = arith.constant 8 : i32
    %146 = arith.muli %c3_i32, %c8_i32_63 : i32
    %147 = tpu.assume_multiple %146, 8 : i32
    %148 = arith.index_cast %147 : i32 to index
    %c0_64 = arith.constant 0 : index
    %149 = vector.load %arg12[%148, %c0_64] : memref<64x512xf32, #tpu.memory_space<vmem>>, vector<8x512xf32>
    %150 = arith.truncf %140 : vector<8x128xf32> to vector<8x128xbf16>
    %cst_65 = arith.constant dense<0.000000e+00> : vector<8x512xf32>
    %151 = tpu.matmul %150, %3, %cst_65 {dimension_numbers = #tpu.dot_dimension_numbers<[1], [0], [0], [1], [0, 0, 1, 1], [], []>} : vector<8x128xbf16>, vector<128x512xbf16>, vector<8x512xf32> -> vector<8x512xf32>
    %152 = arith.addf %149, %151 : vector<8x512xf32>
    %153 = vector.extract_strided_slice %152 {offsets = [0, 0], sizes = [8, 128], strides = [1, 1]} : vector<8x512xf32> to vector<8x128xf32>
    %cst_66 = arith.constant 5.000000e-01 : f32
    %154 = vector.broadcast %cst_66 : f32 to vector<8x128xf32>
    %155 = arith.mulf %154, %153 : vector<8x128xf32>
    %156 = math.tanh %155 : vector<8x128xf32>
    %cst_67 = arith.constant 5.000000e-01 : f32
    %157 = vector.broadcast %cst_67 : f32 to vector<8x128xf32>
    %158 = arith.mulf %157, %156 : vector<8x128xf32>
    %cst_68 = arith.constant 5.000000e-01 : f32
    %159 = vector.broadcast %cst_68 : f32 to vector<8x128xf32>
    %160 = arith.addf %158, %159 : vector<8x128xf32>
    %161 = vector.extract_strided_slice %152 {offsets = [0, 128], sizes = [8, 128], strides = [1, 1]} : vector<8x512xf32> to vector<8x128xf32>
    %cst_69 = arith.constant 5.000000e-01 : f32
    %162 = vector.broadcast %cst_69 : f32 to vector<8x128xf32>
    %163 = arith.mulf %162, %161 : vector<8x128xf32>
    %164 = math.tanh %163 : vector<8x128xf32>
    %cst_70 = arith.constant 5.000000e-01 : f32
    %165 = vector.broadcast %cst_70 : f32 to vector<8x128xf32>
    %166 = arith.mulf %165, %164 : vector<8x128xf32>
    %cst_71 = arith.constant 5.000000e-01 : f32
    %167 = vector.broadcast %cst_71 : f32 to vector<8x128xf32>
    %168 = arith.addf %166, %167 : vector<8x128xf32>
    %169 = vector.extract_strided_slice %152 {offsets = [0, 256], sizes = [8, 128], strides = [1, 1]} : vector<8x512xf32> to vector<8x128xf32>
    %170 = math.tanh %169 : vector<8x128xf32>
    %171 = vector.extract_strided_slice %152 {offsets = [0, 384], sizes = [8, 128], strides = [1, 1]} : vector<8x512xf32> to vector<8x128xf32>
    %cst_72 = arith.constant 5.000000e-01 : f32
    %172 = vector.broadcast %cst_72 : f32 to vector<8x128xf32>
    %173 = arith.mulf %172, %171 : vector<8x128xf32>
    %174 = math.tanh %173 : vector<8x128xf32>
    %cst_73 = arith.constant 5.000000e-01 : f32
    %175 = vector.broadcast %cst_73 : f32 to vector<8x128xf32>
    %176 = arith.mulf %175, %174 : vector<8x128xf32>
    %cst_74 = arith.constant 5.000000e-01 : f32
    %177 = vector.broadcast %cst_74 : f32 to vector<8x128xf32>
    %178 = arith.addf %176, %177 : vector<8x128xf32>
    %179 = arith.mulf %168, %138 : vector<8x128xf32>
    %180 = arith.mulf %160, %170 : vector<8x128xf32>
    %181 = arith.addf %179, %180 : vector<8x128xf32>
    %182 = math.tanh %181 : vector<8x128xf32>
    %183 = arith.mulf %178, %182 : vector<8x128xf32>
    %c8_i32_75 = arith.constant 8 : i32
    %184 = arith.muli %c3_i32, %c8_i32_75 : i32
    %c0_i32_76 = arith.constant 0 : i32
    %185 = arith.addi %c0_i32_76, %184 : i32
    %186 = tpu.assume_multiple %185, 8 : i32
    %187 = arith.index_cast %186 : i32 to index
    %c0_77 = arith.constant 0 : index
    %188 = vector.load %arg13[%187, %c0_77] : memref<64x128xf32, #tpu.memory_space<vmem>>, vector<8x128xf32>
    tpu.vector_store %arg13[%187, %c0_77], %183 {strides = array<i32>} : memref<64x128xf32, #tpu.memory_space<vmem>>, vector<8x128xf32>,
    %c4_i32 = arith.constant 4 : i32
    %c8_i32_78 = arith.constant 8 : i32
    %189 = arith.muli %c4_i32, %c8_i32_78 : i32
    %190 = tpu.assume_multiple %189, 8 : i32
    %191 = arith.index_cast %190 : i32 to index
    %c0_79 = arith.constant 0 : index
    %192 = vector.load %arg12[%191, %c0_79] : memref<64x512xf32, #tpu.memory_space<vmem>>, vector<8x512xf32>
    %193 = arith.truncf %183 : vector<8x128xf32> to vector<8x128xbf16>
    %cst_80 = arith.constant dense<0.000000e+00> : vector<8x512xf32>
    %194 = tpu.matmul %193, %3, %cst_80 {dimension_numbers = #tpu.dot_dimension_numbers<[1], [0], [0], [1], [0, 0, 1, 1], [], []>} : vector<8x128xbf16>, vector<128x512xbf16>, vector<8x512xf32> -> vector<8x512xf32>
    %195 = arith.addf %192, %194 : vector<8x512xf32>
    %196 = vector.extract_strided_slice %195 {offsets = [0, 0], sizes = [8, 128], strides = [1, 1]} : vector<8x512xf32> to vector<8x128xf32>
    %cst_81 = arith.constant 5.000000e-01 : f32
    %197 = vector.broadcast %cst_81 : f32 to vector<8x128xf32>
    %198 = arith.mulf %197, %196 : vector<8x128xf32>
    %199 = math.tanh %198 : vector<8x128xf32>
    %cst_82 = arith.constant 5.000000e-01 : f32
    %200 = vector.broadcast %cst_82 : f32 to vector<8x128xf32>
    %201 = arith.mulf %200, %199 : vector<8x128xf32>
    %cst_83 = arith.constant 5.000000e-01 : f32
    %202 = vector.broadcast %cst_83 : f32 to vector<8x128xf32>
    %203 = arith.addf %201, %202 : vector<8x128xf32>
    %204 = vector.extract_strided_slice %195 {offsets = [0, 128], sizes = [8, 128], strides = [1, 1]} : vector<8x512xf32> to vector<8x128xf32>
    %cst_84 = arith.constant 5.000000e-01 : f32
    %205 = vector.broadcast %cst_84 : f32 to vector<8x128xf32>
    %206 = arith.mulf %205, %204 : vector<8x128xf32>
    %207 = math.tanh %206 : vector<8x128xf32>
    %cst_85 = arith.constant 5.000000e-01 : f32
    %208 = vector.broadcast %cst_85 : f32 to vector<8x128xf32>
    %209 = arith.mulf %208, %207 : vector<8x128xf32>
    %cst_86 = arith.constant 5.000000e-01 : f32
    %210 = vector.broadcast %cst_86 : f32 to vector<8x128xf32>
    %211 = arith.addf %209, %210 : vector<8x128xf32>
    %212 = vector.extract_strided_slice %195 {offsets = [0, 256], sizes = [8, 128], strides = [1, 1]} : vector<8x512xf32> to vector<8x128xf32>
    %213 = math.tanh %212 : vector<8x128xf32>
    %214 = vector.extract_strided_slice %195 {offsets = [0, 384], sizes = [8, 128], strides = [1, 1]} : vector<8x512xf32> to vector<8x128xf32>
    %cst_87 = arith.constant 5.000000e-01 : f32
    %215 = vector.broadcast %cst_87 : f32 to vector<8x128xf32>
    %216 = arith.mulf %215, %214 : vector<8x128xf32>
    %217 = math.tanh %216 : vector<8x128xf32>
    %cst_88 = arith.constant 5.000000e-01 : f32
    %218 = vector.broadcast %cst_88 : f32 to vector<8x128xf32>
    %219 = arith.mulf %218, %217 : vector<8x128xf32>
    %cst_89 = arith.constant 5.000000e-01 : f32
    %220 = vector.broadcast %cst_89 : f32 to vector<8x128xf32>
    %221 = arith.addf %219, %220 : vector<8x128xf32>
    %222 = arith.mulf %211, %181 : vector<8x128xf32>
    %223 = arith.mulf %203, %213 : vector<8x128xf32>
    %224 = arith.addf %222, %223 : vector<8x128xf32>
    %225 = math.tanh %224 : vector<8x128xf32>
    %226 = arith.mulf %221, %225 : vector<8x128xf32>
    %c8_i32_90 = arith.constant 8 : i32
    %227 = arith.muli %c4_i32, %c8_i32_90 : i32
    %c0_i32_91 = arith.constant 0 : i32
    %228 = arith.addi %c0_i32_91, %227 : i32
    %229 = tpu.assume_multiple %228, 8 : i32
    %230 = arith.index_cast %229 : i32 to index
    %c0_92 = arith.constant 0 : index
    %231 = vector.load %arg13[%230, %c0_92] : memref<64x128xf32, #tpu.memory_space<vmem>>, vector<8x128xf32>
    tpu.vector_store %arg13[%230, %c0_92], %226 {strides = array<i32>} : memref<64x128xf32, #tpu.memory_space<vmem>>, vector<8x128xf32>,
    %c5_i32 = arith.constant 5 : i32
    %c8_i32_93 = arith.constant 8 : i32
    %232 = arith.muli %c5_i32, %c8_i32_93 : i32
    %233 = tpu.assume_multiple %232, 8 : i32
    %234 = arith.index_cast %233 : i32 to index
    %c0_94 = arith.constant 0 : index
    %235 = vector.load %arg12[%234, %c0_94] : memref<64x512xf32, #tpu.memory_space<vmem>>, vector<8x512xf32>
    %236 = arith.truncf %226 : vector<8x128xf32> to vector<8x128xbf16>
    %cst_95 = arith.constant dense<0.000000e+00> : vector<8x512xf32>
    %237 = tpu.matmul %236, %3, %cst_95 {dimension_numbers = #tpu.dot_dimension_numbers<[1], [0], [0], [1], [0, 0, 1, 1], [], []>} : vector<8x128xbf16>, vector<128x512xbf16>, vector<8x512xf32> -> vector<8x512xf32>
    %238 = arith.addf %235, %237 : vector<8x512xf32>
    %239 = vector.extract_strided_slice %238 {offsets = [0, 0], sizes = [8, 128], strides = [1, 1]} : vector<8x512xf32> to vector<8x128xf32>
    %cst_96 = arith.constant 5.000000e-01 : f32
    %240 = vector.broadcast %cst_96 : f32 to vector<8x128xf32>
    %241 = arith.mulf %240, %239 : vector<8x128xf32>
    %242 = math.tanh %241 : vector<8x128xf32>
    %cst_97 = arith.constant 5.000000e-01 : f32
    %243 = vector.broadcast %cst_97 : f32 to vector<8x128xf32>
    %244 = arith.mulf %243, %242 : vector<8x128xf32>
    %cst_98 = arith.constant 5.000000e-01 : f32
    %245 = vector.broadcast %cst_98 : f32 to vector<8x128xf32>
    %246 = arith.addf %244, %245 : vector<8x128xf32>
    %247 = vector.extract_strided_slice %238 {offsets = [0, 128], sizes = [8, 128], strides = [1, 1]} : vector<8x512xf32> to vector<8x128xf32>
    %cst_99 = arith.constant 5.000000e-01 : f32
    %248 = vector.broadcast %cst_99 : f32 to vector<8x128xf32>
    %249 = arith.mulf %248, %247 : vector<8x128xf32>
    %250 = math.tanh %249 : vector<8x128xf32>
    %cst_100 = arith.constant 5.000000e-01 : f32
    %251 = vector.broadcast %cst_100 : f32 to vector<8x128xf32>
    %252 = arith.mulf %251, %250 : vector<8x128xf32>
    %cst_101 = arith.constant 5.000000e-01 : f32
    %253 = vector.broadcast %cst_101 : f32 to vector<8x128xf32>
    %254 = arith.addf %252, %253 : vector<8x128xf32>
    %255 = vector.extract_strided_slice %238 {offsets = [0, 256], sizes = [8, 128], strides = [1, 1]} : vector<8x512xf32> to vector<8x128xf32>
    %256 = math.tanh %255 : vector<8x128xf32>
    %257 = vector.extract_strided_slice %238 {offsets = [0, 384], sizes = [8, 128], strides = [1, 1]} : vector<8x512xf32> to vector<8x128xf32>
    %cst_102 = arith.constant 5.000000e-01 : f32
    %258 = vector.broadcast %cst_102 : f32 to vector<8x128xf32>
    %259 = arith.mulf %258, %257 : vector<8x128xf32>
    %260 = math.tanh %259 : vector<8x128xf32>
    %cst_103 = arith.constant 5.000000e-01 : f32
    %261 = vector.broadcast %cst_103 : f32 to vector<8x128xf32>
    %262 = arith.mulf %261, %260 : vector<8x128xf32>
    %cst_104 = arith.constant 5.000000e-01 : f32
    %263 = vector.broadcast %cst_104 : f32 to vector<8x128xf32>
    %264 = arith.addf %262, %263 : vector<8x128xf32>
    %265 = arith.mulf %254, %224 : vector<8x128xf32>
    %266 = arith.mulf %246, %256 : vector<8x128xf32>
    %267 = arith.addf %265, %266 : vector<8x128xf32>
    %268 = math.tanh %267 : vector<8x128xf32>
    %269 = arith.mulf %264, %268 : vector<8x128xf32>
    %c8_i32_105 = arith.constant 8 : i32
    %270 = arith.muli %c5_i32, %c8_i32_105 : i32
    %c0_i32_106 = arith.constant 0 : i32
    %271 = arith.addi %c0_i32_106, %270 : i32
    %272 = tpu.assume_multiple %271, 8 : i32
    %273 = arith.index_cast %272 : i32 to index
    %c0_107 = arith.constant 0 : index
    %274 = vector.load %arg13[%273, %c0_107] : memref<64x128xf32, #tpu.memory_space<vmem>>, vector<8x128xf32>
    tpu.vector_store %arg13[%273, %c0_107], %269 {strides = array<i32>} : memref<64x128xf32, #tpu.memory_space<vmem>>, vector<8x128xf32>,
    %c6_i32 = arith.constant 6 : i32
    %c8_i32_108 = arith.constant 8 : i32
    %275 = arith.muli %c6_i32, %c8_i32_108 : i32
    %276 = tpu.assume_multiple %275, 8 : i32
    %277 = arith.index_cast %276 : i32 to index
    %c0_109 = arith.constant 0 : index
    %278 = vector.load %arg12[%277, %c0_109] : memref<64x512xf32, #tpu.memory_space<vmem>>, vector<8x512xf32>
    %279 = arith.truncf %269 : vector<8x128xf32> to vector<8x128xbf16>
    %cst_110 = arith.constant dense<0.000000e+00> : vector<8x512xf32>
    %280 = tpu.matmul %279, %3, %cst_110 {dimension_numbers = #tpu.dot_dimension_numbers<[1], [0], [0], [1], [0, 0, 1, 1], [], []>} : vector<8x128xbf16>, vector<128x512xbf16>, vector<8x512xf32> -> vector<8x512xf32>
    %281 = arith.addf %278, %280 : vector<8x512xf32>
    %282 = vector.extract_strided_slice %281 {offsets = [0, 0], sizes = [8, 128], strides = [1, 1]} : vector<8x512xf32> to vector<8x128xf32>
    %cst_111 = arith.constant 5.000000e-01 : f32
    %283 = vector.broadcast %cst_111 : f32 to vector<8x128xf32>
    %284 = arith.mulf %283, %282 : vector<8x128xf32>
    %285 = math.tanh %284 : vector<8x128xf32>
    %cst_112 = arith.constant 5.000000e-01 : f32
    %286 = vector.broadcast %cst_112 : f32 to vector<8x128xf32>
    %287 = arith.mulf %286, %285 : vector<8x128xf32>
    %cst_113 = arith.constant 5.000000e-01 : f32
    %288 = vector.broadcast %cst_113 : f32 to vector<8x128xf32>
    %289 = arith.addf %287, %288 : vector<8x128xf32>
    %290 = vector.extract_strided_slice %281 {offsets = [0, 128], sizes = [8, 128], strides = [1, 1]} : vector<8x512xf32> to vector<8x128xf32>
    %cst_114 = arith.constant 5.000000e-01 : f32
    %291 = vector.broadcast %cst_114 : f32 to vector<8x128xf32>
    %292 = arith.mulf %291, %290 : vector<8x128xf32>
    %293 = math.tanh %292 : vector<8x128xf32>
    %cst_115 = arith.constant 5.000000e-01 : f32
    %294 = vector.broadcast %cst_115 : f32 to vector<8x128xf32>
    %295 = arith.mulf %294, %293 : vector<8x128xf32>
    %cst_116 = arith.constant 5.000000e-01 : f32
    %296 = vector.broadcast %cst_116 : f32 to vector<8x128xf32>
    %297 = arith.addf %295, %296 : vector<8x128xf32>
    %298 = vector.extract_strided_slice %281 {offsets = [0, 256], sizes = [8, 128], strides = [1, 1]} : vector<8x512xf32> to vector<8x128xf32>
    %299 = math.tanh %298 : vector<8x128xf32>
    %300 = vector.extract_strided_slice %281 {offsets = [0, 384], sizes = [8, 128], strides = [1, 1]} : vector<8x512xf32> to vector<8x128xf32>
    %cst_117 = arith.constant 5.000000e-01 : f32
    %301 = vector.broadcast %cst_117 : f32 to vector<8x128xf32>
    %302 = arith.mulf %301, %300 : vector<8x128xf32>
    %303 = math.tanh %302 : vector<8x128xf32>
    %cst_118 = arith.constant 5.000000e-01 : f32
    %304 = vector.broadcast %cst_118 : f32 to vector<8x128xf32>
    %305 = arith.mulf %304, %303 : vector<8x128xf32>
    %cst_119 = arith.constant 5.000000e-01 : f32
    %306 = vector.broadcast %cst_119 : f32 to vector<8x128xf32>
    %307 = arith.addf %305, %306 : vector<8x128xf32>
    %308 = arith.mulf %297, %267 : vector<8x128xf32>
    %309 = arith.mulf %289, %299 : vector<8x128xf32>
    %310 = arith.addf %308, %309 : vector<8x128xf32>
    %311 = math.tanh %310 : vector<8x128xf32>
    %312 = arith.mulf %307, %311 : vector<8x128xf32>
    %c8_i32_120 = arith.constant 8 : i32
    %313 = arith.muli %c6_i32, %c8_i32_120 : i32
    %c0_i32_121 = arith.constant 0 : i32
    %314 = arith.addi %c0_i32_121, %313 : i32
    %315 = tpu.assume_multiple %314, 8 : i32
    %316 = arith.index_cast %315 : i32 to index
    %c0_122 = arith.constant 0 : index
    %317 = vector.load %arg13[%316, %c0_122] : memref<64x128xf32, #tpu.memory_space<vmem>>, vector<8x128xf32>
    tpu.vector_store %arg13[%316, %c0_122], %312 {strides = array<i32>} : memref<64x128xf32, #tpu.memory_space<vmem>>, vector<8x128xf32>,
    %c7_i32 = arith.constant 7 : i32
    %c8_i32_123 = arith.constant 8 : i32
    %318 = arith.muli %c7_i32, %c8_i32_123 : i32
    %319 = tpu.assume_multiple %318, 8 : i32
    %320 = arith.index_cast %319 : i32 to index
    %c0_124 = arith.constant 0 : index
    %321 = vector.load %arg12[%320, %c0_124] : memref<64x512xf32, #tpu.memory_space<vmem>>, vector<8x512xf32>
    %322 = arith.truncf %312 : vector<8x128xf32> to vector<8x128xbf16>
    %cst_125 = arith.constant dense<0.000000e+00> : vector<8x512xf32>
    %323 = tpu.matmul %322, %3, %cst_125 {dimension_numbers = #tpu.dot_dimension_numbers<[1], [0], [0], [1], [0, 0, 1, 1], [], []>} : vector<8x128xbf16>, vector<128x512xbf16>, vector<8x512xf32> -> vector<8x512xf32>
    %324 = arith.addf %321, %323 : vector<8x512xf32>
    %325 = vector.extract_strided_slice %324 {offsets = [0, 0], sizes = [8, 128], strides = [1, 1]} : vector<8x512xf32> to vector<8x128xf32>
    %cst_126 = arith.constant 5.000000e-01 : f32
    %326 = vector.broadcast %cst_126 : f32 to vector<8x128xf32>
    %327 = arith.mulf %326, %325 : vector<8x128xf32>
    %328 = math.tanh %327 : vector<8x128xf32>
    %cst_127 = arith.constant 5.000000e-01 : f32
    %329 = vector.broadcast %cst_127 : f32 to vector<8x128xf32>
    %330 = arith.mulf %329, %328 : vector<8x128xf32>
    %cst_128 = arith.constant 5.000000e-01 : f32
    %331 = vector.broadcast %cst_128 : f32 to vector<8x128xf32>
    %332 = arith.addf %330, %331 : vector<8x128xf32>
    %333 = vector.extract_strided_slice %324 {offsets = [0, 128], sizes = [8, 128], strides = [1, 1]} : vector<8x512xf32> to vector<8x128xf32>
    %cst_129 = arith.constant 5.000000e-01 : f32
    %334 = vector.broadcast %cst_129 : f32 to vector<8x128xf32>
    %335 = arith.mulf %334, %333 : vector<8x128xf32>
    %336 = math.tanh %335 : vector<8x128xf32>
    %cst_130 = arith.constant 5.000000e-01 : f32
    %337 = vector.broadcast %cst_130 : f32 to vector<8x128xf32>
    %338 = arith.mulf %337, %336 : vector<8x128xf32>
    %cst_131 = arith.constant 5.000000e-01 : f32
    %339 = vector.broadcast %cst_131 : f32 to vector<8x128xf32>
    %340 = arith.addf %338, %339 : vector<8x128xf32>
    %341 = vector.extract_strided_slice %324 {offsets = [0, 256], sizes = [8, 128], strides = [1, 1]} : vector<8x512xf32> to vector<8x128xf32>
    %342 = math.tanh %341 : vector<8x128xf32>
    %343 = vector.extract_strided_slice %324 {offsets = [0, 384], sizes = [8, 128], strides = [1, 1]} : vector<8x512xf32> to vector<8x128xf32>
    %cst_132 = arith.constant 5.000000e-01 : f32
    %344 = vector.broadcast %cst_132 : f32 to vector<8x128xf32>
    %345 = arith.mulf %344, %343 : vector<8x128xf32>
    %346 = math.tanh %345 : vector<8x128xf32>
    %cst_133 = arith.constant 5.000000e-01 : f32
    %347 = vector.broadcast %cst_133 : f32 to vector<8x128xf32>
    %348 = arith.mulf %347, %346 : vector<8x128xf32>
    %cst_134 = arith.constant 5.000000e-01 : f32
    %349 = vector.broadcast %cst_134 : f32 to vector<8x128xf32>
    %350 = arith.addf %348, %349 : vector<8x128xf32>
    %351 = arith.mulf %340, %310 : vector<8x128xf32>
    %352 = arith.mulf %332, %342 : vector<8x128xf32>
    %353 = arith.addf %351, %352 : vector<8x128xf32>
    %354 = math.tanh %353 : vector<8x128xf32>
    %355 = arith.mulf %350, %354 : vector<8x128xf32>
    %c8_i32_135 = arith.constant 8 : i32
    %356 = arith.muli %c7_i32, %c8_i32_135 : i32
    %c0_i32_136 = arith.constant 0 : i32
    %357 = arith.addi %c0_i32_136, %356 : i32
    %358 = tpu.assume_multiple %357, 8 : i32
    %359 = arith.index_cast %358 : i32 to index
    %c0_137 = arith.constant 0 : index
    %360 = vector.load %arg13[%359, %c0_137] : memref<64x128xf32, #tpu.memory_space<vmem>>, vector<8x128xf32>
    tpu.vector_store %arg13[%359, %c0_137], %355 {strides = array<i32>} : memref<64x128xf32, #tpu.memory_space<vmem>>, vector<8x128xf32>,
    %c8_i32_138 = arith.constant 8 : i32
    %c0_139 = arith.constant 0 : index
    %c0_140 = arith.constant 0 : index
    %c0_141 = arith.constant 0 : index
    %361 = vector.load %arg10[%c0_139, %c0_140, %c0_141] : memref<2x8x128xf32, #tpu.memory_space<vmem>>, vector<1x8x128xf32>
    %362 = vector.shape_cast %361 : vector<1x8x128xf32> to vector<8x128xf32>
    %363 = vector.shape_cast %355 : vector<8x128xf32> to vector<1x8x128xf32>
    tpu.vector_store %arg10[%c0_139, %c0_140, %c0_141], %363 {strides = array<i32>} : memref<2x8x128xf32, #tpu.memory_space<vmem>>, vector<1x8x128xf32>,
    %c0_142 = arith.constant 0 : index
    %c0_143 = arith.constant 0 : index
    %c0_144 = arith.constant 0 : index
    %364 = vector.load %arg11[%c0_142, %c0_143, %c0_144] : memref<2x8x128xf32, #tpu.memory_space<vmem>>, vector<1x8x128xf32>
    %365 = vector.shape_cast %364 : vector<1x8x128xf32> to vector<8x128xf32>
    %366 = vector.shape_cast %353 : vector<8x128xf32> to vector<1x8x128xf32>
    tpu.vector_store %arg11[%c0_142, %c0_143, %c0_144], %366 {strides = array<i32>} : memref<2x8x128xf32, #tpu.memory_space<vmem>>, vector<1x8x128xf32>,
    %c1 = arith.constant 1 : index
    %c0_145 = arith.constant 0 : index
    %c0_146 = arith.constant 0 : index
    %367 = vector.load %arg4[%c1, %c0_145, %c0_146] : memref<2x128x512xbf16, #tpu.memory_space<vmem>>, vector<1x128x512xbf16>
    %368 = vector.shape_cast %367 : vector<1x128x512xbf16> to vector<128x512xbf16>
    %c1_147 = arith.constant 1 : index
    %c0_148 = arith.constant 0 : index
    %c0_149 = arith.constant 0 : index
    %369 = vector.load %arg5[%c1_147, %c0_148, %c0_149] : memref<2x128x512xbf16, #tpu.memory_space<vmem>>, vector<1x128x512xbf16>
    %370 = vector.shape_cast %369 : vector<1x128x512xbf16> to vector<128x512xbf16>
    %c1_150 = arith.constant 1 : index
    %c0_151 = arith.constant 0 : index
    %c0_152 = arith.constant 0 : index
    %371 = vector.load %arg6[%c1_150, %c0_151, %c0_152] : memref<2x1x512xf32, #tpu.memory_space<vmem>>, vector<1x1x512xf32>
    %372 = vector.shape_cast %371 : vector<1x1x512xf32> to vector<1x512xf32>
    %c1_153 = arith.constant 1 : index
    %c0_154 = arith.constant 0 : index
    %c0_155 = arith.constant 0 : index
    %373 = vector.load %arg2[%c1_153, %c0_154, %c0_155] : memref<2x8x128xf32, #tpu.memory_space<vmem>>, vector<1x8x128xf32>
    %374 = vector.shape_cast %373 : vector<1x8x128xf32> to vector<8x128xf32>
    %c1_156 = arith.constant 1 : index
    %c0_157 = arith.constant 0 : index
    %c0_158 = arith.constant 0 : index
    %375 = vector.load %arg3[%c1_156, %c0_157, %c0_158] : memref<2x8x128xf32, #tpu.memory_space<vmem>>, vector<1x8x128xf32>
    %376 = vector.shape_cast %375 : vector<1x8x128xf32> to vector<8x128xf32>
    %c0_159 = arith.constant 0 : index
    %c0_160 = arith.constant 0 : index
    %377 = vector.load %arg13[%c0_159, %c0_160] : memref<64x128xf32, #tpu.memory_space<vmem>>, vector<64x128xf32>
    %378 = arith.truncf %377 : vector<64x128xf32> to vector<64x128xbf16>
    %cst_161 = arith.constant dense<0.000000e+00> : vector<64x512xf32>
    %379 = tpu.matmul %378, %368, %cst_161 {dimension_numbers = #tpu.dot_dimension_numbers<[1], [0], [0], [1], [0, 0, 1, 1], [], []>} : vector<64x128xbf16>, vector<128x512xbf16>, vector<64x512xf32> -> vector<64x512xf32>
    %380 = vector.broadcast %372 : vector<1x512xf32> to vector<64x512xf32>
    %381 = arith.addf %379, %380 : vector<64x512xf32>
    %c0_162 = arith.constant 0 : index
    %c0_163 = arith.constant 0 : index
    %382 = vector.load %arg12[%c0_162, %c0_163] : memref<64x512xf32, #tpu.memory_space<vmem>>, vector<64x512xf32>
    tpu.vector_store %arg12[%c0_162, %c0_163], %381 {strides = array<i32>} : memref<64x512xf32, #tpu.memory_space<vmem>>, vector<64x512xf32>,
    %c0_i32_164 = arith.constant 0 : i32
    %c8_i32_165 = arith.constant 8 : i32
    %383 = arith.muli %c0_i32_164, %c8_i32_165 : i32
    %384 = tpu.assume_multiple %383, 8 : i32
    %385 = arith.index_cast %384 : i32 to index
    %c0_166 = arith.constant 0 : index
    %386 = vector.load %arg12[%385, %c0_166] : memref<64x512xf32, #tpu.memory_space<vmem>>, vector<8x512xf32>
    %387 = arith.truncf %374 : vector<8x128xf32> to vector<8x128xbf16>
    %cst_167 = arith.constant dense<0.000000e+00> : vector<8x512xf32>
    %388 = tpu.matmul %387, %370, %cst_167 {dimension_numbers = #tpu.dot_dimension_numbers<[1], [0], [0], [1], [0, 0, 1, 1], [], []>} : vector<8x128xbf16>, vector<128x512xbf16>, vector<8x512xf32> -> vector<8x512xf32>
    %389 = arith.addf %386, %388 : vector<8x512xf32>
    %390 = vector.extract_strided_slice %389 {offsets = [0, 0], sizes = [8, 128], strides = [1, 1]} : vector<8x512xf32> to vector<8x128xf32>
    %cst_168 = arith.constant 5.000000e-01 : f32
    %391 = vector.broadcast %cst_168 : f32 to vector<8x128xf32>
    %392 = arith.mulf %391, %390 : vector<8x128xf32>
    %393 = math.tanh %392 : vector<8x128xf32>
    %cst_169 = arith.constant 5.000000e-01 : f32
    %394 = vector.broadcast %cst_169 : f32 to vector<8x128xf32>
    %395 = arith.mulf %394, %393 : vector<8x128xf32>
    %cst_170 = arith.constant 5.000000e-01 : f32
    %396 = vector.broadcast %cst_170 : f32 to vector<8x128xf32>
    %397 = arith.addf %395, %396 : vector<8x128xf32>
    %398 = vector.extract_strided_slice %389 {offsets = [0, 128], sizes = [8, 128], strides = [1, 1]} : vector<8x512xf32> to vector<8x128xf32>
    %cst_171 = arith.constant 5.000000e-01 : f32
    %399 = vector.broadcast %cst_171 : f32 to vector<8x128xf32>
    %400 = arith.mulf %399, %398 : vector<8x128xf32>
    %401 = math.tanh %400 : vector<8x128xf32>
    %cst_172 = arith.constant 5.000000e-01 : f32
    %402 = vector.broadcast %cst_172 : f32 to vector<8x128xf32>
    %403 = arith.mulf %402, %401 : vector<8x128xf32>
    %cst_173 = arith.constant 5.000000e-01 : f32
    %404 = vector.broadcast %cst_173 : f32 to vector<8x128xf32>
    %405 = arith.addf %403, %404 : vector<8x128xf32>
    %406 = vector.extract_strided_slice %389 {offsets = [0, 256], sizes = [8, 128], strides = [1, 1]} : vector<8x512xf32> to vector<8x128xf32>
    %407 = math.tanh %406 : vector<8x128xf32>
    %408 = vector.extract_strided_slice %389 {offsets = [0, 384], sizes = [8, 128], strides = [1, 1]} : vector<8x512xf32> to vector<8x128xf32>
    %cst_174 = arith.constant 5.000000e-01 : f32
    %409 = vector.broadcast %cst_174 : f32 to vector<8x128xf32>
    %410 = arith.mulf %409, %408 : vector<8x128xf32>
    %411 = math.tanh %410 : vector<8x128xf32>
    %cst_175 = arith.constant 5.000000e-01 : f32
    %412 = vector.broadcast %cst_175 : f32 to vector<8x128xf32>
    %413 = arith.mulf %412, %411 : vector<8x128xf32>
    %cst_176 = arith.constant 5.000000e-01 : f32
    %414 = vector.broadcast %cst_176 : f32 to vector<8x128xf32>
    %415 = arith.addf %413, %414 : vector<8x128xf32>
    %416 = arith.mulf %405, %376 : vector<8x128xf32>
    %417 = arith.mulf %397, %407 : vector<8x128xf32>
    %418 = arith.addf %416, %417 : vector<8x128xf32>
    %419 = math.tanh %418 : vector<8x128xf32>
    %420 = arith.mulf %415, %419 : vector<8x128xf32>
    %c1_i32_177 = arith.constant 1 : i32
    %c8_i32_178 = arith.constant 8 : i32
    %421 = arith.muli %c1_i32_177, %c8_i32_178 : i32
    %422 = tpu.assume_multiple %421, 8 : i32
    %423 = arith.index_cast %422 : i32 to index
    %c0_179 = arith.constant 0 : index
    %424 = vector.load %arg12[%423, %c0_179] : memref<64x512xf32, #tpu.memory_space<vmem>>, vector<8x512xf32>
    %425 = arith.truncf %420 : vector<8x128xf32> to vector<8x128xbf16>
    %cst_180 = arith.constant dense<0.000000e+00> : vector<8x512xf32>
    %426 = tpu.matmul %425, %370, %cst_180 {dimension_numbers = #tpu.dot_dimension_numbers<[1], [0], [0], [1], [0, 0, 1, 1], [], []>} : vector<8x128xbf16>, vector<128x512xbf16>, vector<8x512xf32> -> vector<8x512xf32>
    %427 = arith.addf %424, %426 : vector<8x512xf32>
    %428 = vector.extract_strided_slice %427 {offsets = [0, 0], sizes = [8, 128], strides = [1, 1]} : vector<8x512xf32> to vector<8x128xf32>
    %cst_181 = arith.constant 5.000000e-01 : f32
    %429 = vector.broadcast %cst_181 : f32 to vector<8x128xf32>
    %430 = arith.mulf %429, %428 : vector<8x128xf32>
    %431 = math.tanh %430 : vector<8x128xf32>
    %cst_182 = arith.constant 5.000000e-01 : f32
    %432 = vector.broadcast %cst_182 : f32 to vector<8x128xf32>
    %433 = arith.mulf %432, %431 : vector<8x128xf32>
    %cst_183 = arith.constant 5.000000e-01 : f32
    %434 = vector.broadcast %cst_183 : f32 to vector<8x128xf32>
    %435 = arith.addf %433, %434 : vector<8x128xf32>
    %436 = vector.extract_strided_slice %427 {offsets = [0, 128], sizes = [8, 128], strides = [1, 1]} : vector<8x512xf32> to vector<8x128xf32>
    %cst_184 = arith.constant 5.000000e-01 : f32
    %437 = vector.broadcast %cst_184 : f32 to vector<8x128xf32>
    %438 = arith.mulf %437, %436 : vector<8x128xf32>
    %439 = math.tanh %438 : vector<8x128xf32>
    %cst_185 = arith.constant 5.000000e-01 : f32
    %440 = vector.broadcast %cst_185 : f32 to vector<8x128xf32>
    %441 = arith.mulf %440, %439 : vector<8x128xf32>
    %cst_186 = arith.constant 5.000000e-01 : f32
    %442 = vector.broadcast %cst_186 : f32 to vector<8x128xf32>
    %443 = arith.addf %441, %442 : vector<8x128xf32>
    %444 = vector.extract_strided_slice %427 {offsets = [0, 256], sizes = [8, 128], strides = [1, 1]} : vector<8x512xf32> to vector<8x128xf32>
    %445 = math.tanh %444 : vector<8x128xf32>
    %446 = vector.extract_strided_slice %427 {offsets = [0, 384], sizes = [8, 128], strides = [1, 1]} : vector<8x512xf32> to vector<8x128xf32>
    %cst_187 = arith.constant 5.000000e-01 : f32
    %447 = vector.broadcast %cst_187 : f32 to vector<8x128xf32>
    %448 = arith.mulf %447, %446 : vector<8x128xf32>
    %449 = math.tanh %448 : vector<8x128xf32>
    %cst_188 = arith.constant 5.000000e-01 : f32
    %450 = vector.broadcast %cst_188 : f32 to vector<8x128xf32>
    %451 = arith.mulf %450, %449 : vector<8x128xf32>
    %cst_189 = arith.constant 5.000000e-01 : f32
    %452 = vector.broadcast %cst_189 : f32 to vector<8x128xf32>
    %453 = arith.addf %451, %452 : vector<8x128xf32>
    %454 = arith.mulf %443, %418 : vector<8x128xf32>
    %455 = arith.mulf %435, %445 : vector<8x128xf32>
    %456 = arith.addf %454, %455 : vector<8x128xf32>
    %457 = math.tanh %456 : vector<8x128xf32>
    %458 = arith.mulf %453, %457 : vector<8x128xf32>
    %c2_i32_190 = arith.constant 2 : i32
    %c8_i32_191 = arith.constant 8 : i32
    %459 = arith.muli %c2_i32_190, %c8_i32_191 : i32
    %460 = tpu.assume_multiple %459, 8 : i32
    %461 = arith.index_cast %460 : i32 to index
    %c0_192 = arith.constant 0 : index
    %462 = vector.load %arg12[%461, %c0_192] : memref<64x512xf32, #tpu.memory_space<vmem>>, vector<8x512xf32>
    %463 = arith.truncf %458 : vector<8x128xf32> to vector<8x128xbf16>
    %cst_193 = arith.constant dense<0.000000e+00> : vector<8x512xf32>
    %464 = tpu.matmul %463, %370, %cst_193 {dimension_numbers = #tpu.dot_dimension_numbers<[1], [0], [0], [1], [0, 0, 1, 1], [], []>} : vector<8x128xbf16>, vector<128x512xbf16>, vector<8x512xf32> -> vector<8x512xf32>
    %465 = arith.addf %462, %464 : vector<8x512xf32>
    %466 = vector.extract_strided_slice %465 {offsets = [0, 0], sizes = [8, 128], strides = [1, 1]} : vector<8x512xf32> to vector<8x128xf32>
    %cst_194 = arith.constant 5.000000e-01 : f32
    %467 = vector.broadcast %cst_194 : f32 to vector<8x128xf32>
    %468 = arith.mulf %467, %466 : vector<8x128xf32>
    %469 = math.tanh %468 : vector<8x128xf32>
    %cst_195 = arith.constant 5.000000e-01 : f32
    %470 = vector.broadcast %cst_195 : f32 to vector<8x128xf32>
    %471 = arith.mulf %470, %469 : vector<8x128xf32>
    %cst_196 = arith.constant 5.000000e-01 : f32
    %472 = vector.broadcast %cst_196 : f32 to vector<8x128xf32>
    %473 = arith.addf %471, %472 : vector<8x128xf32>
    %474 = vector.extract_strided_slice %465 {offsets = [0, 128], sizes = [8, 128], strides = [1, 1]} : vector<8x512xf32> to vector<8x128xf32>
    %cst_197 = arith.constant 5.000000e-01 : f32
    %475 = vector.broadcast %cst_197 : f32 to vector<8x128xf32>
    %476 = arith.mulf %475, %474 : vector<8x128xf32>
    %477 = math.tanh %476 : vector<8x128xf32>
    %cst_198 = arith.constant 5.000000e-01 : f32
    %478 = vector.broadcast %cst_198 : f32 to vector<8x128xf32>
    %479 = arith.mulf %478, %477 : vector<8x128xf32>
    %cst_199 = arith.constant 5.000000e-01 : f32
    %480 = vector.broadcast %cst_199 : f32 to vector<8x128xf32>
    %481 = arith.addf %479, %480 : vector<8x128xf32>
    %482 = vector.extract_strided_slice %465 {offsets = [0, 256], sizes = [8, 128], strides = [1, 1]} : vector<8x512xf32> to vector<8x128xf32>
    %483 = math.tanh %482 : vector<8x128xf32>
    %484 = vector.extract_strided_slice %465 {offsets = [0, 384], sizes = [8, 128], strides = [1, 1]} : vector<8x512xf32> to vector<8x128xf32>
    %cst_200 = arith.constant 5.000000e-01 : f32
    %485 = vector.broadcast %cst_200 : f32 to vector<8x128xf32>
    %486 = arith.mulf %485, %484 : vector<8x128xf32>
    %487 = math.tanh %486 : vector<8x128xf32>
    %cst_201 = arith.constant 5.000000e-01 : f32
    %488 = vector.broadcast %cst_201 : f32 to vector<8x128xf32>
    %489 = arith.mulf %488, %487 : vector<8x128xf32>
    %cst_202 = arith.constant 5.000000e-01 : f32
    %490 = vector.broadcast %cst_202 : f32 to vector<8x128xf32>
    %491 = arith.addf %489, %490 : vector<8x128xf32>
    %492 = arith.mulf %481, %456 : vector<8x128xf32>
    %493 = arith.mulf %473, %483 : vector<8x128xf32>
    %494 = arith.addf %492, %493 : vector<8x128xf32>
    %495 = math.tanh %494 : vector<8x128xf32>
    %496 = arith.mulf %491, %495 : vector<8x128xf32>
    %c3_i32_203 = arith.constant 3 : i32
    %c8_i32_204 = arith.constant 8 : i32
    %497 = arith.muli %c3_i32_203, %c8_i32_204 : i32
    %498 = tpu.assume_multiple %497, 8 : i32
    %499 = arith.index_cast %498 : i32 to index
    %c0_205 = arith.constant 0 : index
    %500 = vector.load %arg12[%499, %c0_205] : memref<64x512xf32, #tpu.memory_space<vmem>>, vector<8x512xf32>
    %501 = arith.truncf %496 : vector<8x128xf32> to vector<8x128xbf16>
    %cst_206 = arith.constant dense<0.000000e+00> : vector<8x512xf32>
    %502 = tpu.matmul %501, %370, %cst_206 {dimension_numbers = #tpu.dot_dimension_numbers<[1], [0], [0], [1], [0, 0, 1, 1], [], []>} : vector<8x128xbf16>, vector<128x512xbf16>, vector<8x512xf32> -> vector<8x512xf32>
    %503 = arith.addf %500, %502 : vector<8x512xf32>
    %504 = vector.extract_strided_slice %503 {offsets = [0, 0], sizes = [8, 128], strides = [1, 1]} : vector<8x512xf32> to vector<8x128xf32>
    %cst_207 = arith.constant 5.000000e-01 : f32
    %505 = vector.broadcast %cst_207 : f32 to vector<8x128xf32>
    %506 = arith.mulf %505, %504 : vector<8x128xf32>
    %507 = math.tanh %506 : vector<8x128xf32>
    %cst_208 = arith.constant 5.000000e-01 : f32
    %508 = vector.broadcast %cst_208 : f32 to vector<8x128xf32>
    %509 = arith.mulf %508, %507 : vector<8x128xf32>
    %cst_209 = arith.constant 5.000000e-01 : f32
    %510 = vector.broadcast %cst_209 : f32 to vector<8x128xf32>
    %511 = arith.addf %509, %510 : vector<8x128xf32>
    %512 = vector.extract_strided_slice %503 {offsets = [0, 128], sizes = [8, 128], strides = [1, 1]} : vector<8x512xf32> to vector<8x128xf32>
    %cst_210 = arith.constant 5.000000e-01 : f32
    %513 = vector.broadcast %cst_210 : f32 to vector<8x128xf32>
    %514 = arith.mulf %513, %512 : vector<8x128xf32>
    %515 = math.tanh %514 : vector<8x128xf32>
    %cst_211 = arith.constant 5.000000e-01 : f32
    %516 = vector.broadcast %cst_211 : f32 to vector<8x128xf32>
    %517 = arith.mulf %516, %515 : vector<8x128xf32>
    %cst_212 = arith.constant 5.000000e-01 : f32
    %518 = vector.broadcast %cst_212 : f32 to vector<8x128xf32>
    %519 = arith.addf %517, %518 : vector<8x128xf32>
    %520 = vector.extract_strided_slice %503 {offsets = [0, 256], sizes = [8, 128], strides = [1, 1]} : vector<8x512xf32> to vector<8x128xf32>
    %521 = math.tanh %520 : vector<8x128xf32>
    %522 = vector.extract_strided_slice %503 {offsets = [0, 384], sizes = [8, 128], strides = [1, 1]} : vector<8x512xf32> to vector<8x128xf32>
    %cst_213 = arith.constant 5.000000e-01 : f32
    %523 = vector.broadcast %cst_213 : f32 to vector<8x128xf32>
    %524 = arith.mulf %523, %522 : vector<8x128xf32>
    %525 = math.tanh %524 : vector<8x128xf32>
    %cst_214 = arith.constant 5.000000e-01 : f32
    %526 = vector.broadcast %cst_214 : f32 to vector<8x128xf32>
    %527 = arith.mulf %526, %525 : vector<8x128xf32>
    %cst_215 = arith.constant 5.000000e-01 : f32
    %528 = vector.broadcast %cst_215 : f32 to vector<8x128xf32>
    %529 = arith.addf %527, %528 : vector<8x128xf32>
    %530 = arith.mulf %519, %494 : vector<8x128xf32>
    %531 = arith.mulf %511, %521 : vector<8x128xf32>
    %532 = arith.addf %530, %531 : vector<8x128xf32>
    %533 = math.tanh %532 : vector<8x128xf32>
    %534 = arith.mulf %529, %533 : vector<8x128xf32>
    %c4_i32_216 = arith.constant 4 : i32
    %c8_i32_217 = arith.constant 8 : i32
    %535 = arith.muli %c4_i32_216, %c8_i32_217 : i32
    %536 = tpu.assume_multiple %535, 8 : i32
    %537 = arith.index_cast %536 : i32 to index
    %c0_218 = arith.constant 0 : index
    %538 = vector.load %arg12[%537, %c0_218] : memref<64x512xf32, #tpu.memory_space<vmem>>, vector<8x512xf32>
    %539 = arith.truncf %534 : vector<8x128xf32> to vector<8x128xbf16>
    %cst_219 = arith.constant dense<0.000000e+00> : vector<8x512xf32>
    %540 = tpu.matmul %539, %370, %cst_219 {dimension_numbers = #tpu.dot_dimension_numbers<[1], [0], [0], [1], [0, 0, 1, 1], [], []>} : vector<8x128xbf16>, vector<128x512xbf16>, vector<8x512xf32> -> vector<8x512xf32>
    %541 = arith.addf %538, %540 : vector<8x512xf32>
    %542 = vector.extract_strided_slice %541 {offsets = [0, 0], sizes = [8, 128], strides = [1, 1]} : vector<8x512xf32> to vector<8x128xf32>
    %cst_220 = arith.constant 5.000000e-01 : f32
    %543 = vector.broadcast %cst_220 : f32 to vector<8x128xf32>
    %544 = arith.mulf %543, %542 : vector<8x128xf32>
    %545 = math.tanh %544 : vector<8x128xf32>
    %cst_221 = arith.constant 5.000000e-01 : f32
    %546 = vector.broadcast %cst_221 : f32 to vector<8x128xf32>
    %547 = arith.mulf %546, %545 : vector<8x128xf32>
    %cst_222 = arith.constant 5.000000e-01 : f32
    %548 = vector.broadcast %cst_222 : f32 to vector<8x128xf32>
    %549 = arith.addf %547, %548 : vector<8x128xf32>
    %550 = vector.extract_strided_slice %541 {offsets = [0, 128], sizes = [8, 128], strides = [1, 1]} : vector<8x512xf32> to vector<8x128xf32>
    %cst_223 = arith.constant 5.000000e-01 : f32
    %551 = vector.broadcast %cst_223 : f32 to vector<8x128xf32>
    %552 = arith.mulf %551, %550 : vector<8x128xf32>
    %553 = math.tanh %552 : vector<8x128xf32>
    %cst_224 = arith.constant 5.000000e-01 : f32
    %554 = vector.broadcast %cst_224 : f32 to vector<8x128xf32>
    %555 = arith.mulf %554, %553 : vector<8x128xf32>
    %cst_225 = arith.constant 5.000000e-01 : f32
    %556 = vector.broadcast %cst_225 : f32 to vector<8x128xf32>
    %557 = arith.addf %555, %556 : vector<8x128xf32>
    %558 = vector.extract_strided_slice %541 {offsets = [0, 256], sizes = [8, 128], strides = [1, 1]} : vector<8x512xf32> to vector<8x128xf32>
    %559 = math.tanh %558 : vector<8x128xf32>
    %560 = vector.extract_strided_slice %541 {offsets = [0, 384], sizes = [8, 128], strides = [1, 1]} : vector<8x512xf32> to vector<8x128xf32>
    %cst_226 = arith.constant 5.000000e-01 : f32
    %561 = vector.broadcast %cst_226 : f32 to vector<8x128xf32>
    %562 = arith.mulf %561, %560 : vector<8x128xf32>
    %563 = math.tanh %562 : vector<8x128xf32>
    %cst_227 = arith.constant 5.000000e-01 : f32
    %564 = vector.broadcast %cst_227 : f32 to vector<8x128xf32>
    %565 = arith.mulf %564, %563 : vector<8x128xf32>
    %cst_228 = arith.constant 5.000000e-01 : f32
    %566 = vector.broadcast %cst_228 : f32 to vector<8x128xf32>
    %567 = arith.addf %565, %566 : vector<8x128xf32>
    %568 = arith.mulf %557, %532 : vector<8x128xf32>
    %569 = arith.mulf %549, %559 : vector<8x128xf32>
    %570 = arith.addf %568, %569 : vector<8x128xf32>
    %571 = math.tanh %570 : vector<8x128xf32>
    %572 = arith.mulf %567, %571 : vector<8x128xf32>
    %c5_i32_229 = arith.constant 5 : i32
    %c8_i32_230 = arith.constant 8 : i32
    %573 = arith.muli %c5_i32_229, %c8_i32_230 : i32
    %574 = tpu.assume_multiple %573, 8 : i32
    %575 = arith.index_cast %574 : i32 to index
    %c0_231 = arith.constant 0 : index
    %576 = vector.load %arg12[%575, %c0_231] : memref<64x512xf32, #tpu.memory_space<vmem>>, vector<8x512xf32>
    %577 = arith.truncf %572 : vector<8x128xf32> to vector<8x128xbf16>
    %cst_232 = arith.constant dense<0.000000e+00> : vector<8x512xf32>
    %578 = tpu.matmul %577, %370, %cst_232 {dimension_numbers = #tpu.dot_dimension_numbers<[1], [0], [0], [1], [0, 0, 1, 1], [], []>} : vector<8x128xbf16>, vector<128x512xbf16>, vector<8x512xf32> -> vector<8x512xf32>
    %579 = arith.addf %576, %578 : vector<8x512xf32>
    %580 = vector.extract_strided_slice %579 {offsets = [0, 0], sizes = [8, 128], strides = [1, 1]} : vector<8x512xf32> to vector<8x128xf32>
    %cst_233 = arith.constant 5.000000e-01 : f32
    %581 = vector.broadcast %cst_233 : f32 to vector<8x128xf32>
    %582 = arith.mulf %581, %580 : vector<8x128xf32>
    %583 = math.tanh %582 : vector<8x128xf32>
    %cst_234 = arith.constant 5.000000e-01 : f32
    %584 = vector.broadcast %cst_234 : f32 to vector<8x128xf32>
    %585 = arith.mulf %584, %583 : vector<8x128xf32>
    %cst_235 = arith.constant 5.000000e-01 : f32
    %586 = vector.broadcast %cst_235 : f32 to vector<8x128xf32>
    %587 = arith.addf %585, %586 : vector<8x128xf32>
    %588 = vector.extract_strided_slice %579 {offsets = [0, 128], sizes = [8, 128], strides = [1, 1]} : vector<8x512xf32> to vector<8x128xf32>
    %cst_236 = arith.constant 5.000000e-01 : f32
    %589 = vector.broadcast %cst_236 : f32 to vector<8x128xf32>
    %590 = arith.mulf %589, %588 : vector<8x128xf32>
    %591 = math.tanh %590 : vector<8x128xf32>
    %cst_237 = arith.constant 5.000000e-01 : f32
    %592 = vector.broadcast %cst_237 : f32 to vector<8x128xf32>
    %593 = arith.mulf %592, %591 : vector<8x128xf32>
    %cst_238 = arith.constant 5.000000e-01 : f32
    %594 = vector.broadcast %cst_238 : f32 to vector<8x128xf32>
    %595 = arith.addf %593, %594 : vector<8x128xf32>
    %596 = vector.extract_strided_slice %579 {offsets = [0, 256], sizes = [8, 128], strides = [1, 1]} : vector<8x512xf32> to vector<8x128xf32>
    %597 = math.tanh %596 : vector<8x128xf32>
    %598 = vector.extract_strided_slice %579 {offsets = [0, 384], sizes = [8, 128], strides = [1, 1]} : vector<8x512xf32> to vector<8x128xf32>
    %cst_239 = arith.constant 5.000000e-01 : f32
    %599 = vector.broadcast %cst_239 : f32 to vector<8x128xf32>
    %600 = arith.mulf %599, %598 : vector<8x128xf32>
    %601 = math.tanh %600 : vector<8x128xf32>
    %cst_240 = arith.constant 5.000000e-01 : f32
    %602 = vector.broadcast %cst_240 : f32 to vector<8x128xf32>
    %603 = arith.mulf %602, %601 : vector<8x128xf32>
    %cst_241 = arith.constant 5.000000e-01 : f32
    %604 = vector.broadcast %cst_241 : f32 to vector<8x128xf32>
    %605 = arith.addf %603, %604 : vector<8x128xf32>
    %606 = arith.mulf %595, %570 : vector<8x128xf32>
    %607 = arith.mulf %587, %597 : vector<8x128xf32>
    %608 = arith.addf %606, %607 : vector<8x128xf32>
    %609 = math.tanh %608 : vector<8x128xf32>
    %610 = arith.mulf %605, %609 : vector<8x128xf32>
    %c6_i32_242 = arith.constant 6 : i32
    %c8_i32_243 = arith.constant 8 : i32
    %611 = arith.muli %c6_i32_242, %c8_i32_243 : i32
    %612 = tpu.assume_multiple %611, 8 : i32
    %613 = arith.index_cast %612 : i32 to index
    %c0_244 = arith.constant 0 : index
    %614 = vector.load %arg12[%613, %c0_244] : memref<64x512xf32, #tpu.memory_space<vmem>>, vector<8x512xf32>
    %615 = arith.truncf %610 : vector<8x128xf32> to vector<8x128xbf16>
    %cst_245 = arith.constant dense<0.000000e+00> : vector<8x512xf32>
    %616 = tpu.matmul %615, %370, %cst_245 {dimension_numbers = #tpu.dot_dimension_numbers<[1], [0], [0], [1], [0, 0, 1, 1], [], []>} : vector<8x128xbf16>, vector<128x512xbf16>, vector<8x512xf32> -> vector<8x512xf32>
    %617 = arith.addf %614, %616 : vector<8x512xf32>
    %618 = vector.extract_strided_slice %617 {offsets = [0, 0], sizes = [8, 128], strides = [1, 1]} : vector<8x512xf32> to vector<8x128xf32>
    %cst_246 = arith.constant 5.000000e-01 : f32
    %619 = vector.broadcast %cst_246 : f32 to vector<8x128xf32>
    %620 = arith.mulf %619, %618 : vector<8x128xf32>
    %621 = math.tanh %620 : vector<8x128xf32>
    %cst_247 = arith.constant 5.000000e-01 : f32
    %622 = vector.broadcast %cst_247 : f32 to vector<8x128xf32>
    %623 = arith.mulf %622, %621 : vector<8x128xf32>
    %cst_248 = arith.constant 5.000000e-01 : f32
    %624 = vector.broadcast %cst_248 : f32 to vector<8x128xf32>
    %625 = arith.addf %623, %624 : vector<8x128xf32>
    %626 = vector.extract_strided_slice %617 {offsets = [0, 128], sizes = [8, 128], strides = [1, 1]} : vector<8x512xf32> to vector<8x128xf32>
    %cst_249 = arith.constant 5.000000e-01 : f32
    %627 = vector.broadcast %cst_249 : f32 to vector<8x128xf32>
    %628 = arith.mulf %627, %626 : vector<8x128xf32>
    %629 = math.tanh %628 : vector<8x128xf32>
    %cst_250 = arith.constant 5.000000e-01 : f32
    %630 = vector.broadcast %cst_250 : f32 to vector<8x128xf32>
    %631 = arith.mulf %630, %629 : vector<8x128xf32>
    %cst_251 = arith.constant 5.000000e-01 : f32
    %632 = vector.broadcast %cst_251 : f32 to vector<8x128xf32>
    %633 = arith.addf %631, %632 : vector<8x128xf32>
    %634 = vector.extract_strided_slice %617 {offsets = [0, 256], sizes = [8, 128], strides = [1, 1]} : vector<8x512xf32> to vector<8x128xf32>
    %635 = math.tanh %634 : vector<8x128xf32>
    %636 = vector.extract_strided_slice %617 {offsets = [0, 384], sizes = [8, 128], strides = [1, 1]} : vector<8x512xf32> to vector<8x128xf32>
    %cst_252 = arith.constant 5.000000e-01 : f32
    %637 = vector.broadcast %cst_252 : f32 to vector<8x128xf32>
    %638 = arith.mulf %637, %636 : vector<8x128xf32>
    %639 = math.tanh %638 : vector<8x128xf32>
    %cst_253 = arith.constant 5.000000e-01 : f32
    %640 = vector.broadcast %cst_253 : f32 to vector<8x128xf32>
    %641 = arith.mulf %640, %639 : vector<8x128xf32>
    %cst_254 = arith.constant 5.000000e-01 : f32
    %642 = vector.broadcast %cst_254 : f32 to vector<8x128xf32>
    %643 = arith.addf %641, %642 : vector<8x128xf32>
    %644 = arith.mulf %633, %608 : vector<8x128xf32>
    %645 = arith.mulf %625, %635 : vector<8x128xf32>
    %646 = arith.addf %644, %645 : vector<8x128xf32>
    %647 = math.tanh %646 : vector<8x128xf32>
    %648 = arith.mulf %643, %647 : vector<8x128xf32>
    %c7_i32_255 = arith.constant 7 : i32
    %c8_i32_256 = arith.constant 8 : i32
    %649 = arith.muli %c7_i32_255, %c8_i32_256 : i32
    %650 = tpu.assume_multiple %649, 8 : i32
    %651 = arith.index_cast %650 : i32 to index
    %c0_257 = arith.constant 0 : index
    %652 = vector.load %arg12[%651, %c0_257] : memref<64x512xf32, #tpu.memory_space<vmem>>, vector<8x512xf32>
    %653 = arith.truncf %648 : vector<8x128xf32> to vector<8x128xbf16>
    %cst_258 = arith.constant dense<0.000000e+00> : vector<8x512xf32>
    %654 = tpu.matmul %653, %370, %cst_258 {dimension_numbers = #tpu.dot_dimension_numbers<[1], [0], [0], [1], [0, 0, 1, 1], [], []>} : vector<8x128xbf16>, vector<128x512xbf16>, vector<8x512xf32> -> vector<8x512xf32>
    %655 = arith.addf %652, %654 : vector<8x512xf32>
    %656 = vector.extract_strided_slice %655 {offsets = [0, 0], sizes = [8, 128], strides = [1, 1]} : vector<8x512xf32> to vector<8x128xf32>
    %cst_259 = arith.constant 5.000000e-01 : f32
    %657 = vector.broadcast %cst_259 : f32 to vector<8x128xf32>
    %658 = arith.mulf %657, %656 : vector<8x128xf32>
    %659 = math.tanh %658 : vector<8x128xf32>
    %cst_260 = arith.constant 5.000000e-01 : f32
    %660 = vector.broadcast %cst_260 : f32 to vector<8x128xf32>
    %661 = arith.mulf %660, %659 : vector<8x128xf32>
    %cst_261 = arith.constant 5.000000e-01 : f32
    %662 = vector.broadcast %cst_261 : f32 to vector<8x128xf32>
    %663 = arith.addf %661, %662 : vector<8x128xf32>
    %664 = vector.extract_strided_slice %655 {offsets = [0, 128], sizes = [8, 128], strides = [1, 1]} : vector<8x512xf32> to vector<8x128xf32>
    %cst_262 = arith.constant 5.000000e-01 : f32
    %665 = vector.broadcast %cst_262 : f32 to vector<8x128xf32>
    %666 = arith.mulf %665, %664 : vector<8x128xf32>
    %667 = math.tanh %666 : vector<8x128xf32>
    %cst_263 = arith.constant 5.000000e-01 : f32
    %668 = vector.broadcast %cst_263 : f32 to vector<8x128xf32>
    %669 = arith.mulf %668, %667 : vector<8x128xf32>
    %cst_264 = arith.constant 5.000000e-01 : f32
    %670 = vector.broadcast %cst_264 : f32 to vector<8x128xf32>
    %671 = arith.addf %669, %670 : vector<8x128xf32>
    %672 = vector.extract_strided_slice %655 {offsets = [0, 256], sizes = [8, 128], strides = [1, 1]} : vector<8x512xf32> to vector<8x128xf32>
    %673 = math.tanh %672 : vector<8x128xf32>
    %674 = vector.extract_strided_slice %655 {offsets = [0, 384], sizes = [8, 128], strides = [1, 1]} : vector<8x512xf32> to vector<8x128xf32>
    %cst_265 = arith.constant 5.000000e-01 : f32
    %675 = vector.broadcast %cst_265 : f32 to vector<8x128xf32>
    %676 = arith.mulf %675, %674 : vector<8x128xf32>
    %677 = math.tanh %676 : vector<8x128xf32>
    %cst_266 = arith.constant 5.000000e-01 : f32
    %678 = vector.broadcast %cst_266 : f32 to vector<8x128xf32>
    %679 = arith.mulf %678, %677 : vector<8x128xf32>
    %cst_267 = arith.constant 5.000000e-01 : f32
    %680 = vector.broadcast %cst_267 : f32 to vector<8x128xf32>
    %681 = arith.addf %679, %680 : vector<8x128xf32>
    %682 = arith.mulf %671, %646 : vector<8x128xf32>
    %683 = arith.mulf %663, %673 : vector<8x128xf32>
    %684 = arith.addf %682, %683 : vector<8x128xf32>
    %685 = math.tanh %684 : vector<8x128xf32>
    %686 = arith.mulf %681, %685 : vector<8x128xf32>
    %c8_i32_268 = arith.constant 8 : i32
    %c1_269 = arith.constant 1 : index
    %c0_270 = arith.constant 0 : index
    %c0_271 = arith.constant 0 : index
    %687 = vector.load %arg10[%c1_269, %c0_270, %c0_271] : memref<2x8x128xf32, #tpu.memory_space<vmem>>, vector<1x8x128xf32>
    %688 = vector.shape_cast %687 : vector<1x8x128xf32> to vector<8x128xf32>
    %689 = vector.shape_cast %686 : vector<8x128xf32> to vector<1x8x128xf32>
    tpu.vector_store %arg10[%c1_269, %c0_270, %c0_271], %689 {strides = array<i32>} : memref<2x8x128xf32, #tpu.memory_space<vmem>>, vector<1x8x128xf32>,
    %c1_272 = arith.constant 1 : index
    %c0_273 = arith.constant 0 : index
    %c0_274 = arith.constant 0 : index
    %690 = vector.load %arg11[%c1_272, %c0_273, %c0_274] : memref<2x8x128xf32, #tpu.memory_space<vmem>>, vector<1x8x128xf32>
    %691 = vector.shape_cast %690 : vector<1x8x128xf32> to vector<8x128xf32>
    %692 = vector.shape_cast %684 : vector<8x128xf32> to vector<1x8x128xf32>
    tpu.vector_store %arg11[%c1_272, %c0_273, %c0_274], %692 {strides = array<i32>} : memref<2x8x128xf32, #tpu.memory_space<vmem>>, vector<1x8x128xf32>,
    %c0_275 = arith.constant 0 : index
    %c0_276 = arith.constant 0 : index
    %693 = vector.load %arg7[%c0_275, %c0_276] : memref<128x128xbf16, #tpu.memory_space<vmem>>, vector<128x128xbf16>
    %694 = arith.truncf %686 : vector<8x128xf32> to vector<8x128xbf16>
    %cst_277 = arith.constant dense<0.000000e+00> : vector<8x128xf32>
    %695 = tpu.matmul %694, %693, %cst_277 {dimension_numbers = #tpu.dot_dimension_numbers<[1], [0], [0], [1], [0, 0, 1, 1], [], []>} : vector<8x128xbf16>, vector<128x128xbf16>, vector<8x128xf32> -> vector<8x128xf32>
    %c0_278 = arith.constant 0 : index
    %c0_279 = arith.constant 0 : index
    %696 = vector.load %arg8[%c0_278, %c0_279] : memref<1x128xf32, #tpu.memory_space<vmem>>, vector<1x128xf32>
    %697 = vector.broadcast %696 : vector<1x128xf32> to vector<8x128xf32>
    %698 = arith.addf %695, %697 : vector<8x128xf32>
    %cst_280 = arith.constant 5.000000e-01 : f32
    %699 = vector.broadcast %cst_280 : f32 to vector<8x128xf32>
    %700 = arith.mulf %699, %698 : vector<8x128xf32>
    %701 = math.tanh %700 : vector<8x128xf32>
    %cst_281 = arith.constant 5.000000e-01 : f32
    %702 = vector.broadcast %cst_281 : f32 to vector<8x128xf32>
    %703 = arith.mulf %702, %701 : vector<8x128xf32>
    %cst_282 = arith.constant 5.000000e-01 : f32
    %704 = vector.broadcast %cst_282 : f32 to vector<8x128xf32>
    %705 = arith.addf %703, %704 : vector<8x128xf32>
    %c0_283 = arith.constant 0 : index
    %c0_284 = arith.constant 0 : index
    %706 = vector.load %arg9[%c0_283, %c0_284] : memref<8x128xf32, #tpu.memory_space<vmem>>, vector<8x128xf32>
    tpu.vector_store %arg9[%c0_283, %c0_284], %705 {strides = array<i32>} : memref<8x128xf32, #tpu.memory_space<vmem>>, vector<8x128xf32>,
    return
  }
  func.func @transform_0(%arg0: i32) -> (i32, i32, i32) {
    %c0_i32 = arith.constant 0 : i32
    %c0_i32_0 = arith.constant 0 : i32
    %c0_i32_1 = arith.constant 0 : i32
    return %c0_i32, %arg0, %c0_i32_0 : i32, i32, i32
  }
  func.func @transform_1(%arg0: i32) -> (i32, i32, i32) {
    %c0_i32 = arith.constant 0 : i32
    %c0_i32_0 = arith.constant 0 : i32
    %c0_i32_1 = arith.constant 0 : i32
    return %c0_i32, %arg0, %c0_i32_0 : i32, i32, i32
  }
  func.func @transform_2(%arg0: i32) -> (i32, i32, i32) {
    %c0_i32 = arith.constant 0 : i32
    %c0_i32_0 = arith.constant 0 : i32
    %c0_i32_1 = arith.constant 0 : i32
    return %c0_i32, %arg0, %c0_i32_0 : i32, i32, i32
  }
  func.func @transform_3(%arg0: i32) -> (i32, i32, i32) {
    %c0_i32 = arith.constant 0 : i32
    %c0_i32_0 = arith.constant 0 : i32
    %c0_i32_1 = arith.constant 0 : i32
    %c0_i32_2 = arith.constant 0 : i32
    return %c0_i32, %c0_i32_0, %c0_i32_1 : i32, i32, i32
  }
  func.func @transform_4(%arg0: i32) -> (i32, i32, i32) {
    %c0_i32 = arith.constant 0 : i32
    %c0_i32_0 = arith.constant 0 : i32
    %c0_i32_1 = arith.constant 0 : i32
    %c0_i32_2 = arith.constant 0 : i32
    return %c0_i32, %c0_i32_0, %c0_i32_1 : i32, i32, i32
  }
  func.func @transform_5(%arg0: i32) -> (i32, i32, i32) {
    %c0_i32 = arith.constant 0 : i32
    %c0_i32_0 = arith.constant 0 : i32
    %c0_i32_1 = arith.constant 0 : i32
    %c0_i32_2 = arith.constant 0 : i32
    return %c0_i32, %c0_i32_0, %c0_i32_1 : i32, i32, i32
  }
  func.func @transform_6(%arg0: i32) -> (i32, i32) {
    %c0_i32 = arith.constant 0 : i32
    %c0_i32_0 = arith.constant 0 : i32
    %c0_i32_1 = arith.constant 0 : i32
    return %c0_i32, %c0_i32_0 : i32, i32
  }
  func.func @transform_7(%arg0: i32) -> (i32, i32) {
    %c0_i32 = arith.constant 0 : i32
    %c0_i32_0 = arith.constant 0 : i32
    %c0_i32_1 = arith.constant 0 : i32
    return %c0_i32, %c0_i32_0 : i32, i32
  }
  func.func @transform_8(%arg0: i32) -> (i32, i32) {
    %c0_i32 = arith.constant 0 : i32
    %c0_i32_0 = arith.constant 0 : i32
    return %arg0, %c0_i32 : i32, i32
  }
  func.func @transform_9(%arg0: i32) -> (i32, i32, i32) {
    %c0_i32 = arith.constant 0 : i32
    %c0_i32_0 = arith.constant 0 : i32
    %c0_i32_1 = arith.constant 0 : i32
    return %c0_i32, %arg0, %c0_i32_0 : i32, i32, i32
  }
  func.func @transform_10(%arg0: i32) -> (i32, i32, i32) {
    %c0_i32 = arith.constant 0 : i32
    %c0_i32_0 = arith.constant 0 : i32
    %c0_i32_1 = arith.constant 0 : i32
    return %c0_i32, %arg0, %c0_i32_0 : i32, i32, i32
  }
}

</mosaic_0001>

<llo_original>
// kernel: sentiment_rnn_forward.1
$region0: #{sentiment_rnn_forward.1}
  #allocation0 [shape = 'u32[]', space=smem, size = 0x4, offset = 0x4, fixed_abs, tag = 'smem constant byte address 0x4 - core index']
  #allocation1 [shape = 'u32[144,128]{1,0:T(1,128)}', space=vmem, size = 0x12000, scoped, tag = 'internal scratch']
  #allocation2 [shape = 'f32[64,512]{1,0:T(8,128)}', space=vmem, size = 0x20000, scoped, tag = 'scratch operand']
  #allocation3 [shape = 'f32[64,128]{1,0:T(8,128)}', space=vmem, size = 0x8000, scoped, tag = 'scratch operand']
  %s0 = inlined_call_operand.hbm [shape: f32[8,8,128], index: 0, kind: input, shape index: {}]
  %s1 = inlined_call_operand.hbm [shape: f32[2,8,128], index: 1, kind: input, shape index: {}]
  %s2 = inlined_call_operand.hbm [shape: f32[2,8,128], index: 2, kind: input, shape index: {}]
  %s3 = inlined_call_operand.hbm [shape: bf16[2,128,512], index: 3, kind: input, shape index: {}]
  %s4 = inlined_call_operand.hbm [shape: bf16[2,128,512], index: 4, kind: input, shape index: {}]
  %s5 = inlined_call_operand.hbm [shape: f32[2,1,512], index: 5, kind: input, shape index: {}]
  %s6 = inlined_call_operand.hbm [shape: bf16[128,128], index: 6, kind: input, shape index: {}]
  %s7 = inlined_call_operand.hbm [shape: f32[1,128], index: 7, kind: input, shape index: {}]
  %s8 = inlined_call_operand.hbm [shape: f32[8,128], index: 8, kind: output, shape index: {0}]
  %s9 = inlined_call_operand.hbm [shape: f32[2,8,128], index: 9, kind: output, shape index: {1}]
  %s10 = inlined_call_operand.hbm [shape: f32[2,8,128], index: 10, kind: output, shape index: {2}]
  %11 = xla_tuple %s8, %s9, %s10
  %s12 = sld [smem:[#allocation0]]
  $region90: #{sentiment_rnn_forward.1} parent=0
    _
  %s14 = ssub.s32 1, %s12
  %s15 = scalar_select 0, %s14, %s12
  $region1: #{sentiment_rnn_forward.1} parent=0
    #allocation4 [shape = 'u8[32768]{0}', space=vmem, size = 0x8000, scoped, tag = 'input window, operand 0, single buffered']
    #allocation5 [shape = 's32[1]{0}', space=sflag, size = 0x4, scoped, tag = 'scoped memory for sentiment_rnn_forward.1']
    #allocation6 [shape = 's32[1]{0}', space=sflag, size = 0x4, scoped, tag = 'scoped memory for sentiment_rnn_forward.1']
    #allocation7 [shape = 'u8[8192]{0}', space=vmem, size = 0x2000, scoped, tag = 'input window, operand 1, single buffered']
    #allocation8 [shape = 's32[1]{0}', space=sflag, size = 0x4, scoped, tag = 'scoped memory for sentiment_rnn_forward.1']
    #allocation9 [shape = 'u8[8192]{0}', space=vmem, size = 0x2000, scoped, tag = 'input window, operand 2, single buffered']
    #allocation10 [shape = 'u8[262144]{0}', space=vmem, size = 0x40000, scoped, tag = 'input window, operand 3, single buffered']
    #allocation11 [shape = 's32[1]{0}', space=sflag, size = 0x4, scoped, tag = 'scoped memory for sentiment_rnn_forward.1']
    #allocation12 [shape = 'u8[262144]{0}', space=vmem, size = 0x40000, scoped, tag = 'input window, operand 4, single buffered']
    #allocation13 [shape = 'u8[4096]{0}', space=vmem, size = 0x1000, scoped, tag = 'input window, operand 5, single buffered']
    #allocation14 [shape = 's32[1]{0}', space=sflag, size = 0x4, scoped, tag = 'scoped memory for sentiment_rnn_forward.1']
    #allocation15 [shape = 'u8[32768]{0}', space=vmem, size = 0x8000, scoped, tag = 'input window, operand 6, single buffered']
    #allocation16 [shape = 'u8[512]{0}', space=vmem, size = 0x400, scoped, tag = 'input window, operand 7, single buffered']
    #allocation17 [shape = 's32[1]{0}', space=sflag, size = 0x4, scoped, tag = 'scoped memory for sentiment_rnn_forward.1']
    #allocation18 [shape = 'u8[4096]{0}', space=vmem, size = 0x1000, scoped, tag = 'output window, operand 0, single buffered']
    #allocation19 [shape = 'u8[8192]{0}', space=vmem, size = 0x2000, scoped, tag = 'output window, operand 1, single buffered']
    #allocation20 [shape = 's32[1]{0}', space=sflag, size = 0x4, scoped, tag = 'scoped memory for sentiment_rnn_forward.1']
    #allocation21 [shape = 'u8[8192]{0}', space=vmem, size = 0x2000, scoped, tag = 'output window, operand 2, single buffered']
    %16 = vsyncpa [#allocation5], 0
    %17 = vsyncpa [#allocation8], 0
    %18 = vsyncpa [#allocation11], 0
    %19 = vsyncpa [#allocation14], 0
    %20 = vsyncpa [#allocation17], 0
    %21 = vsyncpa [#allocation6], 0
    %22 = vsyncpa [#allocation20], 0
    // Predicated region
    $region2: #{sentiment_rnn_forward.1} parent=1 // pred_check
      _
    $region3: #{sentiment_rnn_forward.1} parent=1 // pred_check_branch
      %24 = sbr.rel (0) target = $region5
    $region4: #{sentiment_rnn_forward.1} parent=1 // pred_region
      %s26 = ssub.s32 1024, 1024
      %27 = vsyncadd [#allocation5], %s26
      %s28 = sshll.u32 [#allocation4], 4
      %s29 = int_to_ptr.vmem [resolvable:$true] %s28
      %34 = dma.hbm_to_vmem [thread:$0]  %s0, 1024, %s29, [#allocation5], 128, 128, 8
    $region5: #{sentiment_rnn_forward.1} parent=1 // pred_fallthru
      _
    // Predicated region
    $region6: #{sentiment_rnn_forward.1} parent=1 // pred_check
      _
    $region7: #{sentiment_rnn_forward.1} parent=1 // pred_check_branch
      %36 = sbr.rel (0) target = $region9
    $region8: #{sentiment_rnn_forward.1} parent=1 // pred_region
      %s38 = ssub.s32 256, 256
      %39 = vsyncadd [#allocation8], %s38
      %s40 = sshll.u32 [#allocation7], 4
      %s41 = int_to_ptr.vmem [resolvable:$true] %s40
      %46 = dma.hbm_to_vmem [thread:$0]  %s1, 256, %s41, [#allocation8], 128, 128, 8
    $region9: #{sentiment_rnn_forward.1} parent=1 // pred_fallthru
      _
    // Predicated region
    $region10: #{sentiment_rnn_forward.1} parent=1 // pred_check
      _
    $region11: #{sentiment_rnn_forward.1} parent=1 // pred_check_branch
      %48 = sbr.rel (0) target = $region13
    $region12: #{sentiment_rnn_forward.1} parent=1 // pred_region
      %s50 = ssub.s32 256, 256
      %51 = vsyncadd [#allocation8], %s50
      %s52 = sshll.u32 [#allocation9], 4
      %s53 = int_to_ptr.vmem [resolvable:$true] %s52
      %58 = dma.hbm_to_vmem [thread:$0]  %s2, 256, %s53, [#allocation8], 128, 128, 8
    $region13: #{sentiment_rnn_forward.1} parent=1 // pred_fallthru
      _
    // Predicated region
    $region14: #{sentiment_rnn_forward.1} parent=1 // pred_check
      _
    $region15: #{sentiment_rnn_forward.1} parent=1 // pred_check_branch
      %60 = sbr.rel (0) target = $region17
    $region16: #{sentiment_rnn_forward.1} parent=1 // pred_region
      %s62 = ssub.s32 8192, 8192
      %63 = vsyncadd [#allocation11], %s62
      %s64 = sshll.u32 [#allocation10], 4
      %s65 = int_to_ptr.vmem [resolvable:$true] %s64
      %70 = dma.hbm_to_vmem [thread:$0]  %s3, 8192, %s65, [#allocation11], 256, 256, 16
    $region17: #{sentiment_rnn_forward.1} parent=1 // pred_fallthru
      _
    // Predicated region
    $region18: #{sentiment_rnn_forward.1} parent=1 // pred_check
      _
    $region19: #{sentiment_rnn_forward.1} parent=1 // pred_check_branch
      %72 = sbr.rel (0) target = $region21
    $region20: #{sentiment_rnn_forward.1} parent=1 // pred_region
      %s74 = ssub.s32 8192, 8192
      %75 = vsyncadd [#allocation11], %s74
      %s76 = sshll.u32 [#allocation12], 4
      %s77 = int_to_ptr.vmem [resolvable:$true] %s76
      %82 = dma.hbm_to_vmem [thread:$0]  %s4, 8192, %s77, [#allocation11], 256, 256, 16
    $region21: #{sentiment_rnn_forward.1} parent=1 // pred_fallthru
      _
    // Predicated region
    $region22: #{sentiment_rnn_forward.1} parent=1 // pred_check
      _
    $region23: #{sentiment_rnn_forward.1} parent=1 // pred_check_branch
      %84 = sbr.rel (0) target = $region25
    $region24: #{sentiment_rnn_forward.1} parent=1 // pred_region
      %s86 = ssub.s32 128, 128
      %87 = vsyncadd [#allocation14], %s86
      %s88 = sshll.u32 [#allocation13], 4
      %s89 = int_to_ptr.vmem [resolvable:$true] %s88
      %94 = dma.hbm_to_vmem [thread:$0]  %s5, 128, %s89, [#allocation14], 64, 64, 4
    $region25: #{sentiment_rnn_forward.1} parent=1 // pred_fallthru
      _
    // Predicated region
    $region26: #{sentiment_rnn_forward.1} parent=1 // pred_check
      _
    $region27: #{sentiment_rnn_forward.1} parent=1 // pred_check_branch
      %96 = sbr.rel (0) target = $region29
    $region28: #{sentiment_rnn_forward.1} parent=1 // pred_region
      %s98 = ssub.s32 1024, 1024
      %99 = vsyncadd [#allocation14], %s98
      %s100 = sshll.u32 [#allocation15], 4
      %s101 = int_to_ptr.vmem [resolvable:$true] %s100
      %106 = dma.hbm_to_vmem [thread:$0]  %s6, 1024, %s101, [#allocation14], 64, 64, 4
    $region29: #{sentiment_rnn_forward.1} parent=1 // pred_fallthru
      _
    // Predicated region
    $region30: #{sentiment_rnn_forward.1} parent=1 // pred_check
      _
    $region31: #{sentiment_rnn_forward.1} parent=1 // pred_check_branch
      %108 = sbr.rel (0) target = $region33
    $region32: #{sentiment_rnn_forward.1} parent=1 // pred_region
      %s110 = ssub.s32 16, 16
      %111 = vsyncadd [#allocation17], %s110
      %s113 = sshll.u32 [#allocation16], 4
      %s114 = int_to_ptr.vmem [resolvable:$true] %s113
      %116 = dma.hbm_to_vmem [thread:$0]  %s7, 16, %s114, [#allocation17]
    $region33: #{sentiment_rnn_forward.1} parent=1 // pred_fallthru
      _
    // Predicated region
    $region34: #{sentiment_rnn_forward.1} parent=1 // pred_check
      _
    $region35: #{sentiment_rnn_forward.1} parent=1 // pred_check_branch
      %118 = sbr.rel (0) target = $region37
    $region36: #{sentiment_rnn_forward.1} parent=1 // pred_region
      %119 = dma.done [#allocation5], 1024
    $region37: #{sentiment_rnn_forward.1} parent=1 // pred_fallthru
      _
    // Predicated region
    $region38: #{sentiment_rnn_forward.1} parent=1 // pred_check
      _
    $region39: #{sentiment_rnn_forward.1} parent=1 // pred_check_branch
      %121 = sbr.rel (0) target = $region41
    $region40: #{sentiment_rnn_forward.1} parent=1 // pred_region
      %122 = dma.done [#allocation8], 256
    $region41: #{sentiment_rnn_forward.1} parent=1 // pred_fallthru
      _
    // Predicated region
    $region42: #{sentiment_rnn_forward.1} parent=1 // pred_check
      _
    $region43: #{sentiment_rnn_forward.1} parent=1 // pred_check_branch
      %124 = sbr.rel (0) target = $region45
    $region44: #{sentiment_rnn_forward.1} parent=1 // pred_region
      %125 = dma.done [#allocation8], 256
    $region45: #{sentiment_rnn_forward.1} parent=1 // pred_fallthru
      _
    // Predicated region
    $region46: #{sentiment_rnn_forward.1} parent=1 // pred_check
      _
    $region47: #{sentiment_rnn_forward.1} parent=1 // pred_check_branch
      %127 = sbr.rel (0) target = $region49
    $region48: #{sentiment_rnn_forward.1} parent=1 // pred_region
      %128 = dma.done [#allocation11], 8192
    $region49: #{sentiment_rnn_forward.1} parent=1 // pred_fallthru
      _
    // Predicated region
    $region50: #{sentiment_rnn_forward.1} parent=1 // pred_check
      _
    $region51: #{sentiment_rnn_forward.1} parent=1 // pred_check_branch
      %130 = sbr.rel (0) target = $region53
    $region52: #{sentiment_rnn_forward.1} parent=1 // pred_region
      %131 = dma.done [#allocation11], 8192
    $region53: #{sentiment_rnn_forward.1} parent=1 // pred_fallthru
      _
    // Predicated region
    $region54: #{sentiment_rnn_forward.1} parent=1 // pred_check
      _
    $region55: #{sentiment_rnn_forward.1} parent=1 // pred_check_branch
      %133 = sbr.rel (0) target = $region57
    $region56: #{sentiment_rnn_forward.1} parent=1 // pred_region
      %134 = dma.done [#allocation14], 128
    $region57: #{sentiment_rnn_forward.1} parent=1 // pred_fallthru
      _
    // Predicated region
    $region58: #{sentiment_rnn_forward.1} parent=1 // pred_check
      _
    $region59: #{sentiment_rnn_forward.1} parent=1 // pred_check_branch
      %136 = sbr.rel (0) target = $region61
    $region60: #{sentiment_rnn_forward.1} parent=1 // pred_region
      %137 = dma.done [#allocation14], 1024
    $region61: #{sentiment_rnn_forward.1} parent=1 // pred_fallthru
      _
    // Predicated region
    $region62: #{sentiment_rnn_forward.1} parent=1 // pred_check
      _
    $region63: #{sentiment_rnn_forward.1} parent=1 // pred_check_branch
      %139 = sbr.rel (0) target = $region65
    $region64: #{sentiment_rnn_forward.1} parent=1 // pred_region
      %140 = dma.done [#allocation17], 16
    $region65: #{sentiment_rnn_forward.1} parent=1 // pred_fallthru
      _
    %v142 = vld [vmem:[#allocation10] sm:$0xff]
    %v143 = vld [vmem:[#allocation10 + $0x8] sm:$0xff]
    %v144 = vld [vmem:[#allocation10 + $0x10] sm:$0xff]
    %v145 = vld [vmem:[#allocation10 + $0x18] sm:$0xff]
    %v146 = vld [vmem:[#allocation10 + $0x20] sm:$0xff]
    %v147 = vld [vmem:[#allocation10 + $0x28] sm:$0xff]
    %v148 = vld [vmem:[#allocation10 + $0x30] sm:$0xff]
    %v149 = vld [vmem:[#allocation10 + $0x38] sm:$0xff]
    %v150 = vld [vmem:[#allocation10 + $0x40] sm:$0xff]
    %v151 = vld [vmem:[#allocation10 + $0x48] sm:$0xff]
    %v152 = vld [vmem:[#allocation10 + $0x50] sm:$0xff]
    %v153 = vld [vmem:[#allocation10 + $0x58] sm:$0xff]
    %v154 = vld [vmem:[#allocation10 + $0x60] sm:$0xff]
    %v155 = vld [vmem:[#allocation10 + $0x68] sm:$0xff]
    %v156 = vld [vmem:[#allocation10 + $0x70] sm:$0xff]
    %v157 = vld [vmem:[#allocation10 + $0x78] sm:$0xff]
    %v158 = vld [vmem:[#allocation10 + $0x80] sm:$0xff]
    %v159 = vld [vmem:[#allocation10 + $0x88] sm:$0xff]
    %v160 = vld [vmem:[#allocation10 + $0x90] sm:$0xff]
    %v161 = vld [vmem:[#allocation10 + $0x98] sm:$0xff]
    %v162 = vld [vmem:[#allocation10 + $0xa0] sm:$0xff]
    %v163 = vld [vmem:[#allocation10 + $0xa8] sm:$0xff]
    %v164 = vld [vmem:[#allocation10 + $0xb0] sm:$0xff]
    %v165 = vld [vmem:[#allocation10 + $0xb8] sm:$0xff]
    %v166 = vld [vmem:[#allocation10 + $0xc0] sm:$0xff]
    %v167 = vld [vmem:[#allocation10 + $0xc8] sm:$0xff]
    %v168 = vld [vmem:[#allocation10 + $0xd0] sm:$0xff]
    %v169 = vld [vmem:[#allocation10 + $0xd8] sm:$0xff]
    %v170 = vld [vmem:[#allocation10 + $0xe0] sm:$0xff]
    %v171 = vld [vmem:[#allocation10 + $0xe8] sm:$0xff]
    %v172 = vld [vmem:[#allocation10 + $0xf0] sm:$0xff]
    %v173 = vld [vmem:[#allocation10 + $0xf8] sm:$0xff]
    %v174 = vld [vmem:[#allocation12] sm:$0xff]
    %v175 = vld [vmem:[#allocation12 + $0x8] sm:$0xff]
    %v176 = vld [vmem:[#allocation12 + $0x10] sm:$0xff]
    %v177 = vld [vmem:[#allocation12 + $0x18] sm:$0xff]
    %v178 = vld [vmem:[#allocation12 + $0x20] sm:$0xff]
    %v179 = vld [vmem:[#allocation12 + $0x28] sm:$0xff]
    %v180 = vld [vmem:[#allocation12 + $0x30] sm:$0xff]
    %v181 = vld [vmem:[#allocation12 + $0x38] sm:$0xff]
    %v182 = vld [vmem:[#allocation12 + $0x40] sm:$0xff]
    %v183 = vld [vmem:[#allocation12 + $0x48] sm:$0xff]
    %v184 = vld [vmem:[#allocation12 + $0x50] sm:$0xff]
    %v185 = vld [vmem:[#allocation12 + $0x58] sm:$0xff]
    %v186 = vld [vmem:[#allocation12 + $0x60] sm:$0xff]
    %v187 = vld [vmem:[#allocation12 + $0x68] sm:$0xff]
    %v188 = vld [vmem:[#allocation12 + $0x70] sm:$0xff]
    %v189 = vld [vmem:[#allocation12 + $0x78] sm:$0xff]
    %v190 = vld [vmem:[#allocation12 + $0x80] sm:$0xff]
    %v191 = vld [vmem:[#allocation12 + $0x88] sm:$0xff]
    %v192 = vld [vmem:[#allocation12 + $0x90] sm:$0xff]
    %v193 = vld [vmem:[#allocation12 + $0x98] sm:$0xff]
    %v194 = vld [vmem:[#allocation12 + $0xa0] sm:$0xff]
    %v195 = vld [vmem:[#allocation12 + $0xa8] sm:$0xff]
    %v196 = vld [vmem:[#allocation12 + $0xb0] sm:$0xff]
    %v197 = vld [vmem:[#allocation12 + $0xb8] sm:$0xff]
    %v198 = vld [vmem:[#allocation12 + $0xc0] sm:$0xff]
    %v199 = vld [vmem:[#allocation12 + $0xc8] sm:$0xff]
    %v200 = vld [vmem:[#allocation12 + $0xd0] sm:$0xff]
    %v201 = vld [vmem:[#allocation12 + $0xd8] sm:$0xff]
    %v202 = vld [vmem:[#allocation12 + $0xe0] sm:$0xff]
    %v203 = vld [vmem:[#allocation12 + $0xe8] sm:$0xff]
    %v204 = vld [vmem:[#allocation12 + $0xf0] sm:$0xff]
    %v205 = vld [vmem:[#allocation12 + $0xf8] sm:$0xff]
    %v206 = vld [vmem:[#allocation13] sm:$0xf]
    %v207 = vld [vmem:[#allocation7] sm:$0xff]
    %v208 = vld [vmem:[#allocation9] sm:$0xff]
    %v209 = vld [vmem:[#allocation4] sm:$0xff]
    %v210 = vld [vmem:[#allocation4 + $0x8] sm:$0xff]
    %v211 = vld [vmem:[#allocation4 + $0x10] sm:$0xff]
    %v212 = vld [vmem:[#allocation4 + $0x18] sm:$0xff]
    %v213 = vld [vmem:[#allocation4 + $0x20] sm:$0xff]
    %v214 = vld [vmem:[#allocation4 + $0x28] sm:$0xff]
    %v215 = vld [vmem:[#allocation4 + $0x30] sm:$0xff]
    %v216 = vld [vmem:[#allocation4 + $0x38] sm:$0xff]
    %v217 = vpack.c.bf16 %v210, %v209
    %v218 = vpack.c.bf16 %v212, %v211
    %v219 = vpack.c.bf16 %v214, %v213
    %v220 = vpack.c.bf16 %v216, %v215
    %v222 = vlaneseq
    %v223 = vshrl.u32 %v222, 7
    %v224 = vsub.s32 0, %v223
    %v225 = vrot.slane %v206, %v224
    %v226 = vlaneseq
    %v227 = vshrl.u32 %v226, 7
    %v228 = vsub.s32 1, %v227
    %v229 = vrot.slane %v206, %v228
    %v230 = vlaneseq
    %v231 = vshrl.u32 %v230, 7
    %v232 = vsub.s32 2, %v231
    %v233 = vrot.slane %v206, %v232
    %v234 = vlaneseq
    %v235 = vshrl.u32 %v234, 7
    %v236 = vsub.s32 3, %v235
    %v237 = vrot.slane %v206, %v236
    %v274 = vunpack.c.l.b16 %v142
    %v275 = vunpack.c.h.b16 %v142
    %v276 = vunpack.c.l.b16 %v143
    %v277 = vunpack.c.h.b16 %v143
    %v278 = vunpack.c.l.b16 %v144
    %v279 = vunpack.c.h.b16 %v144
    %v280 = vunpack.c.l.b16 %v145
    %v281 = vunpack.c.h.b16 %v145
    %v282 = vunpack.c.l.b16 %v146
    %v283 = vunpack.c.h.b16 %v146
    %v284 = vunpack.c.l.b16 %v147
    %v285 = vunpack.c.h.b16 %v147
    %v286 = vunpack.c.l.b16 %v148
    %v287 = vunpack.c.h.b16 %v148
    %v288 = vunpack.c.l.b16 %v149
    %v289 = vunpack.c.h.b16 %v149
    %v290 = vunpack.c.l.b16 %v150
    %v291 = vunpack.c.h.b16 %v150
    %v292 = vunpack.c.l.b16 %v151
    %v293 = vunpack.c.h.b16 %v151
    %v294 = vunpack.c.l.b16 %v152
    %v295 = vunpack.c.h.b16 %v152
    %v296 = vunpack.c.l.b16 %v153
    %v297 = vunpack.c.h.b16 %v153
    %v298 = vunpack.c.l.b16 %v154
    %v299 = vunpack.c.h.b16 %v154
    %v300 = vunpack.c.l.b16 %v155
    %v301 = vunpack.c.h.b16 %v155
    %v302 = vunpack.c.l.b16 %v156
    %v303 = vunpack.c.h.b16 %v156
    %v304 = vunpack.c.l.b16 %v157
    %v305 = vunpack.c.h.b16 %v157
    %v306 = vunpack.c.l.b16 %v158
    %v307 = vunpack.c.h.b16 %v158
    %v308 = vunpack.c.l.b16 %v159
    %v309 = vunpack.c.h.b16 %v159
    %v310 = vunpack.c.l.b16 %v160
    %v311 = vunpack.c.h.b16 %v160
    %v312 = vunpack.c.l.b16 %v161
    %v313 = vunpack.c.h.b16 %v161
    %v314 = vunpack.c.l.b16 %v162
    %v315 = vunpack.c.h.b16 %v162
    %v316 = vunpack.c.l.b16 %v163
    %v317 = vunpack.c.h.b16 %v163
    %v318 = vunpack.c.l.b16 %v164
    %v319 = vunpack.c.h.b16 %v164
    %v320 = vunpack.c.l.b16 %v165
    %v321 = vunpack.c.h.b16 %v165
    %v322 = vunpack.c.l.b16 %v166
    %v323 = vunpack.c.h.b16 %v166
    %v324 = vunpack.c.l.b16 %v167
    %v325 = vunpack.c.h.b16 %v167
    %v326 = vunpack.c.l.b16 %v168
    %v327 = vunpack.c.h.b16 %v168
    %v328 = vunpack.c.l.b16 %v169
    %v329 = vunpack.c.h.b16 %v169
    %v330 = vunpack.c.l.b16 %v170
    %v331 = vunpack.c.h.b16 %v170
    %v332 = vunpack.c.l.b16 %v171
    %v333 = vunpack.c.h.b16 %v171
    %v334 = vunpack.c.l.b16 %v172
    %v335 = vunpack.c.h.b16 %v172
    %v336 = vunpack.c.l.b16 %v173
    %v337 = vunpack.c.h.b16 %v173
    %v338 = vpack.c.b16 %v278, %v274
    %v339 = vpack.c.b16 %v279, %v275
    %v340 = vpack.c.b16 %v280, %v276
    %v341 = vpack.c.b16 %v281, %v277
    %v342 = vpack.c.b16 %v286, %v282
    %v343 = vpack.c.b16 %v287, %v283
    %v344 = vpack.c.b16 %v288, %v284
    %v345 = vpack.c.b16 %v289, %v285
    %v346 = vpack.c.b16 %v294, %v290
    %v347 = vpack.c.b16 %v295, %v291
    %v348 = vpack.c.b16 %v296, %v292
    %v349 = vpack.c.b16 %v297, %v293
    %v350 = vpack.c.b16 %v302, %v298
    %v351 = vpack.c.b16 %v303, %v299
    %v352 = vpack.c.b16 %v304, %v300
    %v353 = vpack.c.b16 %v305, %v301
    %v354 = vpack.c.b16 %v310, %v306
    %v355 = vpack.c.b16 %v311, %v307
    %v356 = vpack.c.b16 %v312, %v308
    %v357 = vpack.c.b16 %v313, %v309
    %v358 = vpack.c.b16 %v318, %v314
    %v359 = vpack.c.b16 %v319, %v315
    %v360 = vpack.c.b16 %v320, %v316
    %v361 = vpack.c.b16 %v321, %v317
    %v362 = vpack.c.b16 %v326, %v322
    %v363 = vpack.c.b16 %v327, %v323
    %v364 = vpack.c.b16 %v328, %v324
    %v365 = vpack.c.b16 %v329, %v325
    %v366 = vpack.c.b16 %v334, %v330
    %v367 = vpack.c.b16 %v335, %v331
    %v368 = vpack.c.b16 %v336, %v332
    %v369 = vpack.c.b16 %v337, %v333
    %402 = vmatprep.subr.bf16.mxu0 %v339
    %403 = vmatpush1.bf16.msra.mxu0 %v338
    %404 = vmatprep.subr.bf16.mxu0 %v343
    %405 = vmatpush1.bf16.msra.mxu0 %v342
    %406 = vmatprep.subr.bf16.mxu0 %v347
    %407 = vmatpush1.bf16.msra.mxu0 %v346
    %408 = vmatprep.subr.bf16.mxu0 %v351
    %409 = vmatpush1.bf16.msra.mxu0 %v350
    %410 = vmatprep.subr.bf16.mxu0 %v355
    %411 = vmatpush1.bf16.msra.mxu0 %v354
    %412 = vmatprep.subr.bf16.mxu0 %v359
    %413 = vmatpush1.bf16.msra.mxu0 %v358
    %414 = vmatprep.subr.bf16.mxu0 %v363
    %415 = vmatpush1.bf16.msra.mxu0 %v362
    %416 = vmatprep.subr.bf16.mxu0 %v367
    %417 = vmatpush1.bf16.msra.mxu0 %v366
    %418 = vmatprep.subr.bf16.mxu0 0
    %419 = vmatpush1.bf16.msra.mxu0 0
    %420 = vmatprep.subr.bf16.mxu0 0
    %421 = vmatpush1.bf16.msra.mxu0 0
    %422 = vmatprep.subr.bf16.mxu0 0
    %423 = vmatpush1.bf16.msra.mxu0 0
    %424 = vmatprep.subr.bf16.mxu0 0
    %425 = vmatpush1.bf16.msra.mxu0 0
    %426 = vmatprep.subr.bf16.mxu0 0
    %427 = vmatpush1.bf16.msra.mxu0 0
    %428 = vmatprep.subr.bf16.mxu0 0
    %429 = vmatpush1.bf16.msra.mxu0 0
    %430 = vmatprep.subr.bf16.mxu0 0
    %431 = vmatpush1.bf16.msra.mxu0 0
    %432 = vmatprep.subr.bf16.mxu0 0
    %433 = vmatpush1.bf16.msra.mxu0 0
    %434 = vmatprep.mubr.bf16.mxu0 0
    %435 = vmatmul.mubr.bf16.gmra.mrb[0].mxu0 %v217
    %v436 = vpop.f32.mrb[0].mxu0
    %v437 = vadd.f32 %v225, %v436
    %v438 = vpop.f32.mrb[0].mxu0
    %v439 = vadd.f32 %v229, %v438
    %v440 = vpop.f32.mrb[0].mxu0
    %v441 = vadd.f32 %v225, %v440
    %v442 = vpop.f32.mrb[0].mxu0
    %v443 = vadd.f32 %v229, %v442
    %444 = vmatprep.mubr.bf16.mxu0 0
    %445 = vmatmul.mubr.bf16.gmra.mrb[0].mxu0 %v218
    %v446 = vpop.f32.mrb[0].mxu0
    %v447 = vadd.f32 %v225, %v446
    %v448 = vpop.f32.mrb[0].mxu0
    %v449 = vadd.f32 %v229, %v448
    %v450 = vpop.f32.mrb[0].mxu0
    %v451 = vadd.f32 %v225, %v450
    %v452 = vpop.f32.mrb[0].mxu0
    %v453 = vadd.f32 %v229, %v452
    %454 = vmatprep.mubr.bf16.mxu0 0
    %455 = vmatmul.mubr.bf16.gmra.mrb[0].mxu0 %v219
    %v456 = vpop.f32.mrb[0].mxu0
    %v457 = vadd.f32 %v225, %v456
    %v458 = vpop.f32.mrb[0].mxu0
    %v459 = vadd.f32 %v229, %v458
    %v460 = vpop.f32.mrb[0].mxu0
    %v461 = vadd.f32 %v225, %v460
    %v462 = vpop.f32.mrb[0].mxu0
    %v463 = vadd.f32 %v229, %v462
    %464 = vmatprep.mubr.bf16.mxu0 0
    %465 = vmatmul.mubr.bf16.gmra.mrb[0].mxu0 %v220
    %v466 = vpop.f32.mrb[0].mxu0
    %v467 = vadd.f32 %v225, %v466
    %v468 = vpop.f32.mrb[0].mxu0
    %v469 = vadd.f32 %v229, %v468
    %v470 = vpop.f32.mrb[0].mxu0
    %v471 = vadd.f32 %v225, %v470
    %v472 = vpop.f32.mrb[0].mxu0
    %v473 = vadd.f32 %v229, %v472
    %474 = vdwg.mxu0
    %475 = vmatprep.subr.bf16.mxu0 %v341
    %476 = vmatpush1.bf16.msra.mxu0 %v340
    %477 = vmatprep.subr.bf16.mxu0 %v345
    %478 = vmatpush1.bf16.msra.mxu0 %v344
    %479 = vmatprep.subr.bf16.mxu0 %v349
    %480 = vmatpush1.bf16.msra.mxu0 %v348
    %481 = vmatprep.subr.bf16.mxu0 %v353
    %482 = vmatpush1.bf16.msra.mxu0 %v352
    %483 = vmatprep.subr.bf16.mxu0 %v357
    %484 = vmatpush1.bf16.msra.mxu0 %v356
    %485 = vmatprep.subr.bf16.mxu0 %v361
    %486 = vmatpush1.bf16.msra.mxu0 %v360
    %487 = vmatprep.subr.bf16.mxu0 %v365
    %488 = vmatpush1.bf16.msra.mxu0 %v364
    %489 = vmatprep.subr.bf16.mxu0 %v369
    %490 = vmatpush1.bf16.msra.mxu0 %v368
    %491 = vmatprep.subr.bf16.mxu0 0
    %492 = vmatpush1.bf16.msra.mxu0 0
    %493 = vmatprep.subr.bf16.mxu0 0
    %494 = vmatpush1.bf16.msra.mxu0 0
    %495 = vmatprep.subr.bf16.mxu0 0
    %496 = vmatpush1.bf16.msra.mxu0 0
    %497 = vmatprep.subr.bf16.mxu0 0
    %498 = vmatpush1.bf16.msra.mxu0 0
    %499 = vmatprep.subr.bf16.mxu0 0
    %500 = vmatpush1.bf16.msra.mxu0 0
    %501 = vmatprep.subr.bf16.mxu0 0
    %502 = vmatpush1.bf16.msra.mxu0 0
    %503 = vmatprep.subr.bf16.mxu0 0
    %504 = vmatpush1.bf16.msra.mxu0 0
    %505 = vmatprep.subr.bf16.mxu0 0
    %506 = vmatpush1.bf16.msra.mxu0 0
    %507 = vmatprep.mubr.bf16.mxu0 0
    %508 = vmatmul.mubr.bf16.gmra.mrb[0].mxu0 %v217
    %v509 = vpop.f32.mrb[0].mxu0
    %v510 = vadd.f32 %v233, %v509
    %v511 = vpop.f32.mrb[0].mxu0
    %v512 = vadd.f32 %v237, %v511
    %v513 = vpop.f32.mrb[0].mxu0
    %v514 = vadd.f32 %v233, %v513
    %v515 = vpop.f32.mrb[0].mxu0
    %v516 = vadd.f32 %v237, %v515
    %517 = vmatprep.mubr.bf16.mxu0 0
    %518 = vmatmul.mubr.bf16.gmra.mrb[0].mxu0 %v218
    %v519 = vpop.f32.mrb[0].mxu0
    %v520 = vadd.f32 %v233, %v519
    %v521 = vpop.f32.mrb[0].mxu0
    %v522 = vadd.f32 %v237, %v521
    %v523 = vpop.f32.mrb[0].mxu0
    %v524 = vadd.f32 %v233, %v523
    %v525 = vpop.f32.mrb[0].mxu0
    %v526 = vadd.f32 %v237, %v525
    %527 = vmatprep.mubr.bf16.mxu0 0
    %528 = vmatmul.mubr.bf16.gmra.mrb[0].mxu0 %v219
    %v529 = vpop.f32.mrb[0].mxu0
    %v530 = vadd.f32 %v233, %v529
    %v531 = vpop.f32.mrb[0].mxu0
    %v532 = vadd.f32 %v237, %v531
    %v533 = vpop.f32.mrb[0].mxu0
    %v534 = vadd.f32 %v233, %v533
    %v535 = vpop.f32.mrb[0].mxu0
    %v536 = vadd.f32 %v237, %v535
    %537 = vmatprep.mubr.bf16.mxu0 0
    %538 = vmatmul.mubr.bf16.gmra.mrb[0].mxu0 %v220
    %v539 = vpop.f32.mrb[0].mxu0
    %v540 = vadd.f32 %v233, %v539
    %v541 = vpop.f32.mrb[0].mxu0
    %v542 = vadd.f32 %v237, %v541
    %v543 = vpop.f32.mrb[0].mxu0
    %v544 = vadd.f32 %v233, %v543
    %v545 = vpop.f32.mrb[0].mxu0
    %v546 = vadd.f32 %v237, %v545
    %547 = vdwg.mxu0
    %548 = vst [vmem:[#allocation2] sm:$0xff] %v437
    %549 = vst [vmem:[#allocation2 + $0x8] sm:$0xff] %v439
    %550 = vst [vmem:[#allocation2 + $0x10] sm:$0xff] %v510
    %551 = vst [vmem:[#allocation2 + $0x18] sm:$0xff] %v512
    %552 = vst [vmem:[#allocation2 + $0x20] sm:$0xff] %v441
    %553 = vst [vmem:[#allocation2 + $0x28] sm:$0xff] %v443
    %554 = vst [vmem:[#allocation2 + $0x30] sm:$0xff] %v514
    %555 = vst [vmem:[#allocation2 + $0x38] sm:$0xff] %v516
    %556 = vst [vmem:[#allocation2 + $0x40] sm:$0xff] %v447
    %557 = vst [vmem:[#allocation2 + $0x48] sm:$0xff] %v449
    %558 = vst [vmem:[#allocation2 + $0x50] sm:$0xff] %v520
    %559 = vst [vmem:[#allocation2 + $0x58] sm:$0xff] %v522
    %560 = vst [vmem:[#allocation2 + $0x60] sm:$0xff] %v451
    %561 = vst [vmem:[#allocation2 + $0x68] sm:$0xff] %v453
    %562 = vst [vmem:[#allocation2 + $0x70] sm:$0xff] %v524
    %563 = vst [vmem:[#allocation2 + $0x78] sm:$0xff] %v526
    %564 = vst [vmem:[#allocation2 + $0x80] sm:$0xff] %v457
    %565 = vst [vmem:[#allocation2 + $0x88] sm:$0xff] %v459
    %566 = vst [vmem:[#allocation2 + $0x90] sm:$0xff] %v530
    %567 = vst [vmem:[#allocation2 + $0x98] sm:$0xff] %v532
    %568 = vst [vmem:[#allocation2 + $0xa0] sm:$0xff] %v461
    %569 = vst [vmem:[#allocation2 + $0xa8] sm:$0xff] %v463
    %570 = vst [vmem:[#allocation2 + $0xb0] sm:$0xff] %v534
    %571 = vst [vmem:[#allocation2 + $0xb8] sm:$0xff] %v536
    %572 = vst [vmem:[#allocation2 + $0xc0] sm:$0xff] %v467
    %573 = vst [vmem:[#allocation2 + $0xc8] sm:$0xff] %v469
    %574 = vst [vmem:[#allocation2 + $0xd0] sm:$0xff] %v540
    %575 = vst [vmem:[#allocation2 + $0xd8] sm:$0xff] %v542
    %576 = vst [vmem:[#allocation2 + $0xe0] sm:$0xff] %v471
    %577 = vst [vmem:[#allocation2 + $0xe8] sm:$0xff] %v473
    %578 = vst [vmem:[#allocation2 + $0xf0] sm:$0xff] %v544
    %579 = vst [vmem:[#allocation2 + $0xf8] sm:$0xff] %v546
    %s580 = smul.u32 0, 4
    %s581 = smul.addr %s580, 8
    %s582 = scalar_lea.vmem [#allocation2], %s581
    %v583 = vld [vmem:[%s582] sm:$0xff]
    %v584 = vld [vmem:[%s582 + $0x8] sm:$0xff]
    %v585 = vld [vmem:[%s582 + $0x10] sm:$0xff]
    %v586 = vld [vmem:[%s582 + $0x18] sm:$0xff]
    %v587 = vpack.c.bf16 %v207, %v207
    %v620 = vunpack.c.l.b16 %v174
    %v621 = vunpack.c.h.b16 %v174
    %v622 = vunpack.c.l.b16 %v175
    %v623 = vunpack.c.h.b16 %v175
    %v624 = vunpack.c.l.b16 %v176
    %v625 = vunpack.c.h.b16 %v176
    %v626 = vunpack.c.l.b16 %v177
    %v627 = vunpack.c.h.b16 %v177
    %v628 = vunpack.c.l.b16 %v178
    %v629 = vunpack.c.h.b16 %v178
    %v630 = vunpack.c.l.b16 %v179
    %v631 = vunpack.c.h.b16 %v179
    %v632 = vunpack.c.l.b16 %v180
    %v633 = vunpack.c.h.b16 %v180
    %v634 = vunpack.c.l.b16 %v181
    %v635 = vunpack.c.h.b16 %v181
    %v636 = vunpack.c.l.b16 %v182
    %v637 = vunpack.c.h.b16 %v182
    %v638 = vunpack.c.l.b16 %v183
    %v639 = vunpack.c.h.b16 %v183
    %v640 = vunpack.c.l.b16 %v184
    %v641 = vunpack.c.h.b16 %v184
    %v642 = vunpack.c.l.b16 %v185
    %v643 = vunpack.c.h.b16 %v185
    %v644 = vunpack.c.l.b16 %v186
    %v645 = vunpack.c.h.b16 %v186
    %v646 = vunpack.c.l.b16 %v187
    %v647 = vunpack.c.h.b16 %v187
    %v648 = vunpack.c.l.b16 %v188
    %v649 = vunpack.c.h.b16 %v188
    %v650 = vunpack.c.l.b16 %v189
    %v651 = vunpack.c.h.b16 %v189
    %v652 = vunpack.c.l.b16 %v190
    %v653 = vunpack.c.h.b16 %v190
    %v654 = vunpack.c.l.b16 %v191
    %v655 = vunpack.c.h.b16 %v191
    %v656 = vunpack.c.l.b16 %v192
    %v657 = vunpack.c.h.b16 %v192
    %v658 = vunpack.c.l.b16 %v193
    %v659 = vunpack.c.h.b16 %v193
    %v660 = vunpack.c.l.b16 %v194
    %v661 = vunpack.c.h.b16 %v194
    %v662 = vunpack.c.l.b16 %v195
    %v663 = vunpack.c.h.b16 %v195
    %v664 = vunpack.c.l.b16 %v196
    %v665 = vunpack.c.h.b16 %v196
    %v666 = vunpack.c.l.b16 %v197
    %v667 = vunpack.c.h.b16 %v197
    %v668 = vunpack.c.l.b16 %v198
    %v669 = vunpack.c.h.b16 %v198
    %v670 = vunpack.c.l.b16 %v199
    %v671 = vunpack.c.h.b16 %v199
    %v672 = vunpack.c.l.b16 %v200
    %v673 = vunpack.c.h.b16 %v200
    %v674 = vunpack.c.l.b16 %v201
    %v675 = vunpack.c.h.b16 %v201
    %v676 = vunpack.c.l.b16 %v202
    %v677 = vunpack.c.h.b16 %v202
    %v678 = vunpack.c.l.b16 %v203
    %v679 = vunpack.c.h.b16 %v203
    %v680 = vunpack.c.l.b16 %v204
    %v681 = vunpack.c.h.b16 %v204
    %v682 = vunpack.c.l.b16 %v205
    %v683 = vunpack.c.h.b16 %v205
    %v684 = vpack.c.b16 %v624, %v620
    %v685 = vpack.c.b16 %v625, %v621
    %v686 = vpack.c.b16 %v626, %v622
    %v687 = vpack.c.b16 %v627, %v623
    %v688 = vpack.c.b16 %v632, %v628
    %v689 = vpack.c.b16 %v633, %v629
    %v690 = vpack.c.b16 %v634, %v630
    %v691 = vpack.c.b16 %v635, %v631
    %v692 = vpack.c.b16 %v640, %v636
    %v693 = vpack.c.b16 %v641, %v637
    %v694 = vpack.c.b16 %v642, %v638
    %v695 = vpack.c.b16 %v643, %v639
    %v696 = vpack.c.b16 %v648, %v644
    %v697 = vpack.c.b16 %v649, %v645
    %v698 = vpack.c.b16 %v650, %v646
    %v699 = vpack.c.b16 %v651, %v647
    %v700 = vpack.c.b16 %v656, %v652
    %v701 = vpack.c.b16 %v657, %v653
    %v702 = vpack.c.b16 %v658, %v654
    %v703 = vpack.c.b16 %v659, %v655
    %v704 = vpack.c.b16 %v664, %v660
    %v705 = vpack.c.b16 %v665, %v661
    %v706 = vpack.c.b16 %v666, %v662
    %v707 = vpack.c.b16 %v667, %v663
    %v708 = vpack.c.b16 %v672, %v668
    %v709 = vpack.c.b16 %v673, %v669
    %v710 = vpack.c.b16 %v674, %v670
    %v711 = vpack.c.b16 %v675, %v671
    %v712 = vpack.c.b16 %v680, %v676
    %v713 = vpack.c.b16 %v681, %v677
    %v714 = vpack.c.b16 %v682, %v678
    %v715 = vpack.c.b16 %v683, %v679
    %748 = vmatprep.subr.bf16.mxu0 %v685
    %749 = vmatpush1.bf16.msra.mxu0 %v684
    %750 = vmatprep.subr.bf16.mxu0 %v689
    %751 = vmatpush1.bf16.msra.mxu0 %v688
    %752 = vmatprep.subr.bf16.mxu0 %v693
    %753 = vmatpush1.bf16.msra.mxu0 %v692
    %754 = vmatprep.subr.bf16.mxu0 %v697
    %755 = vmatpush1.bf16.msra.mxu0 %v696
    %756 = vmatprep.subr.bf16.mxu0 %v701
    %757 = vmatpush1.bf16.msra.mxu0 %v700
    %758 = vmatprep.subr.bf16.mxu0 %v705
    %759 = vmatpush1.bf16.msra.mxu0 %v704
    %760 = vmatprep.subr.bf16.mxu0 %v709
    %761 = vmatpush1.bf16.msra.mxu0 %v708
    %762 = vmatprep.subr.bf16.mxu0 %v713
    %763 = vmatpush1.bf16.msra.mxu0 %v712
    %764 = vmatprep.subr.bf16.mxu0 0
    %765 = vmatpush1.bf16.msra.mxu0 0
    %766 = vmatprep.subr.bf16.mxu0 0
    %767 = vmatpush1.bf16.msra.mxu0 0
    %768 = vmatprep.subr.bf16.mxu0 0
    %769 = vmatpush1.bf16.msra.mxu0 0
    %770 = vmatprep.subr.bf16.mxu0 0
    %771 = vmatpush1.bf16.msra.mxu0 0
    %772 = vmatprep.subr.bf16.mxu0 0
    %773 = vmatpush1.bf16.msra.mxu0 0
    %774 = vmatprep.subr.bf16.mxu0 0
    %775 = vmatpush1.bf16.msra.mxu0 0
    %776 = vmatprep.subr.bf16.mxu0 0
    %777 = vmatpush1.bf16.msra.mxu0 0
    %778 = vmatprep.subr.bf16.mxu0 0
    %779 = vmatpush1.bf16.msra.mxu0 0
    %780 = vmatprep.mubr.bf16.mxu0 0
    %781 = vmatmul.mubr.bf16.gmra.mrb[0].mxu0 %v587
    %v782 = vpop.f32.mrb[0].mxu0
    %v783 = vadd.f32 0.0, %v782
    %v784 = vpop.f32.mrb[0].mxu0
    %v785 = vadd.f32 0.0, %v784
    %v786 = vpop.f32.mrb[0].mxu0
    %v787 = vpop.f32.mrb[0].mxu0
    %788 = vdwg.mxu0
    %789 = vmatprep.subr.bf16.mxu0 %v687
    %790 = vmatpush1.bf16.msra.mxu0 %v686
    %791 = vmatprep.subr.bf16.mxu0 %v691
    %792 = vmatpush1.bf16.msra.mxu0 %v690
    %793 = vmatprep.subr.bf16.mxu0 %v695
    %794 = vmatpush1.bf16.msra.mxu0 %v694
    %795 = vmatprep.subr.bf16.mxu0 %v699
    %796 = vmatpush1.bf16.msra.mxu0 %v698
    %797 = vmatprep.subr.bf16.mxu0 %v703
    %798 = vmatpush1.bf16.msra.mxu0 %v702
    %799 = vmatprep.subr.bf16.mxu0 %v707
    %800 = vmatpush1.bf16.msra.mxu0 %v706
    %801 = vmatprep.subr.bf16.mxu0 %v711
    %802 = vmatpush1.bf16.msra.mxu0 %v710
    %803 = vmatprep.subr.bf16.mxu0 %v715
    %804 = vmatpush1.bf16.msra.mxu0 %v714
    %805 = vmatprep.subr.bf16.mxu0 0
    %806 = vmatpush1.bf16.msra.mxu0 0
    %807 = vmatprep.subr.bf16.mxu0 0
    %808 = vmatpush1.bf16.msra.mxu0 0
    %809 = vmatprep.subr.bf16.mxu0 0
    %810 = vmatpush1.bf16.msra.mxu0 0
    %811 = vmatprep.subr.bf16.mxu0 0
    %812 = vmatpush1.bf16.msra.mxu0 0
    %813 = vmatprep.subr.bf16.mxu0 0
    %814 = vmatpush1.bf16.msra.mxu0 0
    %815 = vmatprep.subr.bf16.mxu0 0
    %816 = vmatpush1.bf16.msra.mxu0 0
    %817 = vmatprep.subr.bf16.mxu0 0
    %818 = vmatpush1.bf16.msra.mxu0 0
    %819 = vmatprep.subr.bf16.mxu0 0
    %820 = vmatpush1.bf16.msra.mxu0 0
    %821 = vmatprep.mubr.bf16.mxu0 0
    %822 = vmatmul.mubr.bf16.gmra.mrb[0].mxu0 %v587
    %v823 = vpop.f32.mrb[0].mxu0
    %v824 = vadd.f32 0.0, %v823
    %v825 = vpop.f32.mrb[0].mxu0
    %v826 = vadd.f32 0.0, %v825
    %v827 = vpop.f32.mrb[0].mxu0
    %v828 = vpop.f32.mrb[0].mxu0
    %829 = vdwg.mxu0
    %v830 = vadd.f32 %v583, %v783
    %v831 = vadd.f32 %v584, %v785
    %v832 = vadd.f32 %v585, %v824
    %v833 = vadd.f32 %v586, %v826
    %v834 = vmul.f32 %v830, 0.5
    %v835 = vtanh.pop %v834
    %v836 = vmul.f32 %v835, 0.5
    %v837 = vadd.f32 %v836, 0.5
    %v838 = vmul.f32 %v831, 0.5
    %v839 = vtanh.pop %v838
    %v840 = vmul.f32 %v839, 0.5
    %v841 = vadd.f32 %v840, 0.5
    %v842 = vtanh.pop %v832
    %v843 = vmul.f32 %v833, 0.5
    %v844 = vtanh.pop %v843
    %v845 = vmul.f32 %v844, 0.5
    %v846 = vadd.f32 %v845, 0.5
    %v847 = vmul.f32 %v841, %v208
    %v848 = vmul.f32 %v837, %v842
    %v849 = vadd.f32 %v847, %v848
    %v850 = vtanh.pop %v849
    %v851 = vmul.f32 %v846, %v850
    %852 = vst [vmem:[#allocation3] sm:$0xff] %v851
    %s853 = smul.u32 1, 4
    %s854 = smul.addr %s853, 8
    %s855 = scalar_lea.vmem [#allocation2], %s854
    %v856 = vld [vmem:[%s855] sm:$0xff]
    %v857 = vld [vmem:[%s855 + $0x8] sm:$0xff]
    %v858 = vld [vmem:[%s855 + $0x10] sm:$0xff]
    %v859 = vld [vmem:[%s855 + $0x18] sm:$0xff]
    %v860 = vpack.c.bf16 %v851, %v851
    %861 = vmatprep.subr.bf16.mxu0 %v685
    %862 = vmatpush1.bf16.msra.mxu0 %v684
    %863 = vmatprep.subr.bf16.mxu0 %v689
    %864 = vmatpush1.bf16.msra.mxu0 %v688
    %865 = vmatprep.subr.bf16.mxu0 %v693
    %866 = vmatpush1.bf16.msra.mxu0 %v692
    %867 = vmatprep.subr.bf16.mxu0 %v697
    %868 = vmatpush1.bf16.msra.mxu0 %v696
    %869 = vmatprep.subr.bf16.mxu0 %v701
    %870 = vmatpush1.bf16.msra.mxu0 %v700
    %871 = vmatprep.subr.bf16.mxu0 %v705
    %872 = vmatpush1.bf16.msra.mxu0 %v704
    %873 = vmatprep.subr.bf16.mxu0 %v709
    %874 = vmatpush1.bf16.msra.mxu0 %v708
    %875 = vmatprep.subr.bf16.mxu0 %v713
    %876 = vmatpush1.bf16.msra.mxu0 %v712
    %877 = vmatprep.subr.bf16.mxu0 0
    %878 = vmatpush1.bf16.msra.mxu0 0
    %879 = vmatprep.subr.bf16.mxu0 0
    %880 = vmatpush1.bf16.msra.mxu0 0
    %881 = vmatprep.subr.bf16.mxu0 0
    %882 = vmatpush1.bf16.msra.mxu0 0
    %883 = vmatprep.subr.bf16.mxu0 0
    %884 = vmatpush1.bf16.msra.mxu0 0
    %885 = vmatprep.subr.bf16.mxu0 0
    %886 = vmatpush1.bf16.msra.mxu0 0
    %887 = vmatprep.subr.bf16.mxu0 0
    %888 = vmatpush1.bf16.msra.mxu0 0
    %889 = vmatprep.subr.bf16.mxu0 0
    %890 = vmatpush1.bf16.msra.mxu0 0
    %891 = vmatprep.subr.bf16.mxu0 0
    %892 = vmatpush1.bf16.msra.mxu0 0
    %893 = vmatprep.mubr.bf16.mxu0 0
    %894 = vmatmul.mubr.bf16.gmra.mrb[0].mxu0 %v860
    %v895 = vpop.f32.mrb[0].mxu0
    %v896 = vadd.f32 0.0, %v895
    %v897 = vpop.f32.mrb[0].mxu0
    %v898 = vadd.f32 0.0, %v897
    %v899 = vpop.f32.mrb[0].mxu0
    %v900 = vpop.f32.mrb[0].mxu0
    %901 = vdwg.mxu0
    %902 = vmatprep.subr.bf16.mxu0 %v687
    %903 = vmatpush1.bf16.msra.mxu0 %v686
    %904 = vmatprep.subr.bf16.mxu0 %v691
    %905 = vmatpush1.bf16.msra.mxu0 %v690
    %906 = vmatprep.subr.bf16.mxu0 %v695
    %907 = vmatpush1.bf16.msra.mxu0 %v694
    %908 = vmatprep.subr.bf16.mxu0 %v699
    %909 = vmatpush1.bf16.msra.mxu0 %v698
    %910 = vmatprep.subr.bf16.mxu0 %v703
    %911 = vmatpush1.bf16.msra.mxu0 %v702
    %912 = vmatprep.subr.bf16.mxu0 %v707
    %913 = vmatpush1.bf16.msra.mxu0 %v706
    %914 = vmatprep.subr.bf16.mxu0 %v711
    %915 = vmatpush1.bf16.msra.mxu0 %v710
    %916 = vmatprep.subr.bf16.mxu0 %v715
    %917 = vmatpush1.bf16.msra.mxu0 %v714
    %918 = vmatprep.subr.bf16.mxu0 0
    %919 = vmatpush1.bf16.msra.mxu0 0
    %920 = vmatprep.subr.bf16.mxu0 0
    %921 = vmatpush1.bf16.msra.mxu0 0
    %922 = vmatprep.subr.bf16.mxu0 0
    %923 = vmatpush1.bf16.msra.mxu0 0
    %924 = vmatprep.subr.bf16.mxu0 0
    %925 = vmatpush1.bf16.msra.mxu0 0
    %926 = vmatprep.subr.bf16.mxu0 0
    %927 = vmatpush1.bf16.msra.mxu0 0
    %928 = vmatprep.subr.bf16.mxu0 0
    %929 = vmatpush1.bf16.msra.mxu0 0
    %930 = vmatprep.subr.bf16.mxu0 0
    %931 = vmatpush1.bf16.msra.mxu0 0
    %932 = vmatprep.subr.bf16.mxu0 0
    %933 = vmatpush1.bf16.msra.mxu0 0
    %934 = vmatprep.mubr.bf16.mxu0 0
    %935 = vmatmul.mubr.bf16.gmra.mrb[0].mxu0 %v860
    %v936 = vpop.f32.mrb[0].mxu0
    %v937 = vadd.f32 0.0, %v936
    %v938 = vpop.f32.mrb[0].mxu0
    %v939 = vadd.f32 0.0, %v938
    %v940 = vpop.f32.mrb[0].mxu0
    %v941 = vpop.f32.mrb[0].mxu0
    %942 = vdwg.mxu0
    %v943 = vadd.f32 %v856, %v896
    %v944 = vadd.f32 %v857, %v898
    %v945 = vadd.f32 %v858, %v937
    %v946 = vadd.f32 %v859, %v939
    %v947 = vmul.f32 %v943, 0.5
    %v948 = vtanh.pop %v947
    %v949 = vmul.f32 %v948, 0.5
    %v950 = vadd.f32 %v949, 0.5
    %v951 = vmul.f32 %v944, 0.5
    %v952 = vtanh.pop %v951
    %v953 = vmul.f32 %v952, 0.5
    %v954 = vadd.f32 %v953, 0.5
    %v955 = vtanh.pop %v945
    %v956 = vmul.f32 %v946, 0.5
    %v957 = vtanh.pop %v956
    %v958 = vmul.f32 %v957, 0.5
    %v959 = vadd.f32 %v958, 0.5
    %v960 = vmul.f32 %v954, %v849
    %v961 = vmul.f32 %v950, %v955
    %v962 = vadd.f32 %v960, %v961
    %v963 = vtanh.pop %v962
    %v964 = vmul.f32 %v959, %v963
    %s965 = scalar_lea.vmem [#allocation3], 8
    %966 = vst [vmem:[%s965] sm:$0xff] %v964
    %s967 = smul.u32 2, 4
    %s968 = smul.addr %s967, 8
    %s969 = scalar_lea.vmem [#allocation2], %s968
    %v970 = vld [vmem:[%s969] sm:$0xff]
    %v971 = vld [vmem:[%s969 + $0x8] sm:$0xff]
    %v972 = vld [vmem:[%s969 + $0x10] sm:$0xff]
    %v973 = vld [vmem:[%s969 + $0x18] sm:$0xff]
    %v974 = vpack.c.bf16 %v964, %v964
    %975 = vmatprep.subr.bf16.mxu0 %v685
    %976 = vmatpush1.bf16.msra.mxu0 %v684
    %977 = vmatprep.subr.bf16.mxu0 %v689
    %978 = vmatpush1.bf16.msra.mxu0 %v688
    %979 = vmatprep.subr.bf16.mxu0 %v693
    %980 = vmatpush1.bf16.msra.mxu0 %v692
    %981 = vmatprep.subr.bf16.mxu0 %v697
    %982 = vmatpush1.bf16.msra.mxu0 %v696
    %983 = vmatprep.subr.bf16.mxu0 %v701
    %984 = vmatpush1.bf16.msra.mxu0 %v700
    %985 = vmatprep.subr.bf16.mxu0 %v705
    %986 = vmatpush1.bf16.msra.mxu0 %v704
    %987 = vmatprep.subr.bf16.mxu0 %v709
    %988 = vmatpush1.bf16.msra.mxu0 %v708
    %989 = vmatprep.subr.bf16.mxu0 %v713
    %990 = vmatpush1.bf16.msra.mxu0 %v712
    %991 = vmatprep.subr.bf16.mxu0 0
    %992 = vmatpush1.bf16.msra.mxu0 0
    %993 = vmatprep.subr.bf16.mxu0 0
    %994 = vmatpush1.bf16.msra.mxu0 0
    %995 = vmatprep.subr.bf16.mxu0 0
    %996 = vmatpush1.bf16.msra.mxu0 0
    %997 = vmatprep.subr.bf16.mxu0 0
    %998 = vmatpush1.bf16.msra.mxu0 0
    %999 = vmatprep.subr.bf16.mxu0 0
    %1000 = vmatpush1.bf16.msra.mxu0 0
    %1001 = vmatprep.subr.bf16.mxu0 0
    %1002 = vmatpush1.bf16.msra.mxu0 0
    %1003 = vmatprep.subr.bf16.mxu0 0
    %1004 = vmatpush1.bf16.msra.mxu0 0
    %1005 = vmatprep.subr.bf16.mxu0 0
    %1006 = vmatpush1.bf16.msra.mxu0 0
    %1007 = vmatprep.mubr.bf16.mxu0 0
    %1008 = vmatmul.mubr.bf16.gmra.mrb[0].mxu0 %v974
    %v1009 = vpop.f32.mrb[0].mxu0
    %v1010 = vadd.f32 0.0, %v1009
    %v1011 = vpop.f32.mrb[0].mxu0
    %v1012 = vadd.f32 0.0, %v1011
    %v1013 = vpop.f32.mrb[0].mxu0
    %v1014 = vpop.f32.mrb[0].mxu0
    %1015 = vdwg.mxu0
    %1016 = vmatprep.subr.bf16.mxu0 %v687
    %1017 = vmatpush1.bf16.msra.mxu0 %v686
    %1018 = vmatprep.subr.bf16.mxu0 %v691
    %1019 = vmatpush1.bf16.msra.mxu0 %v690
    %1020 = vmatprep.subr.bf16.mxu0 %v695
    %1021 = vmatpush1.bf16.msra.mxu0 %v694
    %1022 = vmatprep.subr.bf16.mxu0 %v699
    %1023 = vmatpush1.bf16.msra.mxu0 %v698
    %1024 = vmatprep.subr.bf16.mxu0 %v703
    %1025 = vmatpush1.bf16.msra.mxu0 %v702
    %1026 = vmatprep.subr.bf16.mxu0 %v707
    %1027 = vmatpush1.bf16.msra.mxu0 %v706
    %1028 = vmatprep.subr.bf16.mxu0 %v711
    %1029 = vmatpush1.bf16.msra.mxu0 %v710
    %1030 = vmatprep.subr.bf16.mxu0 %v715
    %1031 = vmatpush1.bf16.msra.mxu0 %v714
    %1032 = vmatprep.subr.bf16.mxu0 0
    %1033 = vmatpush1.bf16.msra.mxu0 0
    %1034 = vmatprep.subr.bf16.mxu0 0
    %1035 = vmatpush1.bf16.msra.mxu0 0
    %1036 = vmatprep.subr.bf16.mxu0 0
    %1037 = vmatpush1.bf16.msra.mxu0 0
    %1038 = vmatprep.subr.bf16.mxu0 0
    %1039 = vmatpush1.bf16.msra.mxu0 0
    %1040 = vmatprep.subr.bf16.mxu0 0
    %1041 = vmatpush1.bf16.msra.mxu0 0
    %1042 = vmatprep.subr.bf16.mxu0 0
    %1043 = vmatpush1.bf16.msra.mxu0 0
    %1044 = vmatprep.subr.bf16.mxu0 0
    %1045 = vmatpush1.bf16.msra.mxu0 0
    %1046 = vmatprep.subr.bf16.mxu0 0
    %1047 = vmatpush1.bf16.msra.mxu0 0
    %1048 = vmatprep.mubr.bf16.mxu0 0
    %1049 = vmatmul.mubr.bf16.gmra.mrb[0].mxu0 %v974
    %v1050 = vpop.f32.mrb[0].mxu0
    %v1051 = vadd.f32 0.0, %v1050
    %v1052 = vpop.f32.mrb[0].mxu0
    %v1053 = vadd.f32 0.0, %v1052
    %v1054 = vpop.f32.mrb[0].mxu0
    %v1055 = vpop.f32.mrb[0].mxu0
    %1056 = vdwg.mxu0
    %v1057 = vadd.f32 %v970, %v1010
    %v1058 = vadd.f32 %v971, %v1012
    %v1059 = vadd.f32 %v972, %v1051
    %v1060 = vadd.f32 %v973, %v1053
    %v1061 = vmul.f32 %v1057, 0.5
    %v1062 = vtanh.pop %v1061
    %v1063 = vmul.f32 %v1062, 0.5
    %v1064 = vadd.f32 %v1063, 0.5
    %v1065 = vmul.f32 %v1058, 0.5
    %v1066 = vtanh.pop %v1065
    %v1067 = vmul.f32 %v1066, 0.5
    %v1068 = vadd.f32 %v1067, 0.5
    %v1069 = vtanh.pop %v1059
    %v1070 = vmul.f32 %v1060, 0.5
    %v1071 = vtanh.pop %v1070
    %v1072 = vmul.f32 %v1071, 0.5
    %v1073 = vadd.f32 %v1072, 0.5
    %v1074 = vmul.f32 %v1068, %v962
    %v1075 = vmul.f32 %v1064, %v1069
    %v1076 = vadd.f32 %v1074, %v1075
    %v1077 = vtanh.pop %v1076
    %v1078 = vmul.f32 %v1073, %v1077
    %s1079 = scalar_lea.vmem [#allocation3], 16
    %1080 = vst [vmem:[%s1079] sm:$0xff] %v1078
    %s1081 = smul.u32 3, 4
    %s1082 = smul.addr %s1081, 8
    %s1083 = scalar_lea.vmem [#allocation2], %s1082
    %v1084 = vld [vmem:[%s1083] sm:$0xff]
    %v1085 = vld [vmem:[%s1083 + $0x8] sm:$0xff]
    %v1086 = vld [vmem:[%s1083 + $0x10] sm:$0xff]
    %v1087 = vld [vmem:[%s1083 + $0x18] sm:$0xff]
    %v1088 = vpack.c.bf16 %v1078, %v1078
    %1089 = vmatprep.subr.bf16.mxu0 %v685
    %1090 = vmatpush1.bf16.msra.mxu0 %v684
    %1091 = vmatprep.subr.bf16.mxu0 %v689
    %1092 = vmatpush1.bf16.msra.mxu0 %v688
    %1093 = vmatprep.subr.bf16.mxu0 %v693
    %1094 = vmatpush1.bf16.msra.mxu0 %v692
    %1095 = vmatprep.subr.bf16.mxu0 %v697
    %1096 = vmatpush1.bf16.msra.mxu0 %v696
    %1097 = vmatprep.subr.bf16.mxu0 %v701
    %1098 = vmatpush1.bf16.msra.mxu0 %v700
    %1099 = vmatprep.subr.bf16.mxu0 %v705
    %1100 = vmatpush1.bf16.msra.mxu0 %v704
    %1101 = vmatprep.subr.bf16.mxu0 %v709
    %1102 = vmatpush1.bf16.msra.mxu0 %v708
    %1103 = vmatprep.subr.bf16.mxu0 %v713
    %1104 = vmatpush1.bf16.msra.mxu0 %v712
    %1105 = vmatprep.subr.bf16.mxu0 0
    %1106 = vmatpush1.bf16.msra.mxu0 0
    %1107 = vmatprep.subr.bf16.mxu0 0
    %1108 = vmatpush1.bf16.msra.mxu0 0
    %1109 = vmatprep.subr.bf16.mxu0 0
    %1110 = vmatpush1.bf16.msra.mxu0 0
    %1111 = vmatprep.subr.bf16.mxu0 0
    %1112 = vmatpush1.bf16.msra.mxu0 0
    %1113 = vmatprep.subr.bf16.mxu0 0
    %1114 = vmatpush1.bf16.msra.mxu0 0
    %1115 = vmatprep.subr.bf16.mxu0 0
    %1116 = vmatpush1.bf16.msra.mxu0 0
    %1117 = vmatprep.subr.bf16.mxu0 0
    %1118 = vmatpush1.bf16.msra.mxu0 0
    %1119 = vmatprep.subr.bf16.mxu0 0
    %1120 = vmatpush1.bf16.msra.mxu0 0
    %1121 = vmatprep.mubr.bf16.mxu0 0
    %1122 = vmatmul.mubr.bf16.gmra.mrb[0].mxu0 %v1088
    %v1123 = vpop.f32.mrb[0].mxu0
    %v1124 = vadd.f32 0.0, %v1123
    %v1125 = vpop.f32.mrb[0].mxu0
    %v1126 = vadd.f32 0.0, %v1125
    %v1127 = vpop.f32.mrb[0].mxu0
    %v1128 = vpop.f32.mrb[0].mxu0
    %1129 = vdwg.mxu0
    %1130 = vmatprep.subr.bf16.mxu0 %v687
    %1131 = vmatpush1.bf16.msra.mxu0 %v686
    %1132 = vmatprep.subr.bf16.mxu0 %v691
    %1133 = vmatpush1.bf16.msra.mxu0 %v690
    %1134 = vmatprep.subr.bf16.mxu0 %v695
    %1135 = vmatpush1.bf16.msra.mxu0 %v694
    %1136 = vmatprep.subr.bf16.mxu0 %v699
    %1137 = vmatpush1.bf16.msra.mxu0 %v698
    %1138 = vmatprep.subr.bf16.mxu0 %v703
    %1139 = vmatpush1.bf16.msra.mxu0 %v702
    %1140 = vmatprep.subr.bf16.mxu0 %v707
    %1141 = vmatpush1.bf16.msra.mxu0 %v706
    %1142 = vmatprep.subr.bf16.mxu0 %v711
    %1143 = vmatpush1.bf16.msra.mxu0 %v710
    %1144 = vmatprep.subr.bf16.mxu0 %v715
    %1145 = vmatpush1.bf16.msra.mxu0 %v714
    %1146 = vmatprep.subr.bf16.mxu0 0
    %1147 = vmatpush1.bf16.msra.mxu0 0
    %1148 = vmatprep.subr.bf16.mxu0 0
    %1149 = vmatpush1.bf16.msra.mxu0 0
    %1150 = vmatprep.subr.bf16.mxu0 0
    %1151 = vmatpush1.bf16.msra.mxu0 0
    %1152 = vmatprep.subr.bf16.mxu0 0
    %1153 = vmatpush1.bf16.msra.mxu0 0
    %1154 = vmatprep.subr.bf16.mxu0 0
    %1155 = vmatpush1.bf16.msra.mxu0 0
    %1156 = vmatprep.subr.bf16.mxu0 0
    %1157 = vmatpush1.bf16.msra.mxu0 0
    %1158 = vmatprep.subr.bf16.mxu0 0
    %1159 = vmatpush1.bf16.msra.mxu0 0
    %1160 = vmatprep.subr.bf16.mxu0 0
    %1161 = vmatpush1.bf16.msra.mxu0 0
    %1162 = vmatprep.mubr.bf16.mxu0 0
    %1163 = vmatmul.mubr.bf16.gmra.mrb[0].mxu0 %v1088
    %v1164 = vpop.f32.mrb[0].mxu0
    %v1165 = vadd.f32 0.0, %v1164
    %v1166 = vpop.f32.mrb[0].mxu0
    %v1167 = vadd.f32 0.0, %v1166
    %v1168 = vpop.f32.mrb[0].mxu0
    %v1169 = vpop.f32.mrb[0].mxu0
    %1170 = vdwg.mxu0
    %v1171 = vadd.f32 %v1084, %v1124
    %v1172 = vadd.f32 %v1085, %v1126
    %v1173 = vadd.f32 %v1086, %v1165
    %v1174 = vadd.f32 %v1087, %v1167
    %v1175 = vmul.f32 %v1171, 0.5
    %v1176 = vtanh.pop %v1175
    %v1177 = vmul.f32 %v1176, 0.5
    %v1178 = vadd.f32 %v1177, 0.5
    %v1179 = vmul.f32 %v1172, 0.5
    %v1180 = vtanh.pop %v1179
    %v1181 = vmul.f32 %v1180, 0.5
    %v1182 = vadd.f32 %v1181, 0.5
    %v1183 = vtanh.pop %v1173
    %v1184 = vmul.f32 %v1174, 0.5
    %v1185 = vtanh.pop %v1184
    %v1186 = vmul.f32 %v1185, 0.5
    %v1187 = vadd.f32 %v1186, 0.5
    %v1188 = vmul.f32 %v1182, %v1076
    %v1189 = vmul.f32 %v1178, %v1183
    %v1190 = vadd.f32 %v1188, %v1189
    %v1191 = vtanh.pop %v1190
    %v1192 = vmul.f32 %v1187, %v1191
    %s1193 = scalar_lea.vmem [#allocation3], 24
    %1194 = vst [vmem:[%s1193] sm:$0xff] %v1192
    %s1195 = smul.u32 4, 4
    %s1196 = smul.addr %s1195, 8
    %s1197 = scalar_lea.vmem [#allocation2], %s1196
    %v1198 = vld [vmem:[%s1197] sm:$0xff]
    %v1199 = vld [vmem:[%s1197 + $0x8] sm:$0xff]
    %v1200 = vld [vmem:[%s1197 + $0x10] sm:$0xff]
    %v1201 = vld [vmem:[%s1197 + $0x18] sm:$0xff]
    %v1202 = vpack.c.bf16 %v1192, %v1192
    %1203 = vmatprep.subr.bf16.mxu0 %v685
    %1204 = vmatpush1.bf16.msra.mxu0 %v684
    %1205 = vmatprep.subr.bf16.mxu0 %v689
    %1206 = vmatpush1.bf16.msra.mxu0 %v688
    %1207 = vmatprep.subr.bf16.mxu0 %v693
    %1208 = vmatpush1.bf16.msra.mxu0 %v692
    %1209 = vmatprep.subr.bf16.mxu0 %v697
    %1210 = vmatpush1.bf16.msra.mxu0 %v696
    %1211 = vmatprep.subr.bf16.mxu0 %v701
    %1212 = vmatpush1.bf16.msra.mxu0 %v700
    %1213 = vmatprep.subr.bf16.mxu0 %v705
    %1214 = vmatpush1.bf16.msra.mxu0 %v704
    %1215 = vmatprep.subr.bf16.mxu0 %v709
    %1216 = vmatpush1.bf16.msra.mxu0 %v708
    %1217 = vmatprep.subr.bf16.mxu0 %v713
    %1218 = vmatpush1.bf16.msra.mxu0 %v712
    %1219 = vmatprep.subr.bf16.mxu0 0
    %1220 = vmatpush1.bf16.msra.mxu0 0
    %1221 = vmatprep.subr.bf16.mxu0 0
    %1222 = vmatpush1.bf16.msra.mxu0 0
    %1223 = vmatprep.subr.bf16.mxu0 0
    %1224 = vmatpush1.bf16.msra.mxu0 0
    %1225 = vmatprep.subr.bf16.mxu0 0
    %1226 = vmatpush1.bf16.msra.mxu0 0
    %1227 = vmatprep.subr.bf16.mxu0 0
    %1228 = vmatpush1.bf16.msra.mxu0 0
    %1229 = vmatprep.subr.bf16.mxu0 0
    %1230 = vmatpush1.bf16.msra.mxu0 0
    %1231 = vmatprep.subr.bf16.mxu0 0
    %1232 = vmatpush1.bf16.msra.mxu0 0
    %1233 = vmatprep.subr.bf16.mxu0 0
    %1234 = vmatpush1.bf16.msra.mxu0 0
    %1235 = vmatprep.mubr.bf16.mxu0 0
    %1236 = vmatmul.mubr.bf16.gmra.mrb[0].mxu0 %v1202
    %v1237 = vpop.f32.mrb[0].mxu0
    %v1238 = vadd.f32 0.0, %v1237
    %v1239 = vpop.f32.mrb[0].mxu0
    %v1240 = vadd.f32 0.0, %v1239
    %v1241 = vpop.f32.mrb[0].mxu0
    %v1242 = vpop.f32.mrb[0].mxu0
    %1243 = vdwg.mxu0
    %1244 = vmatprep.subr.bf16.mxu0 %v687
    %1245 = vmatpush1.bf16.msra.mxu0 %v686
    %1246 = vmatprep.subr.bf16.mxu0 %v691
    %1247 = vmatpush1.bf16.msra.mxu0 %v690
    %1248 = vmatprep.subr.bf16.mxu0 %v695
    %1249 = vmatpush1.bf16.msra.mxu0 %v694
    %1250 = vmatprep.subr.bf16.mxu0 %v699
    %1251 = vmatpush1.bf16.msra.mxu0 %v698
    %1252 = vmatprep.subr.bf16.mxu0 %v703
    %1253 = vmatpush1.bf16.msra.mxu0 %v702
    %1254 = vmatprep.subr.bf16.mxu0 %v707
    %1255 = vmatpush1.bf16.msra.mxu0 %v706
    %1256 = vmatprep.subr.bf16.mxu0 %v711
    %1257 = vmatpush1.bf16.msra.mxu0 %v710
    %1258 = vmatprep.subr.bf16.mxu0 %v715
    %1259 = vmatpush1.bf16.msra.mxu0 %v714
    %1260 = vmatprep.subr.bf16.mxu0 0
    %1261 = vmatpush1.bf16.msra.mxu0 0
    %1262 = vmatprep.subr.bf16.mxu0 0
    %1263 = vmatpush1.bf16.msra.mxu0 0
    %1264 = vmatprep.subr.bf16.mxu0 0
    %1265 = vmatpush1.bf16.msra.mxu0 0
    %1266 = vmatprep.subr.bf16.mxu0 0
    %1267 = vmatpush1.bf16.msra.mxu0 0
    %1268 = vmatprep.subr.bf16.mxu0 0
    %1269 = vmatpush1.bf16.msra.mxu0 0
    %1270 = vmatprep.subr.bf16.mxu0 0
    %1271 = vmatpush1.bf16.msra.mxu0 0
    %1272 = vmatprep.subr.bf16.mxu0 0
    %1273 = vmatpush1.bf16.msra.mxu0 0
    %1274 = vmatprep.subr.bf16.mxu0 0
    %1275 = vmatpush1.bf16.msra.mxu0 0
    %1276 = vmatprep.mubr.bf16.mxu0 0
    %1277 = vmatmul.mubr.bf16.gmra.mrb[0].mxu0 %v1202
    %v1278 = vpop.f32.mrb[0].mxu0
    %v1279 = vadd.f32 0.0, %v1278
    %v1280 = vpop.f32.mrb[0].mxu0
    %v1281 = vadd.f32 0.0, %v1280
    %v1282 = vpop.f32.mrb[0].mxu0
    %v1283 = vpop.f32.mrb[0].mxu0
    %1284 = vdwg.mxu0
    %v1285 = vadd.f32 %v1198, %v1238
    %v1286 = vadd.f32 %v1199, %v1240
    %v1287 = vadd.f32 %v1200, %v1279
    %v1288 = vadd.f32 %v1201, %v1281
    %v1289 = vmul.f32 %v1285, 0.5
    %v1290 = vtanh.pop %v1289
    %v1291 = vmul.f32 %v1290, 0.5
    %v1292 = vadd.f32 %v1291, 0.5
    %v1293 = vmul.f32 %v1286, 0.5
    %v1294 = vtanh.pop %v1293
    %v1295 = vmul.f32 %v1294, 0.5
    %v1296 = vadd.f32 %v1295, 0.5
    %v1297 = vtanh.pop %v1287
    %v1298 = vmul.f32 %v1288, 0.5
    %v1299 = vtanh.pop %v1298
    %v1300 = vmul.f32 %v1299, 0.5
    %v1301 = vadd.f32 %v1300, 0.5
    %v1302 = vmul.f32 %v1296, %v1190
    %v1303 = vmul.f32 %v1292, %v1297
    %v1304 = vadd.f32 %v1302, %v1303
    %v1305 = vtanh.pop %v1304
    %v1306 = vmul.f32 %v1301, %v1305
    %s1307 = scalar_lea.vmem [#allocation3], 32
    %1308 = vst [vmem:[%s1307] sm:$0xff] %v1306
    %s1309 = smul.u32 5, 4
    %s1310 = smul.addr %s1309, 8
    %s1311 = scalar_lea.vmem [#allocation2], %s1310
    %v1312 = vld [vmem:[%s1311] sm:$0xff]
    %v1313 = vld [vmem:[%s1311 + $0x8] sm:$0xff]
    %v1314 = vld [vmem:[%s1311 + $0x10] sm:$0xff]
    %v1315 = vld [vmem:[%s1311 + $0x18] sm:$0xff]
    %v1316 = vpack.c.bf16 %v1306, %v1306
    %1317 = vmatprep.subr.bf16.mxu0 %v685
    %1318 = vmatpush1.bf16.msra.mxu0 %v684
    %1319 = vmatprep.subr.bf16.mxu0 %v689
    %1320 = vmatpush1.bf16.msra.mxu0 %v688
    %1321 = vmatprep.subr.bf16.mxu0 %v693
    %1322 = vmatpush1.bf16.msra.mxu0 %v692
    %1323 = vmatprep.subr.bf16.mxu0 %v697
    %1324 = vmatpush1.bf16.msra.mxu0 %v696
    %1325 = vmatprep.subr.bf16.mxu0 %v701
    %1326 = vmatpush1.bf16.msra.mxu0 %v700
    %1327 = vmatprep.subr.bf16.mxu0 %v705
    %1328 = vmatpush1.bf16.msra.mxu0 %v704
    %1329 = vmatprep.subr.bf16.mxu0 %v709
    %1330 = vmatpush1.bf16.msra.mxu0 %v708
    %1331 = vmatprep.subr.bf16.mxu0 %v713
    %1332 = vmatpush1.bf16.msra.mxu0 %v712
    %1333 = vmatprep.subr.bf16.mxu0 0
    %1334 = vmatpush1.bf16.msra.mxu0 0
    %1335 = vmatprep.subr.bf16.mxu0 0
    %1336 = vmatpush1.bf16.msra.mxu0 0
    %1337 = vmatprep.subr.bf16.mxu0 0
    %1338 = vmatpush1.bf16.msra.mxu0 0
    %1339 = vmatprep.subr.bf16.mxu0 0
    %1340 = vmatpush1.bf16.msra.mxu0 0
    %1341 = vmatprep.subr.bf16.mxu0 0
    %1342 = vmatpush1.bf16.msra.mxu0 0
    %1343 = vmatprep.subr.bf16.mxu0 0
    %1344 = vmatpush1.bf16.msra.mxu0 0
    %1345 = vmatprep.subr.bf16.mxu0 0
    %1346 = vmatpush1.bf16.msra.mxu0 0
    %1347 = vmatprep.subr.bf16.mxu0 0
    %1348 = vmatpush1.bf16.msra.mxu0 0
    %1349 = vmatprep.mubr.bf16.mxu0 0
    %1350 = vmatmul.mubr.bf16.gmra.mrb[0].mxu0 %v1316
    %v1351 = vpop.f32.mrb[0].mxu0
    %v1352 = vadd.f32 0.0, %v1351
    %v1353 = vpop.f32.mrb[0].mxu0
    %v1354 = vadd.f32 0.0, %v1353
    %v1355 = vpop.f32.mrb[0].mxu0
    %v1356 = vpop.f32.mrb[0].mxu0
    %1357 = vdwg.mxu0
    %1358 = vmatprep.subr.bf16.mxu0 %v687
    %1359 = vmatpush1.bf16.msra.mxu0 %v686
    %1360 = vmatprep.subr.bf16.mxu0 %v691
    %1361 = vmatpush1.bf16.msra.mxu0 %v690
    %1362 = vmatprep.subr.bf16.mxu0 %v695
    %1363 = vmatpush1.bf16.msra.mxu0 %v694
    %1364 = vmatprep.subr.bf16.mxu0 %v699
    %1365 = vmatpush1.bf16.msra.mxu0 %v698
    %1366 = vmatprep.subr.bf16.mxu0 %v703
    %1367 = vmatpush1.bf16.msra.mxu0 %v702
    %1368 = vmatprep.subr.bf16.mxu0 %v707
    %1369 = vmatpush1.bf16.msra.mxu0 %v706
    %1370 = vmatprep.subr.bf16.mxu0 %v711
    %1371 = vmatpush1.bf16.msra.mxu0 %v710
    %1372 = vmatprep.subr.bf16.mxu0 %v715
    %1373 = vmatpush1.bf16.msra.mxu0 %v714
    %1374 = vmatprep.subr.bf16.mxu0 0
    %1375 = vmatpush1.bf16.msra.mxu0 0
    %1376 = vmatprep.subr.bf16.mxu0 0
    %1377 = vmatpush1.bf16.msra.mxu0 0
    %1378 = vmatprep.subr.bf16.mxu0 0
    %1379 = vmatpush1.bf16.msra.mxu0 0
    %1380 = vmatprep.subr.bf16.mxu0 0
    %1381 = vmatpush1.bf16.msra.mxu0 0
    %1382 = vmatprep.subr.bf16.mxu0 0
    %1383 = vmatpush1.bf16.msra.mxu0 0
    %1384 = vmatprep.subr.bf16.mxu0 0
    %1385 = vmatpush1.bf16.msra.mxu0 0
    %1386 = vmatprep.subr.bf16.mxu0 0
    %1387 = vmatpush1.bf16.msra.mxu0 0
    %1388 = vmatprep.subr.bf16.mxu0 0
    %1389 = vmatpush1.bf16.msra.mxu0 0
    %1390 = vmatprep.mubr.bf16.mxu0 0
    %1391 = vmatmul.mubr.bf16.gmra.mrb[0].mxu0 %v1316
    %v1392 = vpop.f32.mrb[0].mxu0
    %v1393 = vadd.f32 0.0, %v1392
    %v1394 = vpop.f32.mrb[0].mxu0
    %v1395 = vadd.f32 0.0, %v1394
    %v1396 = vpop.f32.mrb[0].mxu0
    %v1397 = vpop.f32.mrb[0].mxu0
    %1398 = vdwg.mxu0
    %v1399 = vadd.f32 %v1312, %v1352
    %v1400 = vadd.f32 %v1313, %v1354
    %v1401 = vadd.f32 %v1314, %v1393
    %v1402 = vadd.f32 %v1315, %v1395
    %v1403 = vmul.f32 %v1399, 0.5
    %v1404 = vtanh.pop %v1403
    %v1405 = vmul.f32 %v1404, 0.5
    %v1406 = vadd.f32 %v1405, 0.5
    %v1407 = vmul.f32 %v1400, 0.5
    %v1408 = vtanh.pop %v1407
    %v1409 = vmul.f32 %v1408, 0.5
    %v1410 = vadd.f32 %v1409, 0.5
    %v1411 = vtanh.pop %v1401
    %v1412 = vmul.f32 %v1402, 0.5
    %v1413 = vtanh.pop %v1412
    %v1414 = vmul.f32 %v1413, 0.5
    %v1415 = vadd.f32 %v1414, 0.5
    %v1416 = vmul.f32 %v1410, %v1304
    %v1417 = vmul.f32 %v1406, %v1411
    %v1418 = vadd.f32 %v1416, %v1417
    %v1419 = vtanh.pop %v1418
    %v1420 = vmul.f32 %v1415, %v1419
    %s1421 = scalar_lea.vmem [#allocation3], 40
    %1422 = vst [vmem:[%s1421] sm:$0xff] %v1420
    %s1423 = smul.u32 6, 4
    %s1424 = smul.addr %s1423, 8
    %s1425 = scalar_lea.vmem [#allocation2], %s1424
    %v1426 = vld [vmem:[%s1425] sm:$0xff]
    %v1427 = vld [vmem:[%s1425 + $0x8] sm:$0xff]
    %v1428 = vld [vmem:[%s1425 + $0x10] sm:$0xff]
    %v1429 = vld [vmem:[%s1425 + $0x18] sm:$0xff]
    %v1430 = vpack.c.bf16 %v1420, %v1420
    %1431 = vmatprep.subr.bf16.mxu0 %v685
    %1432 = vmatpush1.bf16.msra.mxu0 %v684
    %1433 = vmatprep.subr.bf16.mxu0 %v689
    %1434 = vmatpush1.bf16.msra.mxu0 %v688
    %1435 = vmatprep.subr.bf16.mxu0 %v693
    %1436 = vmatpush1.bf16.msra.mxu0 %v692
    %1437 = vmatprep.subr.bf16.mxu0 %v697
    %1438 = vmatpush1.bf16.msra.mxu0 %v696
    %1439 = vmatprep.subr.bf16.mxu0 %v701
    %1440 = vmatpush1.bf16.msra.mxu0 %v700
    %1441 = vmatprep.subr.bf16.mxu0 %v705
    %1442 = vmatpush1.bf16.msra.mxu0 %v704
    %1443 = vmatprep.subr.bf16.mxu0 %v709
    %1444 = vmatpush1.bf16.msra.mxu0 %v708
    %1445 = vmatprep.subr.bf16.mxu0 %v713
    %1446 = vmatpush1.bf16.msra.mxu0 %v712
    %1447 = vmatprep.subr.bf16.mxu0 0
    %1448 = vmatpush1.bf16.msra.mxu0 0
    %1449 = vmatprep.subr.bf16.mxu0 0
    %1450 = vmatpush1.bf16.msra.mxu0 0
    %1451 = vmatprep.subr.bf16.mxu0 0
    %1452 = vmatpush1.bf16.msra.mxu0 0
    %1453 = vmatprep.subr.bf16.mxu0 0
    %1454 = vmatpush1.bf16.msra.mxu0 0
    %1455 = vmatprep.subr.bf16.mxu0 0
    %1456 = vmatpush1.bf16.msra.mxu0 0
    %1457 = vmatprep.subr.bf16.mxu0 0
    %1458 = vmatpush1.bf16.msra.mxu0 0
    %1459 = vmatprep.subr.bf16.mxu0 0
    %1460 = vmatpush1.bf16.msra.mxu0 0
    %1461 = vmatprep.subr.bf16.mxu0 0
    %1462 = vmatpush1.bf16.msra.mxu0 0
    %1463 = vmatprep.mubr.bf16.mxu0 0
    %1464 = vmatmul.mubr.bf16.gmra.mrb[0].mxu0 %v1430
    %v1465 = vpop.f32.mrb[0].mxu0
    %v1466 = vadd.f32 0.0, %v1465
    %v1467 = vpop.f32.mrb[0].mxu0
    %v1468 = vadd.f32 0.0, %v1467
    %v1469 = vpop.f32.mrb[0].mxu0
    %v1470 = vpop.f32.mrb[0].mxu0
    %1471 = vdwg.mxu0
    %1472 = vmatprep.subr.bf16.mxu0 %v687
    %1473 = vmatpush1.bf16.msra.mxu0 %v686
    %1474 = vmatprep.subr.bf16.mxu0 %v691
    %1475 = vmatpush1.bf16.msra.mxu0 %v690
    %1476 = vmatprep.subr.bf16.mxu0 %v695
    %1477 = vmatpush1.bf16.msra.mxu0 %v694
    %1478 = vmatprep.subr.bf16.mxu0 %v699
    %1479 = vmatpush1.bf16.msra.mxu0 %v698
    %1480 = vmatprep.subr.bf16.mxu0 %v703
    %1481 = vmatpush1.bf16.msra.mxu0 %v702
    %1482 = vmatprep.subr.bf16.mxu0 %v707
    %1483 = vmatpush1.bf16.msra.mxu0 %v706
    %1484 = vmatprep.subr.bf16.mxu0 %v711
    %1485 = vmatpush1.bf16.msra.mxu0 %v710
    %1486 = vmatprep.subr.bf16.mxu0 %v715
    %1487 = vmatpush1.bf16.msra.mxu0 %v714
    %1488 = vmatprep.subr.bf16.mxu0 0
    %1489 = vmatpush1.bf16.msra.mxu0 0
    %1490 = vmatprep.subr.bf16.mxu0 0
    %1491 = vmatpush1.bf16.msra.mxu0 0
    %1492 = vmatprep.subr.bf16.mxu0 0
    %1493 = vmatpush1.bf16.msra.mxu0 0
    %1494 = vmatprep.subr.bf16.mxu0 0
    %1495 = vmatpush1.bf16.msra.mxu0 0
    %1496 = vmatprep.subr.bf16.mxu0 0
    %1497 = vmatpush1.bf16.msra.mxu0 0
    %1498 = vmatprep.subr.bf16.mxu0 0
    %1499 = vmatpush1.bf16.msra.mxu0 0
    %1500 = vmatprep.subr.bf16.mxu0 0
    %1501 = vmatpush1.bf16.msra.mxu0 0
    %1502 = vmatprep.subr.bf16.mxu0 0
    %1503 = vmatpush1.bf16.msra.mxu0 0
    %1504 = vmatprep.mubr.bf16.mxu0 0
    %1505 = vmatmul.mubr.bf16.gmra.mrb[0].mxu0 %v1430
    %v1506 = vpop.f32.mrb[0].mxu0
    %v1507 = vadd.f32 0.0, %v1506
    %v1508 = vpop.f32.mrb[0].mxu0
    %v1509 = vadd.f32 0.0, %v1508
    %v1510 = vpop.f32.mrb[0].mxu0
    %v1511 = vpop.f32.mrb[0].mxu0
    %1512 = vdwg.mxu0
    %v1513 = vadd.f32 %v1426, %v1466
    %v1514 = vadd.f32 %v1427, %v1468
    %v1515 = vadd.f32 %v1428, %v1507
    %v1516 = vadd.f32 %v1429, %v1509
    %v1517 = vmul.f32 %v1513, 0.5
    %v1518 = vtanh.pop %v1517
    %v1519 = vmul.f32 %v1518, 0.5
    %v1520 = vadd.f32 %v1519, 0.5
    %v1521 = vmul.f32 %v1514, 0.5
    %v1522 = vtanh.pop %v1521
    %v1523 = vmul.f32 %v1522, 0.5
    %v1524 = vadd.f32 %v1523, 0.5
    %v1525 = vtanh.pop %v1515
    %v1526 = vmul.f32 %v1516, 0.5
    %v1527 = vtanh.pop %v1526
    %v1528 = vmul.f32 %v1527, 0.5
    %v1529 = vadd.f32 %v1528, 0.5
    %v1530 = vmul.f32 %v1524, %v1418
    %v1531 = vmul.f32 %v1520, %v1525
    %v1532 = vadd.f32 %v1530, %v1531
    %v1533 = vtanh.pop %v1532
    %v1534 = vmul.f32 %v1529, %v1533
    %s1535 = scalar_lea.vmem [#allocation3], 48
    %1536 = vst [vmem:[%s1535] sm:$0xff] %v1534
    %s1537 = smul.u32 7, 4
    %s1538 = smul.addr %s1537, 8
    %s1539 = scalar_lea.vmem [#allocation2], %s1538
    %v1540 = vld [vmem:[%s1539] sm:$0xff]
    %v1541 = vld [vmem:[%s1539 + $0x8] sm:$0xff]
    %v1542 = vld [vmem:[%s1539 + $0x10] sm:$0xff]
    %v1543 = vld [vmem:[%s1539 + $0x18] sm:$0xff]
    %v1544 = vpack.c.bf16 %v1534, %v1534
    %1545 = vmatprep.subr.bf16.mxu0 %v685
    %1546 = vmatpush1.bf16.msra.mxu0 %v684
    %1547 = vmatprep.subr.bf16.mxu0 %v689
    %1548 = vmatpush1.bf16.msra.mxu0 %v688
    %1549 = vmatprep.subr.bf16.mxu0 %v693
    %1550 = vmatpush1.bf16.msra.mxu0 %v692
    %1551 = vmatprep.subr.bf16.mxu0 %v697
    %1552 = vmatpush1.bf16.msra.mxu0 %v696
    %1553 = vmatprep.subr.bf16.mxu0 %v701
    %1554 = vmatpush1.bf16.msra.mxu0 %v700
    %1555 = vmatprep.subr.bf16.mxu0 %v705
    %1556 = vmatpush1.bf16.msra.mxu0 %v704
    %1557 = vmatprep.subr.bf16.mxu0 %v709
    %1558 = vmatpush1.bf16.msra.mxu0 %v708
    %1559 = vmatprep.subr.bf16.mxu0 %v713
    %1560 = vmatpush1.bf16.msra.mxu0 %v712
    %1561 = vmatprep.subr.bf16.mxu0 0
    %1562 = vmatpush1.bf16.msra.mxu0 0
    %1563 = vmatprep.subr.bf16.mxu0 0
    %1564 = vmatpush1.bf16.msra.mxu0 0
    %1565 = vmatprep.subr.bf16.mxu0 0
    %1566 = vmatpush1.bf16.msra.mxu0 0
    %1567 = vmatprep.subr.bf16.mxu0 0
    %1568 = vmatpush1.bf16.msra.mxu0 0
    %1569 = vmatprep.subr.bf16.mxu0 0
    %1570 = vmatpush1.bf16.msra.mxu0 0
    %1571 = vmatprep.subr.bf16.mxu0 0
    %1572 = vmatpush1.bf16.msra.mxu0 0
    %1573 = vmatprep.subr.bf16.mxu0 0
    %1574 = vmatpush1.bf16.msra.mxu0 0
    %1575 = vmatprep.subr.bf16.mxu0 0
    %1576 = vmatpush1.bf16.msra.mxu0 0
    %1577 = vmatprep.mubr.bf16.mxu0 0
    %1578 = vmatmul.mubr.bf16.gmra.mrb[0].mxu0 %v1544
    %v1579 = vpop.f32.mrb[0].mxu0
    %v1580 = vadd.f32 0.0, %v1579
    %v1581 = vpop.f32.mrb[0].mxu0
    %v1582 = vadd.f32 0.0, %v1581
    %v1583 = vpop.f32.mrb[0].mxu0
    %v1584 = vpop.f32.mrb[0].mxu0
    %1585 = vdwg.mxu0
    %1586 = vmatprep.subr.bf16.mxu0 %v687
    %1587 = vmatpush1.bf16.msra.mxu0 %v686
    %1588 = vmatprep.subr.bf16.mxu0 %v691
    %1589 = vmatpush1.bf16.msra.mxu0 %v690
    %1590 = vmatprep.subr.bf16.mxu0 %v695
    %1591 = vmatpush1.bf16.msra.mxu0 %v694
    %1592 = vmatprep.subr.bf16.mxu0 %v699
    %1593 = vmatpush1.bf16.msra.mxu0 %v698
    %1594 = vmatprep.subr.bf16.mxu0 %v703
    %1595 = vmatpush1.bf16.msra.mxu0 %v702
    %1596 = vmatprep.subr.bf16.mxu0 %v707
    %1597 = vmatpush1.bf16.msra.mxu0 %v706
    %1598 = vmatprep.subr.bf16.mxu0 %v711
    %1599 = vmatpush1.bf16.msra.mxu0 %v710
    %1600 = vmatprep.subr.bf16.mxu0 %v715
    %1601 = vmatpush1.bf16.msra.mxu0 %v714
    %1602 = vmatprep.subr.bf16.mxu0 0
    %1603 = vmatpush1.bf16.msra.mxu0 0
    %1604 = vmatprep.subr.bf16.mxu0 0
    %1605 = vmatpush1.bf16.msra.mxu0 0
    %1606 = vmatprep.subr.bf16.mxu0 0
    %1607 = vmatpush1.bf16.msra.mxu0 0
    %1608 = vmatprep.subr.bf16.mxu0 0
    %1609 = vmatpush1.bf16.msra.mxu0 0
    %1610 = vmatprep.subr.bf16.mxu0 0
    %1611 = vmatpush1.bf16.msra.mxu0 0
    %1612 = vmatprep.subr.bf16.mxu0 0
    %1613 = vmatpush1.bf16.msra.mxu0 0
    %1614 = vmatprep.subr.bf16.mxu0 0
    %1615 = vmatpush1.bf16.msra.mxu0 0
    %1616 = vmatprep.subr.bf16.mxu0 0
    %1617 = vmatpush1.bf16.msra.mxu0 0
    %1618 = vmatprep.mubr.bf16.mxu0 0
    %1619 = vmatmul.mubr.bf16.gmra.mrb[0].mxu0 %v1544
    %v1620 = vpop.f32.mrb[0].mxu0
    %v1621 = vadd.f32 0.0, %v1620
    %v1622 = vpop.f32.mrb[0].mxu0
    %v1623 = vadd.f32 0.0, %v1622
    %v1624 = vpop.f32.mrb[0].mxu0
    %v1625 = vpop.f32.mrb[0].mxu0
    %1626 = vdwg.mxu0
    %v1627 = vadd.f32 %v1540, %v1580
    %v1628 = vadd.f32 %v1541, %v1582
    %v1629 = vadd.f32 %v1542, %v1621
    %v1630 = vadd.f32 %v1543, %v1623
    %v1631 = vmul.f32 %v1627, 0.5
    %v1632 = vtanh.pop %v1631
    %v1633 = vmul.f32 %v1632, 0.5
    %v1634 = vadd.f32 %v1633, 0.5
    %v1635 = vmul.f32 %v1628, 0.5
    %v1636 = vtanh.pop %v1635
    %v1637 = vmul.f32 %v1636, 0.5
    %v1638 = vadd.f32 %v1637, 0.5
    %v1639 = vtanh.pop %v1629
    %v1640 = vmul.f32 %v1630, 0.5
    %v1641 = vtanh.pop %v1640
    %v1642 = vmul.f32 %v1641, 0.5
    %v1643 = vadd.f32 %v1642, 0.5
    %v1644 = vmul.f32 %v1638, %v1532
    %v1645 = vmul.f32 %v1634, %v1639
    %v1646 = vadd.f32 %v1644, %v1645
    %v1647 = vtanh.pop %v1646
    %v1648 = vmul.f32 %v1643, %v1647
    %s1649 = scalar_lea.vmem [#allocation3], 56
    %1650 = vst [vmem:[%s1649] sm:$0xff] %v1648
    %1651 = vst [vmem:[#allocation19] sm:$0xff] %v1648
    %1652 = vst [vmem:[#allocation21] sm:$0xff] %v1646
    %s1653 = scalar_lea.vmem [#allocation10], 256
    %v1654 = vld [vmem:[%s1653] sm:$0xff]
    %v1655 = vld [vmem:[%s1653 + $0x8] sm:$0xff]
    %v1656 = vld [vmem:[%s1653 + $0x10] sm:$0xff]
    %v1657 = vld [vmem:[%s1653 + $0x18] sm:$0xff]
    %v1658 = vld [vmem:[%s1653 + $0x20] sm:$0xff]
    %v1659 = vld [vmem:[%s1653 + $0x28] sm:$0xff]
    %v1660 = vld [vmem:[%s1653 + $0x30] sm:$0xff]
    %v1661 = vld [vmem:[%s1653 + $0x38] sm:$0xff]
    %v1662 = vld [vmem:[%s1653 + $0x40] sm:$0xff]
    %v1663 = vld [vmem:[%s1653 + $0x48] sm:$0xff]
    %v1664 = vld [vmem:[%s1653 + $0x50] sm:$0xff]
    %v1665 = vld [vmem:[%s1653 + $0x58] sm:$0xff]
    %v1666 = vld [vmem:[%s1653 + $0x60] sm:$0xff]
    %v1667 = vld [vmem:[%s1653 + $0x68] sm:$0xff]
    %v1668 = vld [vmem:[%s1653 + $0x70] sm:$0xff]
    %v1669 = vld [vmem:[%s1653 + $0x78] sm:$0xff]
    %v1670 = vld [vmem:[%s1653 + $0x80] sm:$0xff]
    %v1671 = vld [vmem:[%s1653 + $0x88] sm:$0xff]
    %v1672 = vld [vmem:[%s1653 + $0x90] sm:$0xff]
    %v1673 = vld [vmem:[%s1653 + $0x98] sm:$0xff]
    %v1674 = vld [vmem:[%s1653 + $0xa0] sm:$0xff]
    %v1675 = vld [vmem:[%s1653 + $0xa8] sm:$0xff]
    %v1676 = vld [vmem:[%s1653 + $0xb0] sm:$0xff]
    %v1677 = vld [vmem:[%s1653 + $0xb8] sm:$0xff]
    %v1678 = vld [vmem:[%s1653 + $0xc0] sm:$0xff]
    %v1679 = vld [vmem:[%s1653 + $0xc8] sm:$0xff]
    %v1680 = vld [vmem:[%s1653 + $0xd0] sm:$0xff]
    %v1681 = vld [vmem:[%s1653 + $0xd8] sm:$0xff]
    %v1682 = vld [vmem:[%s1653 + $0xe0] sm:$0xff]
    %v1683 = vld [vmem:[%s1653 + $0xe8] sm:$0xff]
    %v1684 = vld [vmem:[%s1653 + $0xf0] sm:$0xff]
    %v1685 = vld [vmem:[%s1653 + $0xf8] sm:$0xff]
    %s1686 = scalar_lea.vmem [#allocation12], 256
    %v1687 = vld [vmem:[%s1686] sm:$0xff]
    %v1688 = vld [vmem:[%s1686 + $0x8] sm:$0xff]
    %v1689 = vld [vmem:[%s1686 + $0x10] sm:$0xff]
    %v1690 = vld [vmem:[%s1686 + $0x18] sm:$0xff]
    %v1691 = vld [vmem:[%s1686 + $0x20] sm:$0xff]
    %v1692 = vld [vmem:[%s1686 + $0x28] sm:$0xff]
    %v1693 = vld [vmem:[%s1686 + $0x30] sm:$0xff]
    %v1694 = vld [vmem:[%s1686 + $0x38] sm:$0xff]
    %v1695 = vld [vmem:[%s1686 + $0x40] sm:$0xff]
    %v1696 = vld [vmem:[%s1686 + $0x48] sm:$0xff]
    %v1697 = vld [vmem:[%s1686 + $0x50] sm:$0xff]
    %v1698 = vld [vmem:[%s1686 + $0x58] sm:$0xff]
    %v1699 = vld [vmem:[%s1686 + $0x60] sm:$0xff]
    %v1700 = vld [vmem:[%s1686 + $0x68] sm:$0xff]
    %v1701 = vld [vmem:[%s1686 + $0x70] sm:$0xff]
    %v1702 = vld [vmem:[%s1686 + $0x78] sm:$0xff]
    %v1703 = vld [vmem:[%s1686 + $0x80] sm:$0xff]
    %v1704 = vld [vmem:[%s1686 + $0x88] sm:$0xff]
    %v1705 = vld [vmem:[%s1686 + $0x90] sm:$0xff]
    %v1706 = vld [vmem:[%s1686 + $0x98] sm:$0xff]
    %v1707 = vld [vmem:[%s1686 + $0xa0] sm:$0xff]
    %v1708 = vld [vmem:[%s1686 + $0xa8] sm:$0xff]
    %v1709 = vld [vmem:[%s1686 + $0xb0] sm:$0xff]
    %v1710 = vld [vmem:[%s1686 + $0xb8] sm:$0xff]
    %v1711 = vld [vmem:[%s1686 + $0xc0] sm:$0xff]
    %v1712 = vld [vmem:[%s1686 + $0xc8] sm:$0xff]
    %v1713 = vld [vmem:[%s1686 + $0xd0] sm:$0xff]
    %v1714 = vld [vmem:[%s1686 + $0xd8] sm:$0xff]
    %v1715 = vld [vmem:[%s1686 + $0xe0] sm:$0xff]
    %v1716 = vld [vmem:[%s1686 + $0xe8] sm:$0xff]
    %v1717 = vld [vmem:[%s1686 + $0xf0] sm:$0xff]
    %v1718 = vld [vmem:[%s1686 + $0xf8] sm:$0xff]
    %s1719 = scalar_lea.vmem [#allocation13], 4
    %v1720 = vld [vmem:[%s1719] sm:$0xf]
    %s1721 = scalar_lea.vmem [#allocation7], 8
    %v1722 = vld [vmem:[%s1721] sm:$0xff]
    %s1723 = scalar_lea.vmem [#allocation9], 8
    %v1724 = vld [vmem:[%s1723] sm:$0xff]
    %v1725 = vld [vmem:[#allocation3] sm:$0xff]
    %v1726 = vld [vmem:[#allocation3 + $0x8] sm:$0xff]
    %v1727 = vld [vmem:[#allocation3 + $0x10] sm:$0xff]
    %v1728 = vld [vmem:[#allocation3 + $0x18] sm:$0xff]
    %v1729 = vld [vmem:[#allocation3 + $0x20] sm:$0xff]
    %v1730 = vld [vmem:[#allocation3 + $0x28] sm:$0xff]
    %v1731 = vld [vmem:[#allocation3 + $0x30] sm:$0xff]
    %v1732 = vld [vmem:[#allocation3 + $0x38] sm:$0xff]
    %v1733 = vpack.c.bf16 %v1726, %v1725
    %v1734 = vpack.c.bf16 %v1728, %v1727
    %v1735 = vpack.c.bf16 %v1730, %v1729
    %v1736 = vpack.c.bf16 %v1732, %v1731
    %v1738 = vlaneseq
    %v1739 = vshrl.u32 %v1738, 7
    %v1740 = vsub.s32 0, %v1739
    %v1741 = vrot.slane %v1720, %v1740
    %v1742 = vlaneseq
    %v1743 = vshrl.u32 %v1742, 7
    %v1744 = vsub.s32 1, %v1743
    %v1745 = vrot.slane %v1720, %v1744
    %v1746 = vlaneseq
    %v1747 = vshrl.u32 %v1746, 7
    %v1748 = vsub.s32 2, %v1747
    %v1749 = vrot.slane %v1720, %v1748
    %v1750 = vlaneseq
    %v1751 = vshrl.u32 %v1750, 7
    %v1752 = vsub.s32 3, %v1751
    %v1753 = vrot.slane %v1720, %v1752
    %v1790 = vunpack.c.l.b16 %v1654
    %v1791 = vunpack.c.h.b16 %v1654
    %v1792 = vunpack.c.l.b16 %v1655
    %v1793 = vunpack.c.h.b16 %v1655
    %v1794 = vunpack.c.l.b16 %v1656
    %v1795 = vunpack.c.h.b16 %v1656
    %v1796 = vunpack.c.l.b16 %v1657
    %v1797 = vunpack.c.h.b16 %v1657
    %v1798 = vunpack.c.l.b16 %v1658
    %v1799 = vunpack.c.h.b16 %v1658
    %v1800 = vunpack.c.l.b16 %v1659
    %v1801 = vunpack.c.h.b16 %v1659
    %v1802 = vunpack.c.l.b16 %v1660
    %v1803 = vunpack.c.h.b16 %v1660
    %v1804 = vunpack.c.l.b16 %v1661
    %v1805 = vunpack.c.h.b16 %v1661
    %v1806 = vunpack.c.l.b16 %v1662
    %v1807 = vunpack.c.h.b16 %v1662
    %v1808 = vunpack.c.l.b16 %v1663
    %v1809 = vunpack.c.h.b16 %v1663
    %v1810 = vunpack.c.l.b16 %v1664
    %v1811 = vunpack.c.h.b16 %v1664
    %v1812 = vunpack.c.l.b16 %v1665
    %v1813 = vunpack.c.h.b16 %v1665
    %v1814 = vunpack.c.l.b16 %v1666
    %v1815 = vunpack.c.h.b16 %v1666
    %v1816 = vunpack.c.l.b16 %v1667
    %v1817 = vunpack.c.h.b16 %v1667
    %v1818 = vunpack.c.l.b16 %v1668
    %v1819 = vunpack.c.h.b16 %v1668
    %v1820 = vunpack.c.l.b16 %v1669
    %v1821 = vunpack.c.h.b16 %v1669
    %v1822 = vunpack.c.l.b16 %v1670
    %v1823 = vunpack.c.h.b16 %v1670
    %v1824 = vunpack.c.l.b16 %v1671
    %v1825 = vunpack.c.h.b16 %v1671
    %v1826 = vunpack.c.l.b16 %v1672
    %v1827 = vunpack.c.h.b16 %v1672
    %v1828 = vunpack.c.l.b16 %v1673
    %v1829 = vunpack.c.h.b16 %v1673
    %v1830 = vunpack.c.l.b16 %v1674
    %v1831 = vunpack.c.h.b16 %v1674
    %v1832 = vunpack.c.l.b16 %v1675
    %v1833 = vunpack.c.h.b16 %v1675
    %v1834 = vunpack.c.l.b16 %v1676
    %v1835 = vunpack.c.h.b16 %v1676
    %v1836 = vunpack.c.l.b16 %v1677
    %v1837 = vunpack.c.h.b16 %v1677
    %v1838 = vunpack.c.l.b16 %v1678
    %v1839 = vunpack.c.h.b16 %v1678
    %v1840 = vunpack.c.l.b16 %v1679
    %v1841 = vunpack.c.h.b16 %v1679
    %v1842 = vunpack.c.l.b16 %v1680
    %v1843 = vunpack.c.h.b16 %v1680
    %v1844 = vunpack.c.l.b16 %v1681
    %v1845 = vunpack.c.h.b16 %v1681
    %v1846 = vunpack.c.l.b16 %v1682
    %v1847 = vunpack.c.h.b16 %v1682
    %v1848 = vunpack.c.l.b16 %v1683
    %v1849 = vunpack.c.h.b16 %v1683
    %v1850 = vunpack.c.l.b16 %v1684
    %v1851 = vunpack.c.h.b16 %v1684
    %v1852 = vunpack.c.l.b16 %v1685
    %v1853 = vunpack.c.h.b16 %v1685
    %v1854 = vpack.c.b16 %v1794, %v1790
    %v1855 = vpack.c.b16 %v1795, %v1791
    %v1856 = vpack.c.b16 %v1796, %v1792
    %v1857 = vpack.c.b16 %v1797, %v1793
    %v1858 = vpack.c.b16 %v1802, %v1798
    %v1859 = vpack.c.b16 %v1803, %v1799
    %v1860 = vpack.c.b16 %v1804, %v1800
    %v1861 = vpack.c.b16 %v1805, %v1801
    %v1862 = vpack.c.b16 %v1810, %v1806
    %v1863 = vpack.c.b16 %v1811, %v1807
    %v1864 = vpack.c.b16 %v1812, %v1808
    %v1865 = vpack.c.b16 %v1813, %v1809
    %v1866 = vpack.c.b16 %v1818, %v1814
    %v1867 = vpack.c.b16 %v1819, %v1815
    %v1868 = vpack.c.b16 %v1820, %v1816
    %v1869 = vpack.c.b16 %v1821, %v1817
    %v1870 = vpack.c.b16 %v1826, %v1822
    %v1871 = vpack.c.b16 %v1827, %v1823
    %v1872 = vpack.c.b16 %v1828, %v1824
    %v1873 = vpack.c.b16 %v1829, %v1825
    %v1874 = vpack.c.b16 %v1834, %v1830
    %v1875 = vpack.c.b16 %v1835, %v1831
    %v1876 = vpack.c.b16 %v1836, %v1832
    %v1877 = vpack.c.b16 %v1837, %v1833
    %v1878 = vpack.c.b16 %v1842, %v1838
    %v1879 = vpack.c.b16 %v1843, %v1839
    %v1880 = vpack.c.b16 %v1844, %v1840
    %v1881 = vpack.c.b16 %v1845, %v1841
    %v1882 = vpack.c.b16 %v1850, %v1846
    %v1883 = vpack.c.b16 %v1851, %v1847
    %v1884 = vpack.c.b16 %v1852, %v1848
    %v1885 = vpack.c.b16 %v1853, %v1849
    %1918 = vmatprep.subr.bf16.mxu0 %v1855
    %1919 = vmatpush1.bf16.msra.mxu0 %v1854
    %1920 = vmatprep.subr.bf16.mxu0 %v1859
    %1921 = vmatpush1.bf16.msra.mxu0 %v1858
    %1922 = vmatprep.subr.bf16.mxu0 %v1863
    %1923 = vmatpush1.bf16.msra.mxu0 %v1862
    %1924 = vmatprep.subr.bf16.mxu0 %v1867
    %1925 = vmatpush1.bf16.msra.mxu0 %v1866
    %1926 = vmatprep.subr.bf16.mxu0 %v1871
    %1927 = vmatpush1.bf16.msra.mxu0 %v1870
    %1928 = vmatprep.subr.bf16.mxu0 %v1875
    %1929 = vmatpush1.bf16.msra.mxu0 %v1874
    %1930 = vmatprep.subr.bf16.mxu0 %v1879
    %1931 = vmatpush1.bf16.msra.mxu0 %v1878
    %1932 = vmatprep.subr.bf16.mxu0 %v1883
    %1933 = vmatpush1.bf16.msra.mxu0 %v1882
    %1934 = vmatprep.subr.bf16.mxu0 0
    %1935 = vmatpush1.bf16.msra.mxu0 0
    %1936 = vmatprep.subr.bf16.mxu0 0
    %1937 = vmatpush1.bf16.msra.mxu0 0
    %1938 = vmatprep.subr.bf16.mxu0 0
    %1939 = vmatpush1.bf16.msra.mxu0 0
    %1940 = vmatprep.subr.bf16.mxu0 0
    %1941 = vmatpush1.bf16.msra.mxu0 0
    %1942 = vmatprep.subr.bf16.mxu0 0
    %1943 = vmatpush1.bf16.msra.mxu0 0
    %1944 = vmatprep.subr.bf16.mxu0 0
    %1945 = vmatpush1.bf16.msra.mxu0 0
    %1946 = vmatprep.subr.bf16.mxu0 0
    %1947 = vmatpush1.bf16.msra.mxu0 0
    %1948 = vmatprep.subr.bf16.mxu0 0
    %1949 = vmatpush1.bf16.msra.mxu0 0
    %1950 = vmatprep.mubr.bf16.mxu0 0
    %1951 = vmatmul.mubr.bf16.gmra.mrb[0].mxu0 %v1733
    %v1952 = vpop.f32.mrb[0].mxu0
    %v1953 = vadd.f32 %v1741, %v1952
    %v1954 = vpop.f32.mrb[0].mxu0
    %v1955 = vadd.f32 %v1745, %v1954
    %v1956 = vpop.f32.mrb[0].mxu0
    %v1957 = vadd.f32 %v1741, %v1956
    %v1958 = vpop.f32.mrb[0].mxu0
    %v1959 = vadd.f32 %v1745, %v1958
    %1960 = vmatprep.mubr.bf16.mxu0 0
    %1961 = vmatmul.mubr.bf16.gmra.mrb[0].mxu0 %v1734
    %v1962 = vpop.f32.mrb[0].mxu0
    %v1963 = vadd.f32 %v1741, %v1962
    %v1964 = vpop.f32.mrb[0].mxu0
    %v1965 = vadd.f32 %v1745, %v1964
    %v1966 = vpop.f32.mrb[0].mxu0
    %v1967 = vadd.f32 %v1741, %v1966
    %v1968 = vpop.f32.mrb[0].mxu0
    %v1969 = vadd.f32 %v1745, %v1968
    %1970 = vmatprep.mubr.bf16.mxu0 0
    %1971 = vmatmul.mubr.bf16.gmra.mrb[0].mxu0 %v1735
    %v1972 = vpop.f32.mrb[0].mxu0
    %v1973 = vadd.f32 %v1741, %v1972
    %v1974 = vpop.f32.mrb[0].mxu0
    %v1975 = vadd.f32 %v1745, %v1974
    %v1976 = vpop.f32.mrb[0].mxu0
    %v1977 = vadd.f32 %v1741, %v1976
    %v1978 = vpop.f32.mrb[0].mxu0
    %v1979 = vadd.f32 %v1745, %v1978
    %1980 = vmatprep.mubr.bf16.mxu0 0
    %1981 = vmatmul.mubr.bf16.gmra.mrb[0].mxu0 %v1736
    %v1982 = vpop.f32.mrb[0].mxu0
    %v1983 = vadd.f32 %v1741, %v1982
    %v1984 = vpop.f32.mrb[0].mxu0
    %v1985 = vadd.f32 %v1745, %v1984
    %v1986 = vpop.f32.mrb[0].mxu0
    %v1987 = vadd.f32 %v1741, %v1986
    %v1988 = vpop.f32.mrb[0].mxu0
    %v1989 = vadd.f32 %v1745, %v1988
    %1990 = vdwg.mxu0
    %1991 = vmatprep.subr.bf16.mxu0 %v1857
    %1992 = vmatpush1.bf16.msra.mxu0 %v1856
    %1993 = vmatprep.subr.bf16.mxu0 %v1861
    %1994 = vmatpush1.bf16.msra.mxu0 %v1860
    %1995 = vmatprep.subr.bf16.mxu0 %v1865
    %1996 = vmatpush1.bf16.msra.mxu0 %v1864
    %1997 = vmatprep.subr.bf16.mxu0 %v1869
    %1998 = vmatpush1.bf16.msra.mxu0 %v1868
    %1999 = vmatprep.subr.bf16.mxu0 %v1873
    %2000 = vmatpush1.bf16.msra.mxu0 %v1872
    %2001 = vmatprep.subr.bf16.mxu0 %v1877
    %2002 = vmatpush1.bf16.msra.mxu0 %v1876
    %2003 = vmatprep.subr.bf16.mxu0 %v1881
    %2004 = vmatpush1.bf16.msra.mxu0 %v1880
    %2005 = vmatprep.subr.bf16.mxu0 %v1885
    %2006 = vmatpush1.bf16.msra.mxu0 %v1884
    %2007 = vmatprep.subr.bf16.mxu0 0
    %2008 = vmatpush1.bf16.msra.mxu0 0
    %2009 = vmatprep.subr.bf16.mxu0 0
    %2010 = vmatpush1.bf16.msra.mxu0 0
    %2011 = vmatprep.subr.bf16.mxu0 0
    %2012 = vmatpush1.bf16.msra.mxu0 0
    %2013 = vmatprep.subr.bf16.mxu0 0
    %2014 = vmatpush1.bf16.msra.mxu0 0
    %2015 = vmatprep.subr.bf16.mxu0 0
    %2016 = vmatpush1.bf16.msra.mxu0 0
    %2017 = vmatprep.subr.bf16.mxu0 0
    %2018 = vmatpush1.bf16.msra.mxu0 0
    %2019 = vmatprep.subr.bf16.mxu0 0
    %2020 = vmatpush1.bf16.msra.mxu0 0
    %2021 = vmatprep.subr.bf16.mxu0 0
    %2022 = vmatpush1.bf16.msra.mxu0 0
    %2023 = vmatprep.mubr.bf16.mxu0 0
    %2024 = vmatmul.mubr.bf16.gmra.mrb[0].mxu0 %v1733
    %v2025 = vpop.f32.mrb[0].mxu0
    %v2026 = vadd.f32 %v1749, %v2025
    %v2027 = vpop.f32.mrb[0].mxu0
    %v2028 = vadd.f32 %v1753, %v2027
    %v2029 = vpop.f32.mrb[0].mxu0
    %v2030 = vadd.f32 %v1749, %v2029
    %v2031 = vpop.f32.mrb[0].mxu0
    %v2032 = vadd.f32 %v1753, %v2031
    %2033 = vmatprep.mubr.bf16.mxu0 0
    %2034 = vmatmul.mubr.bf16.gmra.mrb[0].mxu0 %v1734
    %v2035 = vpop.f32.mrb[0].mxu0
    %v2036 = vadd.f32 %v1749, %v2035
    %v2037 = vpop.f32.mrb[0].mxu0
    %v2038 = vadd.f32 %v1753, %v2037
    %v2039 = vpop.f32.mrb[0].mxu0
    %v2040 = vadd.f32 %v1749, %v2039
    %v2041 = vpop.f32.mrb[0].mxu0
    %v2042 = vadd.f32 %v1753, %v2041
    %2043 = vmatprep.mubr.bf16.mxu0 0
    %2044 = vmatmul.mubr.bf16.gmra.mrb[0].mxu0 %v1735
    %v2045 = vpop.f32.mrb[0].mxu0
    %v2046 = vadd.f32 %v1749, %v2045
    %v2047 = vpop.f32.mrb[0].mxu0
    %v2048 = vadd.f32 %v1753, %v2047
    %v2049 = vpop.f32.mrb[0].mxu0
    %v2050 = vadd.f32 %v1749, %v2049
    %v2051 = vpop.f32.mrb[0].mxu0
    %v2052 = vadd.f32 %v1753, %v2051
    %2053 = vmatprep.mubr.bf16.mxu0 0
    %2054 = vmatmul.mubr.bf16.gmra.mrb[0].mxu0 %v1736
    %v2055 = vpop.f32.mrb[0].mxu0
    %v2056 = vadd.f32 %v1749, %v2055
    %v2057 = vpop.f32.mrb[0].mxu0
    %v2058 = vadd.f32 %v1753, %v2057
    %v2059 = vpop.f32.mrb[0].mxu0
    %v2060 = vadd.f32 %v1749, %v2059
    %v2061 = vpop.f32.mrb[0].mxu0
    %v2062 = vadd.f32 %v1753, %v2061
    %2063 = vdwg.mxu0
    %2064 = vst [vmem:[#allocation2] sm:$0xff] %v1953
    %2065 = vst [vmem:[#allocation2 + $0x8] sm:$0xff] %v1955
    %2066 = vst [vmem:[#allocation2 + $0x10] sm:$0xff] %v2026
    %2067 = vst [vmem:[#allocation2 + $0x18] sm:$0xff] %v2028
    %2068 = vst [vmem:[#allocation2 + $0x20] sm:$0xff] %v1957
    %2069 = vst [vmem:[#allocation2 + $0x28] sm:$0xff] %v1959
    %2070 = vst [vmem:[#allocation2 + $0x30] sm:$0xff] %v2030
    %2071 = vst [vmem:[#allocation2 + $0x38] sm:$0xff] %v2032
    %2072 = vst [vmem:[#allocation2 + $0x40] sm:$0xff] %v1963
    %2073 = vst [vmem:[#allocation2 + $0x48] sm:$0xff] %v1965
    %2074 = vst [vmem:[#allocation2 + $0x50] sm:$0xff] %v2036
    %2075 = vst [vmem:[#allocation2 + $0x58] sm:$0xff] %v2038
    %2076 = vst [vmem:[#allocation2 + $0x60] sm:$0xff] %v1967
    %2077 = vst [vmem:[#allocation2 + $0x68] sm:$0xff] %v1969
    %2078 = vst [vmem:[#allocation2 + $0x70] sm:$0xff] %v2040
    %2079 = vst [vmem:[#allocation2 + $0x78] sm:$0xff] %v2042
    %2080 = vst [vmem:[#allocation2 + $0x80] sm:$0xff] %v1973
    %2081 = vst [vmem:[#allocation2 + $0x88] sm:$0xff] %v1975
    %2082 = vst [vmem:[#allocation2 + $0x90] sm:$0xff] %v2046
    %2083 = vst [vmem:[#allocation2 + $0x98] sm:$0xff] %v2048
    %2084 = vst [vmem:[#allocation2 + $0xa0] sm:$0xff] %v1977
    %2085 = vst [vmem:[#allocation2 + $0xa8] sm:$0xff] %v1979
    %2086 = vst [vmem:[#allocation2 + $0xb0] sm:$0xff] %v2050
    %2087 = vst [vmem:[#allocation2 + $0xb8] sm:$0xff] %v2052
    %2088 = vst [vmem:[#allocation2 + $0xc0] sm:$0xff] %v1983
    %2089 = vst [vmem:[#allocation2 + $0xc8] sm:$0xff] %v1985
    %2090 = vst [vmem:[#allocation2 + $0xd0] sm:$0xff] %v2056
    %2091 = vst [vmem:[#allocation2 + $0xd8] sm:$0xff] %v2058
    %2092 = vst [vmem:[#allocation2 + $0xe0] sm:$0xff] %v1987
    %2093 = vst [vmem:[#allocation2 + $0xe8] sm:$0xff] %v1989
    %2094 = vst [vmem:[#allocation2 + $0xf0] sm:$0xff] %v2060
    %2095 = vst [vmem:[#allocation2 + $0xf8] sm:$0xff] %v2062
    %v2096 = vld [vmem:[%s582] sm:$0xff]
    %v2097 = vld [vmem:[%s582 + $0x8] sm:$0xff]
    %v2098 = vld [vmem:[%s582 + $0x10] sm:$0xff]
    %v2099 = vld [vmem:[%s582 + $0x18] sm:$0xff]
    %v2100 = vpack.c.bf16 %v1722, %v1722
    %v2133 = vunpack.c.l.b16 %v1687
    %v2134 = vunpack.c.h.b16 %v1687
    %v2135 = vunpack.c.l.b16 %v1688
    %v2136 = vunpack.c.h.b16 %v1688
    %v2137 = vunpack.c.l.b16 %v1689
    %v2138 = vunpack.c.h.b16 %v1689
    %v2139 = vunpack.c.l.b16 %v1690
    %v2140 = vunpack.c.h.b16 %v1690
    %v2141 = vunpack.c.l.b16 %v1691
    %v2142 = vunpack.c.h.b16 %v1691
    %v2143 = vunpack.c.l.b16 %v1692
    %v2144 = vunpack.c.h.b16 %v1692
    %v2145 = vunpack.c.l.b16 %v1693
    %v2146 = vunpack.c.h.b16 %v1693
    %v2147 = vunpack.c.l.b16 %v1694
    %v2148 = vunpack.c.h.b16 %v1694
    %v2149 = vunpack.c.l.b16 %v1695
    %v2150 = vunpack.c.h.b16 %v1695
    %v2151 = vunpack.c.l.b16 %v1696
    %v2152 = vunpack.c.h.b16 %v1696
    %v2153 = vunpack.c.l.b16 %v1697
    %v2154 = vunpack.c.h.b16 %v1697
    %v2155 = vunpack.c.l.b16 %v1698
    %v2156 = vunpack.c.h.b16 %v1698
    %v2157 = vunpack.c.l.b16 %v1699
    %v2158 = vunpack.c.h.b16 %v1699
    %v2159 = vunpack.c.l.b16 %v1700
    %v2160 = vunpack.c.h.b16 %v1700
    %v2161 = vunpack.c.l.b16 %v1701
    %v2162 = vunpack.c.h.b16 %v1701
    %v2163 = vunpack.c.l.b16 %v1702
    %v2164 = vunpack.c.h.b16 %v1702
    %v2165 = vunpack.c.l.b16 %v1703
    %v2166 = vunpack.c.h.b16 %v1703
    %v2167 = vunpack.c.l.b16 %v1704
    %v2168 = vunpack.c.h.b16 %v1704
    %v2169 = vunpack.c.l.b16 %v1705
    %v2170 = vunpack.c.h.b16 %v1705
    %v2171 = vunpack.c.l.b16 %v1706
    %v2172 = vunpack.c.h.b16 %v1706
    %v2173 = vunpack.c.l.b16 %v1707
    %v2174 = vunpack.c.h.b16 %v1707
    %v2175 = vunpack.c.l.b16 %v1708
    %v2176 = vunpack.c.h.b16 %v1708
    %v2177 = vunpack.c.l.b16 %v1709
    %v2178 = vunpack.c.h.b16 %v1709
    %v2179 = vunpack.c.l.b16 %v1710
    %v2180 = vunpack.c.h.b16 %v1710
    %v2181 = vunpack.c.l.b16 %v1711
    %v2182 = vunpack.c.h.b16 %v1711
    %v2183 = vunpack.c.l.b16 %v1712
    %v2184 = vunpack.c.h.b16 %v1712
    %v2185 = vunpack.c.l.b16 %v1713
    %v2186 = vunpack.c.h.b16 %v1713
    %v2187 = vunpack.c.l.b16 %v1714
    %v2188 = vunpack.c.h.b16 %v1714
    %v2189 = vunpack.c.l.b16 %v1715
    %v2190 = vunpack.c.h.b16 %v1715
    %v2191 = vunpack.c.l.b16 %v1716
    %v2192 = vunpack.c.h.b16 %v1716
    %v2193 = vunpack.c.l.b16 %v1717
    %v2194 = vunpack.c.h.b16 %v1717
    %v2195 = vunpack.c.l.b16 %v1718
    %v2196 = vunpack.c.h.b16 %v1718
    %v2197 = vpack.c.b16 %v2137, %v2133
    %v2198 = vpack.c.b16 %v2138, %v2134
    %v2199 = vpack.c.b16 %v2139, %v2135
    %v2200 = vpack.c.b16 %v2140, %v2136
    %v2201 = vpack.c.b16 %v2145, %v2141
    %v2202 = vpack.c.b16 %v2146, %v2142
    %v2203 = vpack.c.b16 %v2147, %v2143
    %v2204 = vpack.c.b16 %v2148, %v2144
    %v2205 = vpack.c.b16 %v2153, %v2149
    %v2206 = vpack.c.b16 %v2154, %v2150
    %v2207 = vpack.c.b16 %v2155, %v2151
    %v2208 = vpack.c.b16 %v2156, %v2152
    %v2209 = vpack.c.b16 %v2161, %v2157
    %v2210 = vpack.c.b16 %v2162, %v2158
    %v2211 = vpack.c.b16 %v2163, %v2159
    %v2212 = vpack.c.b16 %v2164, %v2160
    %v2213 = vpack.c.b16 %v2169, %v2165
    %v2214 = vpack.c.b16 %v2170, %v2166
    %v2215 = vpack.c.b16 %v2171, %v2167
    %v2216 = vpack.c.b16 %v2172, %v2168
    %v2217 = vpack.c.b16 %v2177, %v2173
    %v2218 = vpack.c.b16 %v2178, %v2174
    %v2219 = vpack.c.b16 %v2179, %v2175
    %v2220 = vpack.c.b16 %v2180, %v2176
    %v2221 = vpack.c.b16 %v2185, %v2181
    %v2222 = vpack.c.b16 %v2186, %v2182
    %v2223 = vpack.c.b16 %v2187, %v2183
    %v2224 = vpack.c.b16 %v2188, %v2184
    %v2225 = vpack.c.b16 %v2193, %v2189
    %v2226 = vpack.c.b16 %v2194, %v2190
    %v2227 = vpack.c.b16 %v2195, %v2191
    %v2228 = vpack.c.b16 %v2196, %v2192
    %2261 = vmatprep.subr.bf16.mxu0 %v2198
    %2262 = vmatpush1.bf16.msra.mxu0 %v2197
    %2263 = vmatprep.subr.bf16.mxu0 %v2202
    %2264 = vmatpush1.bf16.msra.mxu0 %v2201
    %2265 = vmatprep.subr.bf16.mxu0 %v2206
    %2266 = vmatpush1.bf16.msra.mxu0 %v2205
    %2267 = vmatprep.subr.bf16.mxu0 %v2210
    %2268 = vmatpush1.bf16.msra.mxu0 %v2209
    %2269 = vmatprep.subr.bf16.mxu0 %v2214
    %2270 = vmatpush1.bf16.msra.mxu0 %v2213
    %2271 = vmatprep.subr.bf16.mxu0 %v2218
    %2272 = vmatpush1.bf16.msra.mxu0 %v2217
    %2273 = vmatprep.subr.bf16.mxu0 %v2222
    %2274 = vmatpush1.bf16.msra.mxu0 %v2221
    %2275 = vmatprep.subr.bf16.mxu0 %v2226
    %2276 = vmatpush1.bf16.msra.mxu0 %v2225
    %2277 = vmatprep.subr.bf16.mxu0 0
    %2278 = vmatpush1.bf16.msra.mxu0 0
    %2279 = vmatprep.subr.bf16.mxu0 0
    %2280 = vmatpush1.bf16.msra.mxu0 0
    %2281 = vmatprep.subr.bf16.mxu0 0
    %2282 = vmatpush1.bf16.msra.mxu0 0
    %2283 = vmatprep.subr.bf16.mxu0 0
    %2284 = vmatpush1.bf16.msra.mxu0 0
    %2285 = vmatprep.subr.bf16.mxu0 0
    %2286 = vmatpush1.bf16.msra.mxu0 0
    %2287 = vmatprep.subr.bf16.mxu0 0
    %2288 = vmatpush1.bf16.msra.mxu0 0
    %2289 = vmatprep.subr.bf16.mxu0 0
    %2290 = vmatpush1.bf16.msra.mxu0 0
    %2291 = vmatprep.subr.bf16.mxu0 0
    %2292 = vmatpush1.bf16.msra.mxu0 0
    %2293 = vmatprep.mubr.bf16.mxu0 0
    %2294 = vmatmul.mubr.bf16.gmra.mrb[0].mxu0 %v2100
    %v2295 = vpop.f32.mrb[0].mxu0
    %v2296 = vadd.f32 0.0, %v2295
    %v2297 = vpop.f32.mrb[0].mxu0
    %v2298 = vadd.f32 0.0, %v2297
    %v2299 = vpop.f32.mrb[0].mxu0
    %v2300 = vpop.f32.mrb[0].mxu0
    %2301 = vdwg.mxu0
    %2302 = vmatprep.subr.bf16.mxu0 %v2200
    %2303 = vmatpush1.bf16.msra.mxu0 %v2199
    %2304 = vmatprep.subr.bf16.mxu0 %v2204
    %2305 = vmatpush1.bf16.msra.mxu0 %v2203
    %2306 = vmatprep.subr.bf16.mxu0 %v2208
    %2307 = vmatpush1.bf16.msra.mxu0 %v2207
    %2308 = vmatprep.subr.bf16.mxu0 %v2212
    %2309 = vmatpush1.bf16.msra.mxu0 %v2211
    %2310 = vmatprep.subr.bf16.mxu0 %v2216
    %2311 = vmatpush1.bf16.msra.mxu0 %v2215
    %2312 = vmatprep.subr.bf16.mxu0 %v2220
    %2313 = vmatpush1.bf16.msra.mxu0 %v2219
    %2314 = vmatprep.subr.bf16.mxu0 %v2224
    %2315 = vmatpush1.bf16.msra.mxu0 %v2223
    %2316 = vmatprep.subr.bf16.mxu0 %v2228
    %2317 = vmatpush1.bf16.msra.mxu0 %v2227
    %2318 = vmatprep.subr.bf16.mxu0 0
    %2319 = vmatpush1.bf16.msra.mxu0 0
    %2320 = vmatprep.subr.bf16.mxu0 0
    %2321 = vmatpush1.bf16.msra.mxu0 0
    %2322 = vmatprep.subr.bf16.mxu0 0
    %2323 = vmatpush1.bf16.msra.mxu0 0
    %2324 = vmatprep.subr.bf16.mxu0 0
    %2325 = vmatpush1.bf16.msra.mxu0 0
    %2326 = vmatprep.subr.bf16.mxu0 0
    %2327 = vmatpush1.bf16.msra.mxu0 0
    %2328 = vmatprep.subr.bf16.mxu0 0
    %2329 = vmatpush1.bf16.msra.mxu0 0
    %2330 = vmatprep.subr.bf16.mxu0 0
    %2331 = vmatpush1.bf16.msra.mxu0 0
    %2332 = vmatprep.subr.bf16.mxu0 0
    %2333 = vmatpush1.bf16.msra.mxu0 0
    %2334 = vmatprep.mubr.bf16.mxu0 0
    %2335 = vmatmul.mubr.bf16.gmra.mrb[0].mxu0 %v2100
    %v2336 = vpop.f32.mrb[0].mxu0
    %v2337 = vadd.f32 0.0, %v2336
    %v2338 = vpop.f32.mrb[0].mxu0
    %v2339 = vadd.f32 0.0, %v2338
    %v2340 = vpop.f32.mrb[0].mxu0
    %v2341 = vpop.f32.mrb[0].mxu0
    %2342 = vdwg.mxu0
    %v2343 = vadd.f32 %v2096, %v2296
    %v2344 = vadd.f32 %v2097, %v2298
    %v2345 = vadd.f32 %v2098, %v2337
    %v2346 = vadd.f32 %v2099, %v2339
    %v2347 = vmul.f32 %v2343, 0.5
    %v2348 = vtanh.pop %v2347
    %v2349 = vmul.f32 %v2348, 0.5
    %v2350 = vadd.f32 %v2349, 0.5
    %v2351 = vmul.f32 %v2344, 0.5
    %v2352 = vtanh.pop %v2351
    %v2353 = vmul.f32 %v2352, 0.5
    %v2354 = vadd.f32 %v2353, 0.5
    %v2355 = vtanh.pop %v2345
    %v2356 = vmul.f32 %v2346, 0.5
    %v2357 = vtanh.pop %v2356
    %v2358 = vmul.f32 %v2357, 0.5
    %v2359 = vadd.f32 %v2358, 0.5
    %v2360 = vmul.f32 %v2354, %v1724
    %v2361 = vmul.f32 %v2350, %v2355
    %v2362 = vadd.f32 %v2360, %v2361
    %v2363 = vtanh.pop %v2362
    %v2364 = vmul.f32 %v2359, %v2363
    %v2365 = vld [vmem:[%s855] sm:$0xff]
    %v2366 = vld [vmem:[%s855 + $0x8] sm:$0xff]
    %v2367 = vld [vmem:[%s855 + $0x10] sm:$0xff]
    %v2368 = vld [vmem:[%s855 + $0x18] sm:$0xff]
    %v2369 = vpack.c.bf16 %v2364, %v2364
    %2370 = vmatprep.subr.bf16.mxu0 %v2198
    %2371 = vmatpush1.bf16.msra.mxu0 %v2197
    %2372 = vmatprep.subr.bf16.mxu0 %v2202
    %2373 = vmatpush1.bf16.msra.mxu0 %v2201
    %2374 = vmatprep.subr.bf16.mxu0 %v2206
    %2375 = vmatpush1.bf16.msra.mxu0 %v2205
    %2376 = vmatprep.subr.bf16.mxu0 %v2210
    %2377 = vmatpush1.bf16.msra.mxu0 %v2209
    %2378 = vmatprep.subr.bf16.mxu0 %v2214
    %2379 = vmatpush1.bf16.msra.mxu0 %v2213
    %2380 = vmatprep.subr.bf16.mxu0 %v2218
    %2381 = vmatpush1.bf16.msra.mxu0 %v2217
    %2382 = vmatprep.subr.bf16.mxu0 %v2222
    %2383 = vmatpush1.bf16.msra.mxu0 %v2221
    %2384 = vmatprep.subr.bf16.mxu0 %v2226
    %2385 = vmatpush1.bf16.msra.mxu0 %v2225
    %2386 = vmatprep.subr.bf16.mxu0 0
    %2387 = vmatpush1.bf16.msra.mxu0 0
    %2388 = vmatprep.subr.bf16.mxu0 0
    %2389 = vmatpush1.bf16.msra.mxu0 0
    %2390 = vmatprep.subr.bf16.mxu0 0
    %2391 = vmatpush1.bf16.msra.mxu0 0
    %2392 = vmatprep.subr.bf16.mxu0 0
    %2393 = vmatpush1.bf16.msra.mxu0 0
    %2394 = vmatprep.subr.bf16.mxu0 0
    %2395 = vmatpush1.bf16.msra.mxu0 0
    %2396 = vmatprep.subr.bf16.mxu0 0
    %2397 = vmatpush1.bf16.msra.mxu0 0
    %2398 = vmatprep.subr.bf16.mxu0 0
    %2399 = vmatpush1.bf16.msra.mxu0 0
    %2400 = vmatprep.subr.bf16.mxu0 0
    %2401 = vmatpush1.bf16.msra.mxu0 0
    %2402 = vmatprep.mubr.bf16.mxu0 0
    %2403 = vmatmul.mubr.bf16.gmra.mrb[0].mxu0 %v2369
    %v2404 = vpop.f32.mrb[0].mxu0
    %v2405 = vadd.f32 0.0, %v2404
    %v2406 = vpop.f32.mrb[0].mxu0
    %v2407 = vadd.f32 0.0, %v2406
    %v2408 = vpop.f32.mrb[0].mxu0
    %v2409 = vpop.f32.mrb[0].mxu0
    %2410 = vdwg.mxu0
    %2411 = vmatprep.subr.bf16.mxu0 %v2200
    %2412 = vmatpush1.bf16.msra.mxu0 %v2199
    %2413 = vmatprep.subr.bf16.mxu0 %v2204
    %2414 = vmatpush1.bf16.msra.mxu0 %v2203
    %2415 = vmatprep.subr.bf16.mxu0 %v2208
    %2416 = vmatpush1.bf16.msra.mxu0 %v2207
    %2417 = vmatprep.subr.bf16.mxu0 %v2212
    %2418 = vmatpush1.bf16.msra.mxu0 %v2211
    %2419 = vmatprep.subr.bf16.mxu0 %v2216
    %2420 = vmatpush1.bf16.msra.mxu0 %v2215
    %2421 = vmatprep.subr.bf16.mxu0 %v2220
    %2422 = vmatpush1.bf16.msra.mxu0 %v2219
    %2423 = vmatprep.subr.bf16.mxu0 %v2224
    %2424 = vmatpush1.bf16.msra.mxu0 %v2223
    %2425 = vmatprep.subr.bf16.mxu0 %v2228
    %2426 = vmatpush1.bf16.msra.mxu0 %v2227
    %2427 = vmatprep.subr.bf16.mxu0 0
    %2428 = vmatpush1.bf16.msra.mxu0 0
    %2429 = vmatprep.subr.bf16.mxu0 0
    %2430 = vmatpush1.bf16.msra.mxu0 0
    %2431 = vmatprep.subr.bf16.mxu0 0
    %2432 = vmatpush1.bf16.msra.mxu0 0
    %2433 = vmatprep.subr.bf16.mxu0 0
    %2434 = vmatpush1.bf16.msra.mxu0 0
    %2435 = vmatprep.subr.bf16.mxu0 0
    %2436 = vmatpush1.bf16.msra.mxu0 0
    %2437 = vmatprep.subr.bf16.mxu0 0
    %2438 = vmatpush1.bf16.msra.mxu0 0
    %2439 = vmatprep.subr.bf16.mxu0 0
    %2440 = vmatpush1.bf16.msra.mxu0 0
    %2441 = vmatprep.subr.bf16.mxu0 0
    %2442 = vmatpush1.bf16.msra.mxu0 0
    %2443 = vmatprep.mubr.bf16.mxu0 0
    %2444 = vmatmul.mubr.bf16.gmra.mrb[0].mxu0 %v2369
    %v2445 = vpop.f32.mrb[0].mxu0
    %v2446 = vadd.f32 0.0, %v2445
    %v2447 = vpop.f32.mrb[0].mxu0
    %v2448 = vadd.f32 0.0, %v2447
    %v2449 = vpop.f32.mrb[0].mxu0
    %v2450 = vpop.f32.mrb[0].mxu0
    %2451 = vdwg.mxu0
    %v2452 = vadd.f32 %v2365, %v2405
    %v2453 = vadd.f32 %v2366, %v2407
    %v2454 = vadd.f32 %v2367, %v2446
    %v2455 = vadd.f32 %v2368, %v2448
    %v2456 = vmul.f32 %v2452, 0.5
    %v2457 = vtanh.pop %v2456
    %v2458 = vmul.f32 %v2457, 0.5
    %v2459 = vadd.f32 %v2458, 0.5
    %v2460 = vmul.f32 %v2453, 0.5
    %v2461 = vtanh.pop %v2460
    %v2462 = vmul.f32 %v2461, 0.5
    %v2463 = vadd.f32 %v2462, 0.5
    %v2464 = vtanh.pop %v2454
    %v2465 = vmul.f32 %v2455, 0.5
    %v2466 = vtanh.pop %v2465
    %v2467 = vmul.f32 %v2466, 0.5
    %v2468 = vadd.f32 %v2467, 0.5
    %v2469 = vmul.f32 %v2463, %v2362
    %v2470 = vmul.f32 %v2459, %v2464
    %v2471 = vadd.f32 %v2469, %v2470
    %v2472 = vtanh.pop %v2471
    %v2473 = vmul.f32 %v2468, %v2472
    %v2474 = vld [vmem:[%s969] sm:$0xff]
    %v2475 = vld [vmem:[%s969 + $0x8] sm:$0xff]
    %v2476 = vld [vmem:[%s969 + $0x10] sm:$0xff]
    %v2477 = vld [vmem:[%s969 + $0x18] sm:$0xff]
    %v2478 = vpack.c.bf16 %v2473, %v2473
    %2479 = vmatprep.subr.bf16.mxu0 %v2198
    %2480 = vmatpush1.bf16.msra.mxu0 %v2197
    %2481 = vmatprep.subr.bf16.mxu0 %v2202
    %2482 = vmatpush1.bf16.msra.mxu0 %v2201
    %2483 = vmatprep.subr.bf16.mxu0 %v2206
    %2484 = vmatpush1.bf16.msra.mxu0 %v2205
    %2485 = vmatprep.subr.bf16.mxu0 %v2210
    %2486 = vmatpush1.bf16.msra.mxu0 %v2209
    %2487 = vmatprep.subr.bf16.mxu0 %v2214
    %2488 = vmatpush1.bf16.msra.mxu0 %v2213
    %2489 = vmatprep.subr.bf16.mxu0 %v2218
    %2490 = vmatpush1.bf16.msra.mxu0 %v2217
    %2491 = vmatprep.subr.bf16.mxu0 %v2222
    %2492 = vmatpush1.bf16.msra.mxu0 %v2221
    %2493 = vmatprep.subr.bf16.mxu0 %v2226
    %2494 = vmatpush1.bf16.msra.mxu0 %v2225
    %2495 = vmatprep.subr.bf16.mxu0 0
    %2496 = vmatpush1.bf16.msra.mxu0 0
    %2497 = vmatprep.subr.bf16.mxu0 0
    %2498 = vmatpush1.bf16.msra.mxu0 0
    %2499 = vmatprep.subr.bf16.mxu0 0
    %2500 = vmatpush1.bf16.msra.mxu0 0
    %2501 = vmatprep.subr.bf16.mxu0 0
    %2502 = vmatpush1.bf16.msra.mxu0 0
    %2503 = vmatprep.subr.bf16.mxu0 0
    %2504 = vmatpush1.bf16.msra.mxu0 0
    %2505 = vmatprep.subr.bf16.mxu0 0
    %2506 = vmatpush1.bf16.msra.mxu0 0
    %2507 = vmatprep.subr.bf16.mxu0 0
    %2508 = vmatpush1.bf16.msra.mxu0 0
    %2509 = vmatprep.subr.bf16.mxu0 0
    %2510 = vmatpush1.bf16.msra.mxu0 0
    %2511 = vmatprep.mubr.bf16.mxu0 0
    %2512 = vmatmul.mubr.bf16.gmra.mrb[0].mxu0 %v2478
    %v2513 = vpop.f32.mrb[0].mxu0
    %v2514 = vadd.f32 0.0, %v2513
    %v2515 = vpop.f32.mrb[0].mxu0
    %v2516 = vadd.f32 0.0, %v2515
    %v2517 = vpop.f32.mrb[0].mxu0
    %v2518 = vpop.f32.mrb[0].mxu0
    %2519 = vdwg.mxu0
    %2520 = vmatprep.subr.bf16.mxu0 %v2200
    %2521 = vmatpush1.bf16.msra.mxu0 %v2199
    %2522 = vmatprep.subr.bf16.mxu0 %v2204
    %2523 = vmatpush1.bf16.msra.mxu0 %v2203
    %2524 = vmatprep.subr.bf16.mxu0 %v2208
    %2525 = vmatpush1.bf16.msra.mxu0 %v2207
    %2526 = vmatprep.subr.bf16.mxu0 %v2212
    %2527 = vmatpush1.bf16.msra.mxu0 %v2211
    %2528 = vmatprep.subr.bf16.mxu0 %v2216
    %2529 = vmatpush1.bf16.msra.mxu0 %v2215
    %2530 = vmatprep.subr.bf16.mxu0 %v2220
    %2531 = vmatpush1.bf16.msra.mxu0 %v2219
    %2532 = vmatprep.subr.bf16.mxu0 %v2224
    %2533 = vmatpush1.bf16.msra.mxu0 %v2223
    %2534 = vmatprep.subr.bf16.mxu0 %v2228
    %2535 = vmatpush1.bf16.msra.mxu0 %v2227
    %2536 = vmatprep.subr.bf16.mxu0 0
    %2537 = vmatpush1.bf16.msra.mxu0 0
    %2538 = vmatprep.subr.bf16.mxu0 0
    %2539 = vmatpush1.bf16.msra.mxu0 0
    %2540 = vmatprep.subr.bf16.mxu0 0
    %2541 = vmatpush1.bf16.msra.mxu0 0
    %2542 = vmatprep.subr.bf16.mxu0 0
    %2543 = vmatpush1.bf16.msra.mxu0 0
    %2544 = vmatprep.subr.bf16.mxu0 0
    %2545 = vmatpush1.bf16.msra.mxu0 0
    %2546 = vmatprep.subr.bf16.mxu0 0
    %2547 = vmatpush1.bf16.msra.mxu0 0
    %2548 = vmatprep.subr.bf16.mxu0 0
    %2549 = vmatpush1.bf16.msra.mxu0 0
    %2550 = vmatprep.subr.bf16.mxu0 0
    %2551 = vmatpush1.bf16.msra.mxu0 0
    %2552 = vmatprep.mubr.bf16.mxu0 0
    %2553 = vmatmul.mubr.bf16.gmra.mrb[0].mxu0 %v2478
    %v2554 = vpop.f32.mrb[0].mxu0
    %v2555 = vadd.f32 0.0, %v2554
    %v2556 = vpop.f32.mrb[0].mxu0
    %v2557 = vadd.f32 0.0, %v2556
    %v2558 = vpop.f32.mrb[0].mxu0
    %v2559 = vpop.f32.mrb[0].mxu0
    %2560 = vdwg.mxu0
    %v2561 = vadd.f32 %v2474, %v2514
    %v2562 = vadd.f32 %v2475, %v2516
    %v2563 = vadd.f32 %v2476, %v2555
    %v2564 = vadd.f32 %v2477, %v2557
    %v2565 = vmul.f32 %v2561, 0.5
    %v2566 = vtanh.pop %v2565
    %v2567 = vmul.f32 %v2566, 0.5
    %v2568 = vadd.f32 %v2567, 0.5
    %v2569 = vmul.f32 %v2562, 0.5
    %v2570 = vtanh.pop %v2569
    %v2571 = vmul.f32 %v2570, 0.5
    %v2572 = vadd.f32 %v2571, 0.5
    %v2573 = vtanh.pop %v2563
    %v2574 = vmul.f32 %v2564, 0.5
    %v2575 = vtanh.pop %v2574
    %v2576 = vmul.f32 %v2575, 0.5
    %v2577 = vadd.f32 %v2576, 0.5
    %v2578 = vmul.f32 %v2572, %v2471
    %v2579 = vmul.f32 %v2568, %v2573
    %v2580 = vadd.f32 %v2578, %v2579
    %v2581 = vtanh.pop %v2580
    %v2582 = vmul.f32 %v2577, %v2581
    %v2583 = vld [vmem:[%s1083] sm:$0xff]
    %v2584 = vld [vmem:[%s1083 + $0x8] sm:$0xff]
    %v2585 = vld [vmem:[%s1083 + $0x10] sm:$0xff]
    %v2586 = vld [vmem:[%s1083 + $0x18] sm:$0xff]
    %v2587 = vpack.c.bf16 %v2582, %v2582
    %2588 = vmatprep.subr.bf16.mxu0 %v2198
    %2589 = vmatpush1.bf16.msra.mxu0 %v2197
    %2590 = vmatprep.subr.bf16.mxu0 %v2202
    %2591 = vmatpush1.bf16.msra.mxu0 %v2201
    %2592 = vmatprep.subr.bf16.mxu0 %v2206
    %2593 = vmatpush1.bf16.msra.mxu0 %v2205
    %2594 = vmatprep.subr.bf16.mxu0 %v2210
    %2595 = vmatpush1.bf16.msra.mxu0 %v2209
    %2596 = vmatprep.subr.bf16.mxu0 %v2214
    %2597 = vmatpush1.bf16.msra.mxu0 %v2213
    %2598 = vmatprep.subr.bf16.mxu0 %v2218
    %2599 = vmatpush1.bf16.msra.mxu0 %v2217
    %2600 = vmatprep.subr.bf16.mxu0 %v2222
    %2601 = vmatpush1.bf16.msra.mxu0 %v2221
    %2602 = vmatprep.subr.bf16.mxu0 %v2226
    %2603 = vmatpush1.bf16.msra.mxu0 %v2225
    %2604 = vmatprep.subr.bf16.mxu0 0
    %2605 = vmatpush1.bf16.msra.mxu0 0
    %2606 = vmatprep.subr.bf16.mxu0 0
    %2607 = vmatpush1.bf16.msra.mxu0 0
    %2608 = vmatprep.subr.bf16.mxu0 0
    %2609 = vmatpush1.bf16.msra.mxu0 0
    %2610 = vmatprep.subr.bf16.mxu0 0
    %2611 = vmatpush1.bf16.msra.mxu0 0
    %2612 = vmatprep.subr.bf16.mxu0 0
    %2613 = vmatpush1.bf16.msra.mxu0 0
    %2614 = vmatprep.subr.bf16.mxu0 0
    %2615 = vmatpush1.bf16.msra.mxu0 0
    %2616 = vmatprep.subr.bf16.mxu0 0
    %2617 = vmatpush1.bf16.msra.mxu0 0
    %2618 = vmatprep.subr.bf16.mxu0 0
    %2619 = vmatpush1.bf16.msra.mxu0 0
    %2620 = vmatprep.mubr.bf16.mxu0 0
    %2621 = vmatmul.mubr.bf16.gmra.mrb[0].mxu0 %v2587
    %v2622 = vpop.f32.mrb[0].mxu0
    %v2623 = vadd.f32 0.0, %v2622
    %v2624 = vpop.f32.mrb[0].mxu0
    %v2625 = vadd.f32 0.0, %v2624
    %v2626 = vpop.f32.mrb[0].mxu0
    %v2627 = vpop.f32.mrb[0].mxu0
    %2628 = vdwg.mxu0
    %2629 = vmatprep.subr.bf16.mxu0 %v2200
    %2630 = vmatpush1.bf16.msra.mxu0 %v2199
    %2631 = vmatprep.subr.bf16.mxu0 %v2204
    %2632 = vmatpush1.bf16.msra.mxu0 %v2203
    %2633 = vmatprep.subr.bf16.mxu0 %v2208
    %2634 = vmatpush1.bf16.msra.mxu0 %v2207
    %2635 = vmatprep.subr.bf16.mxu0 %v2212
    %2636 = vmatpush1.bf16.msra.mxu0 %v2211
    %2637 = vmatprep.subr.bf16.mxu0 %v2216
    %2638 = vmatpush1.bf16.msra.mxu0 %v2215
    %2639 = vmatprep.subr.bf16.mxu0 %v2220
    %2640 = vmatpush1.bf16.msra.mxu0 %v2219
    %2641 = vmatprep.subr.bf16.mxu0 %v2224
    %2642 = vmatpush1.bf16.msra.mxu0 %v2223
    %2643 = vmatprep.subr.bf16.mxu0 %v2228
    %2644 = vmatpush1.bf16.msra.mxu0 %v2227
    %2645 = vmatprep.subr.bf16.mxu0 0
    %2646 = vmatpush1.bf16.msra.mxu0 0
    %2647 = vmatprep.subr.bf16.mxu0 0
    %2648 = vmatpush1.bf16.msra.mxu0 0
    %2649 = vmatprep.subr.bf16.mxu0 0
    %2650 = vmatpush1.bf16.msra.mxu0 0
    %2651 = vmatprep.subr.bf16.mxu0 0
    %2652 = vmatpush1.bf16.msra.mxu0 0
    %2653 = vmatprep.subr.bf16.mxu0 0
    %2654 = vmatpush1.bf16.msra.mxu0 0
    %2655 = vmatprep.subr.bf16.mxu0 0
    %2656 = vmatpush1.bf16.msra.mxu0 0
    %2657 = vmatprep.subr.bf16.mxu0 0
    %2658 = vmatpush1.bf16.msra.mxu0 0
    %2659 = vmatprep.subr.bf16.mxu0 0
    %2660 = vmatpush1.bf16.msra.mxu0 0
    %2661 = vmatprep.mubr.bf16.mxu0 0
    %2662 = vmatmul.mubr.bf16.gmra.mrb[0].mxu0 %v2587
    %v2663 = vpop.f32.mrb[0].mxu0
    %v2664 = vadd.f32 0.0, %v2663
    %v2665 = vpop.f32.mrb[0].mxu0
    %v2666 = vadd.f32 0.0, %v2665
    %v2667 = vpop.f32.mrb[0].mxu0
    %v2668 = vpop.f32.mrb[0].mxu0
    %2669 = vdwg.mxu0
    %v2670 = vadd.f32 %v2583, %v2623
    %v2671 = vadd.f32 %v2584, %v2625
    %v2672 = vadd.f32 %v2585, %v2664
    %v2673 = vadd.f32 %v2586, %v2666
    %v2674 = vmul.f32 %v2670, 0.5
    %v2675 = vtanh.pop %v2674
    %v2676 = vmul.f32 %v2675, 0.5
    %v2677 = vadd.f32 %v2676, 0.5
    %v2678 = vmul.f32 %v2671, 0.5
    %v2679 = vtanh.pop %v2678
    %v2680 = vmul.f32 %v2679, 0.5
    %v2681 = vadd.f32 %v2680, 0.5
    %v2682 = vtanh.pop %v2672
    %v2683 = vmul.f32 %v2673, 0.5
    %v2684 = vtanh.pop %v2683
    %v2685 = vmul.f32 %v2684, 0.5
    %v2686 = vadd.f32 %v2685, 0.5
    %v2687 = vmul.f32 %v2681, %v2580
    %v2688 = vmul.f32 %v2677, %v2682
    %v2689 = vadd.f32 %v2687, %v2688
    %v2690 = vtanh.pop %v2689
    %v2691 = vmul.f32 %v2686, %v2690
    %v2692 = vld [vmem:[%s1197] sm:$0xff]
    %v2693 = vld [vmem:[%s1197 + $0x8] sm:$0xff]
    %v2694 = vld [vmem:[%s1197 + $0x10] sm:$0xff]
    %v2695 = vld [vmem:[%s1197 + $0x18] sm:$0xff]
    %v2696 = vpack.c.bf16 %v2691, %v2691
    %2697 = vmatprep.subr.bf16.mxu0 %v2198
    %2698 = vmatpush1.bf16.msra.mxu0 %v2197
    %2699 = vmatprep.subr.bf16.mxu0 %v2202
    %2700 = vmatpush1.bf16.msra.mxu0 %v2201
    %2701 = vmatprep.subr.bf16.mxu0 %v2206
    %2702 = vmatpush1.bf16.msra.mxu0 %v2205
    %2703 = vmatprep.subr.bf16.mxu0 %v2210
    %2704 = vmatpush1.bf16.msra.mxu0 %v2209
    %2705 = vmatprep.subr.bf16.mxu0 %v2214
    %2706 = vmatpush1.bf16.msra.mxu0 %v2213
    %2707 = vmatprep.subr.bf16.mxu0 %v2218
    %2708 = vmatpush1.bf16.msra.mxu0 %v2217
    %2709 = vmatprep.subr.bf16.mxu0 %v2222
    %2710 = vmatpush1.bf16.msra.mxu0 %v2221
    %2711 = vmatprep.subr.bf16.mxu0 %v2226
    %2712 = vmatpush1.bf16.msra.mxu0 %v2225
    %2713 = vmatprep.subr.bf16.mxu0 0
    %2714 = vmatpush1.bf16.msra.mxu0 0
    %2715 = vmatprep.subr.bf16.mxu0 0
    %2716 = vmatpush1.bf16.msra.mxu0 0
    %2717 = vmatprep.subr.bf16.mxu0 0
    %2718 = vmatpush1.bf16.msra.mxu0 0
    %2719 = vmatprep.subr.bf16.mxu0 0
    %2720 = vmatpush1.bf16.msra.mxu0 0
    %2721 = vmatprep.subr.bf16.mxu0 0
    %2722 = vmatpush1.bf16.msra.mxu0 0
    %2723 = vmatprep.subr.bf16.mxu0 0
    %2724 = vmatpush1.bf16.msra.mxu0 0
    %2725 = vmatprep.subr.bf16.mxu0 0
    %2726 = vmatpush1.bf16.msra.mxu0 0
    %2727 = vmatprep.subr.bf16.mxu0 0
    %2728 = vmatpush1.bf16.msra.mxu0 0
    %2729 = vmatprep.mubr.bf16.mxu0 0
    %2730 = vmatmul.mubr.bf16.gmra.mrb[0].mxu0 %v2696
    %v2731 = vpop.f32.mrb[0].mxu0
    %v2732 = vadd.f32 0.0, %v2731
    %v2733 = vpop.f32.mrb[0].mxu0
    %v2734 = vadd.f32 0.0, %v2733
    %v2735 = vpop.f32.mrb[0].mxu0
    %v2736 = vpop.f32.mrb[0].mxu0
    %2737 = vdwg.mxu0
    %2738 = vmatprep.subr.bf16.mxu0 %v2200
    %2739 = vmatpush1.bf16.msra.mxu0 %v2199
    %2740 = vmatprep.subr.bf16.mxu0 %v2204
    %2741 = vmatpush1.bf16.msra.mxu0 %v2203
    %2742 = vmatprep.subr.bf16.mxu0 %v2208
    %2743 = vmatpush1.bf16.msra.mxu0 %v2207
    %2744 = vmatprep.subr.bf16.mxu0 %v2212
    %2745 = vmatpush1.bf16.msra.mxu0 %v2211
    %2746 = vmatprep.subr.bf16.mxu0 %v2216
    %2747 = vmatpush1.bf16.msra.mxu0 %v2215
    %2748 = vmatprep.subr.bf16.mxu0 %v2220
    %2749 = vmatpush1.bf16.msra.mxu0 %v2219
    %2750 = vmatprep.subr.bf16.mxu0 %v2224
    %2751 = vmatpush1.bf16.msra.mxu0 %v2223
    %2752 = vmatprep.subr.bf16.mxu0 %v2228
    %2753 = vmatpush1.bf16.msra.mxu0 %v2227
    %2754 = vmatprep.subr.bf16.mxu0 0
    %2755 = vmatpush1.bf16.msra.mxu0 0
    %2756 = vmatprep.subr.bf16.mxu0 0
    %2757 = vmatpush1.bf16.msra.mxu0 0
    %2758 = vmatprep.subr.bf16.mxu0 0
    %2759 = vmatpush1.bf16.msra.mxu0 0
    %2760 = vmatprep.subr.bf16.mxu0 0
    %2761 = vmatpush1.bf16.msra.mxu0 0
    %2762 = vmatprep.subr.bf16.mxu0 0
    %2763 = vmatpush1.bf16.msra.mxu0 0
    %2764 = vmatprep.subr.bf16.mxu0 0
    %2765 = vmatpush1.bf16.msra.mxu0 0
    %2766 = vmatprep.subr.bf16.mxu0 0
    %2767 = vmatpush1.bf16.msra.mxu0 0
    %2768 = vmatprep.subr.bf16.mxu0 0
    %2769 = vmatpush1.bf16.msra.mxu0 0
    %2770 = vmatprep.mubr.bf16.mxu0 0
    %2771 = vmatmul.mubr.bf16.gmra.mrb[0].mxu0 %v2696
    %v2772 = vpop.f32.mrb[0].mxu0
    %v2773 = vadd.f32 0.0, %v2772
    %v2774 = vpop.f32.mrb[0].mxu0
    %v2775 = vadd.f32 0.0, %v2774
    %v2776 = vpop.f32.mrb[0].mxu0
    %v2777 = vpop.f32.mrb[0].mxu0
    %2778 = vdwg.mxu0
    %v2779 = vadd.f32 %v2692, %v2732
    %v2780 = vadd.f32 %v2693, %v2734
    %v2781 = vadd.f32 %v2694, %v2773
    %v2782 = vadd.f32 %v2695, %v2775
    %v2783 = vmul.f32 %v2779, 0.5
    %v2784 = vtanh.pop %v2783
    %v2785 = vmul.f32 %v2784, 0.5
    %v2786 = vadd.f32 %v2785, 0.5
    %v2787 = vmul.f32 %v2780, 0.5
    %v2788 = vtanh.pop %v2787
    %v2789 = vmul.f32 %v2788, 0.5
    %v2790 = vadd.f32 %v2789, 0.5
    %v2791 = vtanh.pop %v2781
    %v2792 = vmul.f32 %v2782, 0.5
    %v2793 = vtanh.pop %v2792
    %v2794 = vmul.f32 %v2793, 0.5
    %v2795 = vadd.f32 %v2794, 0.5
    %v2796 = vmul.f32 %v2790, %v2689
    %v2797 = vmul.f32 %v2786, %v2791
    %v2798 = vadd.f32 %v2796, %v2797
    %v2799 = vtanh.pop %v2798
    %v2800 = vmul.f32 %v2795, %v2799
    %v2801 = vld [vmem:[%s1311] sm:$0xff]
    %v2802 = vld [vmem:[%s1311 + $0x8] sm:$0xff]
    %v2803 = vld [vmem:[%s1311 + $0x10] sm:$0xff]
    %v2804 = vld [vmem:[%s1311 + $0x18] sm:$0xff]
    %v2805 = vpack.c.bf16 %v2800, %v2800
    %2806 = vmatprep.subr.bf16.mxu0 %v2198
    %2807 = vmatpush1.bf16.msra.mxu0 %v2197
    %2808 = vmatprep.subr.bf16.mxu0 %v2202
    %2809 = vmatpush1.bf16.msra.mxu0 %v2201
    %2810 = vmatprep.subr.bf16.mxu0 %v2206
    %2811 = vmatpush1.bf16.msra.mxu0 %v2205
    %2812 = vmatprep.subr.bf16.mxu0 %v2210
    %2813 = vmatpush1.bf16.msra.mxu0 %v2209
    %2814 = vmatprep.subr.bf16.mxu0 %v2214
    %2815 = vmatpush1.bf16.msra.mxu0 %v2213
    %2816 = vmatprep.subr.bf16.mxu0 %v2218
    %2817 = vmatpush1.bf16.msra.mxu0 %v2217
    %2818 = vmatprep.subr.bf16.mxu0 %v2222
    %2819 = vmatpush1.bf16.msra.mxu0 %v2221
    %2820 = vmatprep.subr.bf16.mxu0 %v2226
    %2821 = vmatpush1.bf16.msra.mxu0 %v2225
    %2822 = vmatprep.subr.bf16.mxu0 0
    %2823 = vmatpush1.bf16.msra.mxu0 0
    %2824 = vmatprep.subr.bf16.mxu0 0
    %2825 = vmatpush1.bf16.msra.mxu0 0
    %2826 = vmatprep.subr.bf16.mxu0 0
    %2827 = vmatpush1.bf16.msra.mxu0 0
    %2828 = vmatprep.subr.bf16.mxu0 0
    %2829 = vmatpush1.bf16.msra.mxu0 0
    %2830 = vmatprep.subr.bf16.mxu0 0
    %2831 = vmatpush1.bf16.msra.mxu0 0
    %2832 = vmatprep.subr.bf16.mxu0 0
    %2833 = vmatpush1.bf16.msra.mxu0 0
    %2834 = vmatprep.subr.bf16.mxu0 0
    %2835 = vmatpush1.bf16.msra.mxu0 0
    %2836 = vmatprep.subr.bf16.mxu0 0
    %2837 = vmatpush1.bf16.msra.mxu0 0
    %2838 = vmatprep.mubr.bf16.mxu0 0
    %2839 = vmatmul.mubr.bf16.gmra.mrb[0].mxu0 %v2805
    %v2840 = vpop.f32.mrb[0].mxu0
    %v2841 = vadd.f32 0.0, %v2840
    %v2842 = vpop.f32.mrb[0].mxu0
    %v2843 = vadd.f32 0.0, %v2842
    %v2844 = vpop.f32.mrb[0].mxu0
    %v2845 = vpop.f32.mrb[0].mxu0
    %2846 = vdwg.mxu0
    %2847 = vmatprep.subr.bf16.mxu0 %v2200
    %2848 = vmatpush1.bf16.msra.mxu0 %v2199
    %2849 = vmatprep.subr.bf16.mxu0 %v2204
    %2850 = vmatpush1.bf16.msra.mxu0 %v2203
    %2851 = vmatprep.subr.bf16.mxu0 %v2208
    %2852 = vmatpush1.bf16.msra.mxu0 %v2207
    %2853 = vmatprep.subr.bf16.mxu0 %v2212
    %2854 = vmatpush1.bf16.msra.mxu0 %v2211
    %2855 = vmatprep.subr.bf16.mxu0 %v2216
    %2856 = vmatpush1.bf16.msra.mxu0 %v2215
    %2857 = vmatprep.subr.bf16.mxu0 %v2220
    %2858 = vmatpush1.bf16.msra.mxu0 %v2219
    %2859 = vmatprep.subr.bf16.mxu0 %v2224
    %2860 = vmatpush1.bf16.msra.mxu0 %v2223
    %2861 = vmatprep.subr.bf16.mxu0 %v2228
    %2862 = vmatpush1.bf16.msra.mxu0 %v2227
    %2863 = vmatprep.subr.bf16.mxu0 0
    %2864 = vmatpush1.bf16.msra.mxu0 0
    %2865 = vmatprep.subr.bf16.mxu0 0
    %2866 = vmatpush1.bf16.msra.mxu0 0
    %2867 = vmatprep.subr.bf16.mxu0 0
    %2868 = vmatpush1.bf16.msra.mxu0 0
    %2869 = vmatprep.subr.bf16.mxu0 0
    %2870 = vmatpush1.bf16.msra.mxu0 0
    %2871 = vmatprep.subr.bf16.mxu0 0
    %2872 = vmatpush1.bf16.msra.mxu0 0
    %2873 = vmatprep.subr.bf16.mxu0 0
    %2874 = vmatpush1.bf16.msra.mxu0 0
    %2875 = vmatprep.subr.bf16.mxu0 0
    %2876 = vmatpush1.bf16.msra.mxu0 0
    %2877 = vmatprep.subr.bf16.mxu0 0
    %2878 = vmatpush1.bf16.msra.mxu0 0
    %2879 = vmatprep.mubr.bf16.mxu0 0
    %2880 = vmatmul.mubr.bf16.gmra.mrb[0].mxu0 %v2805
    %v2881 = vpop.f32.mrb[0].mxu0
    %v2882 = vadd.f32 0.0, %v2881
    %v2883 = vpop.f32.mrb[0].mxu0
    %v2884 = vadd.f32 0.0, %v2883
    %v2885 = vpop.f32.mrb[0].mxu0
    %v2886 = vpop.f32.mrb[0].mxu0
    %2887 = vdwg.mxu0
    %v2888 = vadd.f32 %v2801, %v2841
    %v2889 = vadd.f32 %v2802, %v2843
    %v2890 = vadd.f32 %v2803, %v2882
    %v2891 = vadd.f32 %v2804, %v2884
    %v2892 = vmul.f32 %v2888, 0.5
    %v2893 = vtanh.pop %v2892
    %v2894 = vmul.f32 %v2893, 0.5
    %v2895 = vadd.f32 %v2894, 0.5
    %v2896 = vmul.f32 %v2889, 0.5
    %v2897 = vtanh.pop %v2896
    %v2898 = vmul.f32 %v2897, 0.5
    %v2899 = vadd.f32 %v2898, 0.5
    %v2900 = vtanh.pop %v2890
    %v2901 = vmul.f32 %v2891, 0.5
    %v2902 = vtanh.pop %v2901
    %v2903 = vmul.f32 %v2902, 0.5
    %v2904 = vadd.f32 %v2903, 0.5
    %v2905 = vmul.f32 %v2899, %v2798
    %v2906 = vmul.f32 %v2895, %v2900
    %v2907 = vadd.f32 %v2905, %v2906
    %v2908 = vtanh.pop %v2907
    %v2909 = vmul.f32 %v2904, %v2908
    %v2910 = vld [vmem:[%s1425] sm:$0xff]
    %v2911 = vld [vmem:[%s1425 + $0x8] sm:$0xff]
    %v2912 = vld [vmem:[%s1425 + $0x10] sm:$0xff]
    %v2913 = vld [vmem:[%s1425 + $0x18] sm:$0xff]
    %v2914 = vpack.c.bf16 %v2909, %v2909
    %2915 = vmatprep.subr.bf16.mxu0 %v2198
    %2916 = vmatpush1.bf16.msra.mxu0 %v2197
    %2917 = vmatprep.subr.bf16.mxu0 %v2202
    %2918 = vmatpush1.bf16.msra.mxu0 %v2201
    %2919 = vmatprep.subr.bf16.mxu0 %v2206
    %2920 = vmatpush1.bf16.msra.mxu0 %v2205
    %2921 = vmatprep.subr.bf16.mxu0 %v2210
    %2922 = vmatpush1.bf16.msra.mxu0 %v2209
    %2923 = vmatprep.subr.bf16.mxu0 %v2214
    %2924 = vmatpush1.bf16.msra.mxu0 %v2213
    %2925 = vmatprep.subr.bf16.mxu0 %v2218
    %2926 = vmatpush1.bf16.msra.mxu0 %v2217
    %2927 = vmatprep.subr.bf16.mxu0 %v2222
    %2928 = vmatpush1.bf16.msra.mxu0 %v2221
    %2929 = vmatprep.subr.bf16.mxu0 %v2226
    %2930 = vmatpush1.bf16.msra.mxu0 %v2225
    %2931 = vmatprep.subr.bf16.mxu0 0
    %2932 = vmatpush1.bf16.msra.mxu0 0
    %2933 = vmatprep.subr.bf16.mxu0 0
    %2934 = vmatpush1.bf16.msra.mxu0 0
    %2935 = vmatprep.subr.bf16.mxu0 0
    %2936 = vmatpush1.bf16.msra.mxu0 0
    %2937 = vmatprep.subr.bf16.mxu0 0
    %2938 = vmatpush1.bf16.msra.mxu0 0
    %2939 = vmatprep.subr.bf16.mxu0 0
    %2940 = vmatpush1.bf16.msra.mxu0 0
    %2941 = vmatprep.subr.bf16.mxu0 0
    %2942 = vmatpush1.bf16.msra.mxu0 0
    %2943 = vmatprep.subr.bf16.mxu0 0
    %2944 = vmatpush1.bf16.msra.mxu0 0
    %2945 = vmatprep.subr.bf16.mxu0 0
    %2946 = vmatpush1.bf16.msra.mxu0 0
    %2947 = vmatprep.mubr.bf16.mxu0 0
    %2948 = vmatmul.mubr.bf16.gmra.mrb[0].mxu0 %v2914
    %v2949 = vpop.f32.mrb[0].mxu0
    %v2950 = vadd.f32 0.0, %v2949
    %v2951 = vpop.f32.mrb[0].mxu0
    %v2952 = vadd.f32 0.0, %v2951
    %v2953 = vpop.f32.mrb[0].mxu0
    %v2954 = vpop.f32.mrb[0].mxu0
    %2955 = vdwg.mxu0
    %2956 = vmatprep.subr.bf16.mxu0 %v2200
    %2957 = vmatpush1.bf16.msra.mxu0 %v2199
    %2958 = vmatprep.subr.bf16.mxu0 %v2204
    %2959 = vmatpush1.bf16.msra.mxu0 %v2203
    %2960 = vmatprep.subr.bf16.mxu0 %v2208
    %2961 = vmatpush1.bf16.msra.mxu0 %v2207
    %2962 = vmatprep.subr.bf16.mxu0 %v2212
    %2963 = vmatpush1.bf16.msra.mxu0 %v2211
    %2964 = vmatprep.subr.bf16.mxu0 %v2216
    %2965 = vmatpush1.bf16.msra.mxu0 %v2215
    %2966 = vmatprep.subr.bf16.mxu0 %v2220
    %2967 = vmatpush1.bf16.msra.mxu0 %v2219
    %2968 = vmatprep.subr.bf16.mxu0 %v2224
    %2969 = vmatpush1.bf16.msra.mxu0 %v2223
    %2970 = vmatprep.subr.bf16.mxu0 %v2228
    %2971 = vmatpush1.bf16.msra.mxu0 %v2227
    %2972 = vmatprep.subr.bf16.mxu0 0
    %2973 = vmatpush1.bf16.msra.mxu0 0
    %2974 = vmatprep.subr.bf16.mxu0 0
    %2975 = vmatpush1.bf16.msra.mxu0 0
    %2976 = vmatprep.subr.bf16.mxu0 0
    %2977 = vmatpush1.bf16.msra.mxu0 0
    %2978 = vmatprep.subr.bf16.mxu0 0
    %2979 = vmatpush1.bf16.msra.mxu0 0
    %2980 = vmatprep.subr.bf16.mxu0 0
    %2981 = vmatpush1.bf16.msra.mxu0 0
    %2982 = vmatprep.subr.bf16.mxu0 0
    %2983 = vmatpush1.bf16.msra.mxu0 0
    %2984 = vmatprep.subr.bf16.mxu0 0
    %2985 = vmatpush1.bf16.msra.mxu0 0
    %2986 = vmatprep.subr.bf16.mxu0 0
    %2987 = vmatpush1.bf16.msra.mxu0 0
    %2988 = vmatprep.mubr.bf16.mxu0 0
    %2989 = vmatmul.mubr.bf16.gmra.mrb[0].mxu0 %v2914
    %v2990 = vpop.f32.mrb[0].mxu0
    %v2991 = vadd.f32 0.0, %v2990
    %v2992 = vpop.f32.mrb[0].mxu0
    %v2993 = vadd.f32 0.0, %v2992
    %v2994 = vpop.f32.mrb[0].mxu0
    %v2995 = vpop.f32.mrb[0].mxu0
    %2996 = vdwg.mxu0
    %v2997 = vadd.f32 %v2910, %v2950
    %v2998 = vadd.f32 %v2911, %v2952
    %v2999 = vadd.f32 %v2912, %v2991
    %v3000 = vadd.f32 %v2913, %v2993
    %v3001 = vmul.f32 %v2997, 0.5
    %v3002 = vtanh.pop %v3001
    %v3003 = vmul.f32 %v3002, 0.5
    %v3004 = vadd.f32 %v3003, 0.5
    %v3005 = vmul.f32 %v2998, 0.5
    %v3006 = vtanh.pop %v3005
    %v3007 = vmul.f32 %v3006, 0.5
    %v3008 = vadd.f32 %v3007, 0.5
    %v3009 = vtanh.pop %v2999
    %v3010 = vmul.f32 %v3000, 0.5
    %v3011 = vtanh.pop %v3010
    %v3012 = vmul.f32 %v3011, 0.5
    %v3013 = vadd.f32 %v3012, 0.5
    %v3014 = vmul.f32 %v3008, %v2907
    %v3015 = vmul.f32 %v3004, %v3009
    %v3016 = vadd.f32 %v3014, %v3015
    %v3017 = vtanh.pop %v3016
    %v3018 = vmul.f32 %v3013, %v3017
    %v3019 = vld [vmem:[%s1539] sm:$0xff]
    %v3020 = vld [vmem:[%s1539 + $0x8] sm:$0xff]
    %v3021 = vld [vmem:[%s1539 + $0x10] sm:$0xff]
    %v3022 = vld [vmem:[%s1539 + $0x18] sm:$0xff]
    %v3023 = vpack.c.bf16 %v3018, %v3018
    %3024 = vmatprep.subr.bf16.mxu0 %v2198
    %3025 = vmatpush1.bf16.msra.mxu0 %v2197
    %3026 = vmatprep.subr.bf16.mxu0 %v2202
    %3027 = vmatpush1.bf16.msra.mxu0 %v2201
    %3028 = vmatprep.subr.bf16.mxu0 %v2206
    %3029 = vmatpush1.bf16.msra.mxu0 %v2205
    %3030 = vmatprep.subr.bf16.mxu0 %v2210
    %3031 = vmatpush1.bf16.msra.mxu0 %v2209
    %3032 = vmatprep.subr.bf16.mxu0 %v2214
    %3033 = vmatpush1.bf16.msra.mxu0 %v2213
    %3034 = vmatprep.subr.bf16.mxu0 %v2218
    %3035 = vmatpush1.bf16.msra.mxu0 %v2217
    %3036 = vmatprep.subr.bf16.mxu0 %v2222
    %3037 = vmatpush1.bf16.msra.mxu0 %v2221
    %3038 = vmatprep.subr.bf16.mxu0 %v2226
    %3039 = vmatpush1.bf16.msra.mxu0 %v2225
    %3040 = vmatprep.subr.bf16.mxu0 0
    %3041 = vmatpush1.bf16.msra.mxu0 0
    %3042 = vmatprep.subr.bf16.mxu0 0
    %3043 = vmatpush1.bf16.msra.mxu0 0
    %3044 = vmatprep.subr.bf16.mxu0 0
    %3045 = vmatpush1.bf16.msra.mxu0 0
    %3046 = vmatprep.subr.bf16.mxu0 0
    %3047 = vmatpush1.bf16.msra.mxu0 0
    %3048 = vmatprep.subr.bf16.mxu0 0
    %3049 = vmatpush1.bf16.msra.mxu0 0
    %3050 = vmatprep.subr.bf16.mxu0 0
    %3051 = vmatpush1.bf16.msra.mxu0 0
    %3052 = vmatprep.subr.bf16.mxu0 0
    %3053 = vmatpush1.bf16.msra.mxu0 0
    %3054 = vmatprep.subr.bf16.mxu0 0
    %3055 = vmatpush1.bf16.msra.mxu0 0
    %3056 = vmatprep.mubr.bf16.mxu0 0
    %3057 = vmatmul.mubr.bf16.gmra.mrb[0].mxu0 %v3023
    %v3058 = vpop.f32.mrb[0].mxu0
    %v3059 = vadd.f32 0.0, %v3058
    %v3060 = vpop.f32.mrb[0].mxu0
    %v3061 = vadd.f32 0.0, %v3060
    %v3062 = vpop.f32.mrb[0].mxu0
    %v3063 = vpop.f32.mrb[0].mxu0
    %3064 = vdwg.mxu0
    %3065 = vmatprep.subr.bf16.mxu0 %v2200
    %3066 = vmatpush1.bf16.msra.mxu0 %v2199
    %3067 = vmatprep.subr.bf16.mxu0 %v2204
    %3068 = vmatpush1.bf16.msra.mxu0 %v2203
    %3069 = vmatprep.subr.bf16.mxu0 %v2208
    %3070 = vmatpush1.bf16.msra.mxu0 %v2207
    %3071 = vmatprep.subr.bf16.mxu0 %v2212
    %3072 = vmatpush1.bf16.msra.mxu0 %v2211
    %3073 = vmatprep.subr.bf16.mxu0 %v2216
    %3074 = vmatpush1.bf16.msra.mxu0 %v2215
    %3075 = vmatprep.subr.bf16.mxu0 %v2220
    %3076 = vmatpush1.bf16.msra.mxu0 %v2219
    %3077 = vmatprep.subr.bf16.mxu0 %v2224
    %3078 = vmatpush1.bf16.msra.mxu0 %v2223
    %3079 = vmatprep.subr.bf16.mxu0 %v2228
    %3080 = vmatpush1.bf16.msra.mxu0 %v2227
    %3081 = vmatprep.subr.bf16.mxu0 0
    %3082 = vmatpush1.bf16.msra.mxu0 0
    %3083 = vmatprep.subr.bf16.mxu0 0
    %3084 = vmatpush1.bf16.msra.mxu0 0
    %3085 = vmatprep.subr.bf16.mxu0 0
    %3086 = vmatpush1.bf16.msra.mxu0 0
    %3087 = vmatprep.subr.bf16.mxu0 0
    %3088 = vmatpush1.bf16.msra.mxu0 0
    %3089 = vmatprep.subr.bf16.mxu0 0
    %3090 = vmatpush1.bf16.msra.mxu0 0
    %3091 = vmatprep.subr.bf16.mxu0 0
    %3092 = vmatpush1.bf16.msra.mxu0 0
    %3093 = vmatprep.subr.bf16.mxu0 0
    %3094 = vmatpush1.bf16.msra.mxu0 0
    %3095 = vmatprep.subr.bf16.mxu0 0
    %3096 = vmatpush1.bf16.msra.mxu0 0
    %3097 = vmatprep.mubr.bf16.mxu0 0
    %3098 = vmatmul.mubr.bf16.gmra.mrb[0].mxu0 %v3023
    %v3099 = vpop.f32.mrb[0].mxu0
    %v3100 = vadd.f32 0.0, %v3099
    %v3101 = vpop.f32.mrb[0].mxu0
    %v3102 = vadd.f32 0.0, %v3101
    %v3103 = vpop.f32.mrb[0].mxu0
    %v3104 = vpop.f32.mrb[0].mxu0
    %3105 = vdwg.mxu0
    %v3106 = vadd.f32 %v3019, %v3059
    %v3107 = vadd.f32 %v3020, %v3061
    %v3108 = vadd.f32 %v3021, %v3100
    %v3109 = vadd.f32 %v3022, %v3102
    %v3110 = vmul.f32 %v3106, 0.5
    %v3111 = vtanh.pop %v3110
    %v3112 = vmul.f32 %v3111, 0.5
    %v3113 = vadd.f32 %v3112, 0.5
    %v3114 = vmul.f32 %v3107, 0.5
    %v3115 = vtanh.pop %v3114
    %v3116 = vmul.f32 %v3115, 0.5
    %v3117 = vadd.f32 %v3116, 0.5
    %v3118 = vtanh.pop %v3108
    %v3119 = vmul.f32 %v3109, 0.5
    %v3120 = vtanh.pop %v3119
    %v3121 = vmul.f32 %v3120, 0.5
    %v3122 = vadd.f32 %v3121, 0.5
    %v3123 = vmul.f32 %v3117, %v3016
    %v3124 = vmul.f32 %v3113, %v3118
    %v3125 = vadd.f32 %v3123, %v3124
    %v3126 = vtanh.pop %v3125
    %v3127 = vmul.f32 %v3122, %v3126
    %s3128 = scalar_lea.vmem [#allocation19], 8
    %3129 = vst [vmem:[%s3128] sm:$0xff] %v3127
    %s3130 = scalar_lea.vmem [#allocation21], 8
    %3131 = vst [vmem:[%s3130] sm:$0xff] %v3125
    %v3132 = vld [vmem:[#allocation15] sm:$0xf]
    %v3133 = vld [vmem:[#allocation15 + $0x4] sm:$0xf]
    %v3134 = vld [vmem:[#allocation15 + $0x8] sm:$0xf]
    %v3135 = vld [vmem:[#allocation15 + $0xc] sm:$0xf]
    %v3136 = vld [vmem:[#allocation15 + $0x10] sm:$0xf]
    %v3137 = vld [vmem:[#allocation15 + $0x14] sm:$0xf]
    %v3138 = vld [vmem:[#allocation15 + $0x18] sm:$0xf]
    %v3139 = vld [vmem:[#allocation15 + $0x1c] sm:$0xf]
    %v3140 = vld [vmem:[#allocation15 + $0x20] sm:$0xf]
    %v3141 = vld [vmem:[#allocation15 + $0x24] sm:$0xf]
    %v3142 = vld [vmem:[#allocation15 + $0x28] sm:$0xf]
    %v3143 = vld [vmem:[#allocation15 + $0x2c] sm:$0xf]
    %v3144 = vld [vmem:[#allocation15 + $0x30] sm:$0xf]
    %v3145 = vld [vmem:[#allocation15 + $0x34] sm:$0xf]
    %v3146 = vld [vmem:[#allocation15 + $0x38] sm:$0xf]
    %v3147 = vld [vmem:[#allocation15 + $0x3c] sm:$0xf]
    %v3148 = vpack.c.bf16 %v3127, %v3127
    %v3149 = vld [vmem:[#allocation16] sm:$0x1]
    %v3151 = vlaneseq
    %v3152 = vshrl.u32 %v3151, 7
    %v3153 = vsub.s32 0, %v3152
    %v3154 = vrot.slane %v3149, %v3153
    %v3172 = vunpack.c.l.b16 %v3132
    %v3173 = vunpack.c.l.b16 %v3133
    %v3174 = vunpack.c.l.b16 %v3134
    %v3175 = vunpack.c.l.b16 %v3135
    %v3176 = vunpack.c.l.b16 %v3136
    %v3177 = vunpack.c.l.b16 %v3137
    %v3178 = vunpack.c.l.b16 %v3138
    %v3179 = vunpack.c.l.b16 %v3139
    %v3180 = vunpack.c.l.b16 %v3140
    %v3181 = vunpack.c.l.b16 %v3141
    %v3182 = vunpack.c.l.b16 %v3142
    %v3183 = vunpack.c.l.b16 %v3143
    %v3184 = vunpack.c.l.b16 %v3144
    %v3185 = vunpack.c.l.b16 %v3145
    %v3186 = vunpack.c.l.b16 %v3146
    %v3187 = vunpack.c.l.b16 %v3147
    %v3188 = vpack.c.b16 %v3173, %v3172
    %v3189 = vpack.c.b16 %v3175, %v3174
    %v3190 = vpack.c.b16 %v3177, %v3176
    %v3191 = vpack.c.b16 %v3179, %v3178
    %v3192 = vpack.c.b16 %v3181, %v3180
    %v3193 = vpack.c.b16 %v3183, %v3182
    %v3194 = vpack.c.b16 %v3185, %v3184
    %v3195 = vpack.c.b16 %v3187, %v3186
    %3204 = vmatprep.subr.bf16.mxu0 0
    %3205 = vmatpush1.bf16.msra.mxu0 %v3188
    %3206 = vmatprep.subr.bf16.mxu0 0
    %3207 = vmatpush1.bf16.msra.mxu0 %v3189
    %3208 = vmatprep.subr.bf16.mxu0 0
    %3209 = vmatpush1.bf16.msra.mxu0 %v3190
    %3210 = vmatprep.subr.bf16.mxu0 0
    %3211 = vmatpush1.bf16.msra.mxu0 %v3191
    %3212 = vmatprep.subr.bf16.mxu0 0
    %3213 = vmatpush1.bf16.msra.mxu0 %v3192
    %3214 = vmatprep.subr.bf16.mxu0 0
    %3215 = vmatpush1.bf16.msra.mxu0 %v3193
    %3216 = vmatprep.subr.bf16.mxu0 0
    %3217 = vmatpush1.bf16.msra.mxu0 %v3194
    %3218 = vmatprep.subr.bf16.mxu0 0
    %3219 = vmatpush1.bf16.msra.mxu0 %v3195
    %3220 = vmatprep.subr.bf16.mxu0 0
    %3221 = vmatpush1.bf16.msra.mxu0 0
    %3222 = vmatprep.subr.bf16.mxu0 0
    %3223 = vmatpush1.bf16.msra.mxu0 0
    %3224 = vmatprep.subr.bf16.mxu0 0
    %3225 = vmatpush1.bf16.msra.mxu0 0
    %3226 = vmatprep.subr.bf16.mxu0 0
    %3227 = vmatpush1.bf16.msra.mxu0 0
    %3228 = vmatprep.subr.bf16.mxu0 0
    %3229 = vmatpush1.bf16.msra.mxu0 0
    %3230 = vmatprep.subr.bf16.mxu0 0
    %3231 = vmatpush1.bf16.msra.mxu0 0
    %3232 = vmatprep.subr.bf16.mxu0 0
    %3233 = vmatpush1.bf16.msra.mxu0 0
    %3234 = vmatprep.subr.bf16.mxu0 0
    %3235 = vmatpush1.bf16.msra.mxu0 0
    %3236 = vmatprep.mubr.bf16.mxu0 0
    %3237 = vmatmul.mubr.bf16.gmra.mrb[0].mxu0 %v3148
    %v3238 = vpop.f32.mrb[0].mxu0
    %v3239 = vadd.f32 %v3154, %v3238
    %v3240 = vpop.f32.mrb[0].mxu0
    %v3241 = vpop.f32.mrb[0].mxu0
    %v3242 = vpop.f32.mrb[0].mxu0
    %3243 = vdwg.mxu0
    %v3244 = vmul.f32 %v3239, 0.5
    %v3245 = vtanh.pop %v3244
    %v3246 = vmul.f32 %v3245, 0.5
    %v3247 = vadd.f32 %v3246, 0.5
    %3248 = vst [vmem:[#allocation18] sm:$0xff] %v3247
    // Predicated region
    $region66: #{sentiment_rnn_forward.1} parent=1 // pred_check
      _
    $region67: #{sentiment_rnn_forward.1} parent=1 // pred_check_branch
      %3250 = sbr.rel (0) target = $region69
    $region68: #{sentiment_rnn_forward.1} parent=1 // pred_region
      %s3252 = ssub.s32 128, 128
      %3253 = vsyncadd [#allocation6], %s3252
      %s3255 = sshll.u32 [#allocation18], 4
      %s3256 = int_to_ptr.vmem [resolvable:$true] %s3255
      %3258 = dma.vmem_to_hbm [thread:$0]  %s3256, 128, %s8, [#allocation6]
    $region69: #{sentiment_rnn_forward.1} parent=1 // pred_fallthru
      _
    // Predicated region
    $region70: #{sentiment_rnn_forward.1} parent=1 // pred_check
      _
    $region71: #{sentiment_rnn_forward.1} parent=1 // pred_check_branch
      %3260 = sbr.rel (0) target = $region73
    $region72: #{sentiment_rnn_forward.1} parent=1 // pred_region
      %s3262 = ssub.s32 256, 256
      %3263 = vsyncadd [#allocation20], %s3262
      %s3264 = sshll.u32 [#allocation19], 4
      %s3265 = int_to_ptr.vmem [resolvable:$true] %s3264
      %3270 = dma.vmem_to_hbm [thread:$0]  %s3265, 256, %s9, [#allocation20], 128, 128, 8
    $region73: #{sentiment_rnn_forward.1} parent=1 // pred_fallthru
      _
    // Predicated region
    $region74: #{sentiment_rnn_forward.1} parent=1 // pred_check
      _
    $region75: #{sentiment_rnn_forward.1} parent=1 // pred_check_branch
      %3272 = sbr.rel (0) target = $region77
    $region76: #{sentiment_rnn_forward.1} parent=1 // pred_region
      %s3274 = ssub.s32 256, 256
      %3275 = vsyncadd [#allocation20], %s3274
      %s3276 = sshll.u32 [#allocation21], 4
      %s3277 = int_to_ptr.vmem [resolvable:$true] %s3276
      %3282 = dma.vmem_to_hbm [thread:$0]  %s3277, 256, %s10, [#allocation20], 128, 128, 8
    $region77: #{sentiment_rnn_forward.1} parent=1 // pred_fallthru
      _
    // Predicated region
    $region78: #{sentiment_rnn_forward.1} parent=1 // pred_check
      _
    $region79: #{sentiment_rnn_forward.1} parent=1 // pred_check_branch
      %3284 = sbr.rel (0) target = $region81
    $region80: #{sentiment_rnn_forward.1} parent=1 // pred_region
      %3285 = dma.done [#allocation6], 128
    $region81: #{sentiment_rnn_forward.1} parent=1 // pred_fallthru
      _
    // Predicated region
    $region82: #{sentiment_rnn_forward.1} parent=1 // pred_check
      _
    $region83: #{sentiment_rnn_forward.1} parent=1 // pred_check_branch
      %3287 = sbr.rel (0) target = $region85
    $region84: #{sentiment_rnn_forward.1} parent=1 // pred_region
      %3288 = dma.done [#allocation20], 256
    $region85: #{sentiment_rnn_forward.1} parent=1 // pred_fallthru
      _
    // Predicated region
    $region86: #{sentiment_rnn_forward.1} parent=1 // pred_check
      _
    $region87: #{sentiment_rnn_forward.1} parent=1 // pred_check_branch
      %3290 = sbr.rel (0) target = $region89
    $region88: #{sentiment_rnn_forward.1} parent=1 // pred_region
      %3291 = dma.done [#allocation20], 256
    $region89: #{sentiment_rnn_forward.1} parent=1 // pred_fallthru
      _
    %3292 = vsyncpa [#allocation5], 1
    %3293 = vsyncpa [#allocation8], 1
    %3294 = vsyncpa [#allocation11], 1
    %3295 = vsyncpa [#allocation14], 1
    %3296 = vsyncpa [#allocation17], 1
    %3297 = vsyncpa [#allocation6], 1
    %3298 = vsyncpa [#allocation20], 1

</llo_original>
